<compile_context>
chip_gen: v6e
topology: v6e:2x2x1
jax: 0.10.0
libtpu: 0.0.40
codegen_flags: <defaults>
</compile_context>

<pallas_src>
import math
from functools import partial

import jax
import jax.numpy as jnp
from jax.experimental import pallas as pl
from jax.experimental.pallas import tpu as pltpu

# Row indices inside the packed per-block vector stack.
(I_GX, I_BX, I_G1, I_B1, I_BQ, I_BK, I_BV, I_KB, I_VB,
 I_BO, I_B1L, I_G2, I_B2, I_B2L, I_B3L) = range(15)
_N_VEC_ROWS = 16  # padded to a multiple of 8 sublanes

_VEC_ORDER = ("gx", "bx", "g1", "b1", "bq", "bk", "bv", "kbias", "vbias",
              "bo", "b1l", "g2", "b2", "b2l", "b3l")


def _layer_norm(v, g, b, eps=1e-5):
    mu = jnp.mean(v, axis=-1, keepdims=True)
    var = jnp.mean((v - mu) ** 2, axis=-1, keepdims=True)
    return (v - mu) * jax.lax.rsqrt(var + eps) * g + b


def _perceiver_kernel(x_ref, z_ref, win_ref, wrest_ref, vec_ref, o_ref,
                      attn_scr, z_scr, *, batch, heads):
    f32 = jnp.float32
    blk = pl.program_id(0)
    nblk = pl.num_programs(0)
    D = z_ref.shape[-1]

    def vrow(i):                       # (1, D) row of the current block's vector stack
        return vec_ref[0, i:i + 1, :]

    w_in = win_ref[0]                  # (D, 3D) = [Wq | Wk | Wv], (in, out) layout

    # ---- z carried in VMEM across the block grid axis ----
    @pl.when(blk == 0)
    def _init():
        z_scr[...] = z_ref[...].astype(f32)

    z_in = z_scr[...]                  # (Sz*B, D) residual input of this block

    # layer_norm_1(z) and the query projection are common to both paths.
    zn = _layer_norm(z_in, vrow(I_G1), vrow(I_B1))
    q = jnp.dot(zn, w_in[:, :D], preferred_element_type=f32) + vrow(I_BQ)

    def attend(xn, nheads):
        """Multi-head attention of q over K/V built from xn (rows ordered (s, b), b minor)."""
        hd = D // nheads
        scale = 1.0 / math.sqrt(hd)
        n_kv = xn.shape[0]
        # Fused K/V projection: one matmul -> (n_kv, 2D), then static lane slices.
        kv = jnp.dot(xn, w_in[:, D:], preferred_element_type=f32)
        k = kv[:, :D] + vrow(I_BK)
        v = kv[:, D:] + vrow(I_BV)
        # Block-diagonal batch mask: query row i and key row j must belong to the
        # same batch element (index mod B).  Avoids per-batch reshapes entirely.
        ri = jax.lax.broadcasted_iota(jnp.int32, (q.shape[0], n_kv), 0)
        ci = jax.lax.broadcasted_iota(jnp.int32, (q.shape[0], n_kv), 1)
        same_batch = (ri % batch) == (ci % batch)
        neg = jnp.asarray(-1e30, f32)
        for h in range(nheads):                       # static, small (<=4)
            sl = slice(h * hd, (h + 1) * hd)
            qh = q[:, sl] * scale
            kh = k[:, sl]
            vh = v[:, sl]
            kb = vrow(I_KB)[:, sl]                    # learned extra key  (add_bias_kv)
            vb = vrow(I_VB)[:, sl]                    # learned extra value
            s = jax.lax.dot_general(qh, kh, (((1,), (1,)), ((), ())),
                                    preferred_element_type=f32)   # (Sz*B, n_kv)
            s = jnp.where(same_batch, s, neg)
            sb = jnp.sum(qh * kb, axis=-1, keepdims=True)          # bias-key logit
            m = jnp.maximum(jnp.max(s, axis=-1, keepdims=True), sb)
            p = jnp.exp(s - m)
            pb = jnp.exp(sb - m)
            denom = jnp.sum(p, axis=-1, keepdims=True) + pb
            ctx = jnp.dot(p, vh, preferred_element_type=f32) + pb * vb
            attn_scr[:, sl] = ctx * pl.reciprocal(denom, approx=True)

    # Block 0: cross-attention, K/V from x, a single head (as in PerceiverBlock).
    @pl.when(blk == 0)
    def _cross():
        xn = _layer_norm(x_ref[...].astype(f32), vrow(I_GX), vrow(I_BX))
        attend(xn, 1)

    # Blocks 1..L: latent self-attention, K/V from the carried z, H heads.
    @pl.when(blk > 0)
    def _latent():
        xn = _layer_norm(z_in, vrow(I_GX), vrow(I_BX))
        attend(xn, heads)

    attn = attn_scr[...]

    # out_proj -> (dropout=id) -> linear1 -> LN2 -> linear2 -> GELU -> linear3 -> residual
    z = jnp.dot(attn, wrest_ref[0, 0], preferred_element_type=f32) + vrow(I_BO)
    z = jnp.dot(z, wrest_ref[0, 1], preferred_element_type=f32) + vrow(I_B1L)
    z = _layer_norm(z, vrow(I_G2), vrow(I_B2))
    z = jnp.dot(z, wrest_ref[0, 2], preferred_element_type=f32) + vrow(I_B2L)
    z = 0.5 * z * (1.0 + jax.lax.erf(z * 0.7071067811865476))   # exact (erf) GELU
    z = jnp.dot(z, wrest_ref[0, 3], preferred_element_type=f32) + vrow(I_B3L)
    z_new = z + z_in

    z_scr[...] = z_new

    @pl.when(blk == nblk - 1)
    def _emit():
        # NOTE: at realistic D (>=128) this store is lane-dense automatically.
        o_ref[...] = z_new.astype(o_ref.dtype)


def perceiver_block(x, z, packed_params, heads):
    """PerceiverBlock.forward. x: (Sx, B, D), z: (Sz, B, D), seq-first like PyTorch MHA."""
    Sx, B, D = x.shape
    Sz, Bz, Dz = z.shape
    assert B == Bz and D == Dz and D % heads == 0, "bad shapes / d_model % heads != 0"
    w_in, w_rest, vecs = packed_params
    nblk = w_in.shape[0]

    # Free row-major reshapes (no transposes): fold batch into the row dimension.
    x2 = x.reshape(Sx * B, D)
    z2 = z.reshape(Sz * B, D)

    out = pl.pallas_call(
        partial(_perceiver_kernel, batch=B, heads=heads),
        grid=(nblk,),
        in_specs=[
            pl.BlockSpec((Sx * B, D), lambda l: (0, 0)),             # x, resident (1 DMA)
            pl.BlockSpec((Sz * B, D), lambda l: (0, 0)),             # initial z
            pl.BlockSpec((1, D, 3 * D), lambda l: (l, 0, 0)),        # per-block [Wq|Wk|Wv]
            pl.BlockSpec((1, 4, D, D), lambda l: (l, 0, 0, 0)),      # per-block wo,w1,w2,w3
            pl.BlockSpec((1, _N_VEC_ROWS, D), lambda l: (l, 0, 0)),  # per-block LN/bias rows
        ],
        out_specs=pl.BlockSpec((Sz * B, D), lambda l: (0, 0)),
        out_shape=jax.ShapeDtypeStruct((Sz * B, D), z.dtype),
        scratch_shapes=[
            pltpu.VMEM((Sz * B, D), jnp.float32),   # attention output scratch
            pltpu.VMEM((Sz * B, D), jnp.float32),   # z carried across the block axis
        ],
        # Single sequential block axis; at B=2 / tiny shapes a parallel batch axis
        # (for v7x's 2nd TensorCore) is not worth splitting batch back out of M.
        compiler_params=pltpu.CompilerParams(dimension_semantics=("arbitrary",)),
    )(x2, z2, w_in, w_rest, vecs)
    return out.reshape(Sz, B, D)


# ----------------------------- parameter setup -----------------------------

def init_attention_block_params(key, d_model):
    ks = jax.random.split(key, 14)
    f32 = jnp.float32

    def mat(k):
        return jax.random.normal(k, (d_model, d_model), f32) * 0.05

    def vec(k):
        return jax.random.normal(k, (1, d_model), f32) * 0.05

    return dict(
        gx=jnp.ones((1, d_model), f32), bx=jnp.zeros((1, d_model), f32),
        g1=jnp.ones((1, d_model), f32), b1=jnp.zeros((1, d_model), f32),
        wq=mat(ks[0]), wk=mat(ks[1]), wv=mat(ks[2]),
        bq=vec(ks[3]), bk=vec(ks[4]), bv=vec(ks[5]),
        kbias=vec(ks[6]), vbias=vec(ks[7]),
        wo=mat(ks[8]), bo=vec(ks[9]),
        w1=mat(ks[10]), b1l=vec(ks[11]),
        g2=jnp.ones((1, d_model), f32), b2=jnp.zeros((1, d_model), f32),
        w2=mat(ks[12]), b2l=vec(ks[13]),
        w3=mat(jax.random.fold_in(key, 99)), b3l=vec(jax.random.fold_in(key, 100)),
    )


def init_perceiver_params(key, d_model, latent_blocks):
    keys = jax.random.split(key, latent_blocks + 1)
    return dict(
        cross=init_attention_block_params(keys[0], d_model),
        latent=[init_attention_block_params(keys[i + 1], d_model)
                for i in range(latent_blocks)],
    )


def pack_perceiver_params(params, d_model):
    """Stack cross + latent block weights into 3 arrays with a leading block axis."""
    blocks = [params["cross"]] + list(params["latent"])
    w_in, w_rest, vecs = [], [], []
    for p in blocks:
        w_in.append(jnp.concatenate([p["wq"], p["wk"], p["wv"]], axis=1))     # (D, 3D)
        w_rest.append(jnp.stack([p["wo"], p["w1"], p["w2"], p["w3"]], 0))     # (4, D, D)
        rows = [p[name].reshape(d_model) for name in _VEC_ORDER]
        rows.append(jnp.zeros((d_model,), jnp.float32))                       # pad to 16
        vecs.append(jnp.stack(rows, 0))                                       # (16, D)
    return (jnp.stack(w_in, 0), jnp.stack(w_rest, 0), jnp.stack(vecs, 0))


if __name__ == "__main__":
    d_model = 32
    heads = 4
    latent_blocks = 2
    Sx, Sz, B = 16, 8, 2

    key = jax.random.PRNGKey(0)
    kx, kz, kp = jax.random.split(key, 3)
    x = jax.random.normal(kx, (Sx, B, d_model), jnp.float32)
    z = jax.random.normal(kz, (Sz, B, d_model), jnp.float32)
    params = init_perceiver_params(kp, d_model, latent_blocks)
    packed = pack_perceiver_params(params, d_model)

    fn = jax.jit(partial(perceiver_block, heads=heads))
    out = fn(x, z, packed)
    out = jax.block_until_ready(out)
    assert out.shape == (Sz, B, d_model), out.shape
    assert jnp.all(jnp.isfinite(out))
    print("KERNEL_OK")
</pallas_src>

<mosaic_0001>
module attributes {stable_mosaic.version = 11 : i64} {
  func.func @_perceiver_kernel(%arg0: i32, %arg1: memref<32x32xf32, #tpu.memory_space<vmem>>, %arg2: memref<16x32xf32, #tpu.memory_space<vmem>>, %arg3: memref<1x32x96xf32, #tpu.memory_space<vmem>>, %arg4: memref<1x4x32x32xf32, #tpu.memory_space<vmem>>, %arg5: memref<1x16x32xf32, #tpu.memory_space<vmem>>, %arg6: memref<16x32xf32, #tpu.memory_space<vmem>>, %arg7: memref<16x32xf32, #tpu.memory_space<vmem>>, %arg8: memref<16x32xf32, #tpu.memory_space<vmem>>) attributes {dimension_semantics = [#tpu.dimension_semantics<arbitrary>], iteration_bounds = array<i64: 3>, scalar_prefetch = 0 : i64, scratch_operands = 2 : i64, tpu.core_type = #tpu.core_type<tc>, window_params = [{pipeline_mode = #tpu.pipeline_mode<synchronous>, transform_indices = @transform_0, window_bounds = array<i64: 32, 32>}, {pipeline_mode = #tpu.pipeline_mode<synchronous>, transform_indices = @transform_1, window_bounds = array<i64: 16, 32>}, {transform_indices = @transform_2, window_bounds = array<i64: 1, 32, 96>}, {transform_indices = @transform_3, window_bounds = array<i64: 1, 4, 32, 32>}, {transform_indices = @transform_4, window_bounds = array<i64: 1, 16, 32>}, {pipeline_mode = #tpu.pipeline_mode<synchronous>, transform_indices = @transform_5, window_bounds = array<i64: 16, 32>}]} {
    %c0 = arith.constant 0 : index
    %c0_0 = arith.constant 0 : index
    %c0_1 = arith.constant 0 : index
    %0 = vector.load %arg3[%c0, %c0_0, %c0_1] : memref<1x32x96xf32, #tpu.memory_space<vmem>>, vector<1x32x96xf32>
    %1 = vector.shape_cast %0 : vector<1x32x96xf32> to vector<32x96xf32>
    %c0_i32 = arith.constant 0 : i32
    %2 = arith.cmpi eq, %arg0, %c0_i32 : i32
    %3 = arith.extui %2 : i1 to i32
    %c0_i32_2 = arith.constant 0 : i32
    %4 = arith.cmpi ne, %3, %c0_i32_2 : i32
    scf.if %4 {
      %c0_64 = arith.constant 0 : index
      %c0_65 = arith.constant 0 : index
      %112 = vector.load %arg2[%c0_64, %c0_65] : memref<16x32xf32, #tpu.memory_space<vmem>>, vector<16x32xf32>
      %c0_66 = arith.constant 0 : index
      %c0_67 = arith.constant 0 : index
      %113 = vector.load %arg8[%c0_66, %c0_67] : memref<16x32xf32, #tpu.memory_space<vmem>>, vector<16x32xf32>
      tpu.vector_store %arg8[%c0_66, %c0_67], %112 {strides = array<i32>} : memref<16x32xf32, #tpu.memory_space<vmem>>, vector<16x32xf32>,
    } else {
    }
    %c0_3 = arith.constant 0 : index
    %c0_4 = arith.constant 0 : index
    %5 = vector.load %arg8[%c0_3, %c0_4] : memref<16x32xf32, #tpu.memory_space<vmem>>, vector<16x32xf32>
    %c0_5 = arith.constant 0 : index
    %c2 = arith.constant 2 : index
    %c0_6 = arith.constant 0 : index
    %6 = vector.load %arg5[%c0_5, %c2, %c0_6] : memref<1x16x32xf32, #tpu.memory_space<vmem>>, vector<1x1x32xf32>
    %7 = vector.shape_cast %6 : vector<1x1x32xf32> to vector<1x32xf32>
    %c0_7 = arith.constant 0 : index
    %c3 = arith.constant 3 : index
    %c0_8 = arith.constant 0 : index
    %8 = vector.load %arg5[%c0_7, %c3, %c0_8] : memref<1x16x32xf32, #tpu.memory_space<vmem>>, vector<1x1x32xf32>
    %9 = vector.shape_cast %8 : vector<1x1x32xf32> to vector<1x32xf32>
    %cst = arith.constant dense<0.000000e+00> : vector<16xf32>
    %10 = vector.multi_reduction <add>, %5, %cst [1] : vector<16x32xf32> to vector<16xf32>
    %11 = vector.shape_cast %10 : vector<16xf32> to vector<16x1xf32>
    %cst_9 = arith.constant 3.200000e+01 : f32
    %12 = vector.broadcast %cst_9 : f32 to vector<16x1xf32>
    %13 = arith.divf %11, %12 : vector<16x1xf32>
    %14 = vector.broadcast %13 : vector<16x1xf32> to vector<16x32xf32>
    %15 = arith.subf %5, %14 : vector<16x32xf32>
    %16 = arith.mulf %15, %15 : vector<16x32xf32>
    %cst_10 = arith.constant dense<0.000000e+00> : vector<16xf32>
    %17 = vector.multi_reduction <add>, %16, %cst_10 [1] : vector<16x32xf32> to vector<16xf32>
    %18 = vector.shape_cast %17 : vector<16xf32> to vector<16x1xf32>
    %cst_11 = arith.constant 3.200000e+01 : f32
    %19 = vector.broadcast %cst_11 : f32 to vector<16x1xf32>
    %20 = arith.divf %18, %19 : vector<16x1xf32>
    %21 = vector.broadcast %13 : vector<16x1xf32> to vector<16x32xf32>
    %22 = arith.subf %5, %21 : vector<16x32xf32>
    %cst_12 = arith.constant 9.99999974E-6 : f32
    %23 = vector.broadcast %cst_12 : f32 to vector<16x1xf32>
    %24 = arith.addf %20, %23 : vector<16x1xf32>
    %25 = math.rsqrt %24 : vector<16x1xf32>
    %26 = vector.broadcast %25 : vector<16x1xf32> to vector<16x32xf32>
    %27 = arith.mulf %22, %26 : vector<16x32xf32>
    %28 = vector.broadcast %7 : vector<1x32xf32> to vector<16x32xf32>
    %29 = arith.mulf %27, %28 : vector<16x32xf32>
    %30 = vector.broadcast %9 : vector<1x32xf32> to vector<16x32xf32>
    %31 = arith.addf %29, %30 : vector<16x32xf32>
    %32 = vector.extract_strided_slice %1 {offsets = [0, 0], sizes = [32, 32], strides = [1, 1]} : vector<32x96xf32> to vector<32x32xf32>
    %cst_13 = arith.constant dense<0.000000e+00> : vector<16x32xf32>
    %33 = tpu.matmul %31, %32, %cst_13 {dimension_numbers = #tpu.dot_dimension_numbers<[1], [0], [0], [1], [0, 0, 1, 1], [], []>} : vector<16x32xf32>, vector<32x32xf32>, vector<16x32xf32> -> vector<16x32xf32>
    %c0_14 = arith.constant 0 : index
    %c4 = arith.constant 4 : index
    %c0_15 = arith.constant 0 : index
    %34 = vector.load %arg5[%c0_14, %c4, %c0_15] : memref<1x16x32xf32, #tpu.memory_space<vmem>>, vector<1x1x32xf32>
    %35 = vector.shape_cast %34 : vector<1x1x32xf32> to vector<1x32xf32>
    %36 = vector.broadcast %35 : vector<1x32xf32> to vector<16x32xf32>
    %37 = arith.addf %33, %36 : vector<16x32xf32>
    %c0_i32_16 = arith.constant 0 : i32
    %38 = arith.cmpi eq, %arg0, %c0_i32_16 : i32
    %39 = arith.extui %38 : i1 to i32
    %c0_i32_17 = arith.constant 0 : i32
    %40 = arith.cmpi ne, %39, %c0_i32_17 : i32
    scf.if %40 {
      %c0_64 = arith.constant 0 : index
      %c0_65 = arith.constant 0 : index
      %112 = vector.load %arg1[%c0_64, %c0_65] : memref<32x32xf32, #tpu.memory_space<vmem>>, vector<32x32xf32>
      %c0_66 = arith.constant 0 : index
      %c0_67 = arith.constant 0 : index
      %c0_68 = arith.constant 0 : index
      %113 = vector.load %arg5[%c0_66, %c0_67, %c0_68] : memref<1x16x32xf32, #tpu.memory_space<vmem>>, vector<1x1x32xf32>
      %114 = vector.shape_cast %113 : vector<1x1x32xf32> to vector<1x32xf32>
      %c0_69 = arith.constant 0 : index
      %c1_70 = arith.constant 1 : index
      %c0_71 = arith.constant 0 : index
      %115 = vector.load %arg5[%c0_69, %c1_70, %c0_71] : memref<1x16x32xf32, #tpu.memory_space<vmem>>, vector<1x1x32xf32>
      %116 = vector.shape_cast %115 : vector<1x1x32xf32> to vector<1x32xf32>
      %cst_72 = arith.constant dense<0.000000e+00> : vector<32xf32>
      %117 = vector.multi_reduction <add>, %112, %cst_72 [1] : vector<32x32xf32> to vector<32xf32>
      %118 = vector.shape_cast %117 : vector<32xf32> to vector<32x1xf32>
      %cst_73 = arith.constant 3.200000e+01 : f32
      %119 = vector.broadcast %cst_73 : f32 to vector<32x1xf32>
      %120 = arith.divf %118, %119 : vector<32x1xf32>
      %121 = vector.broadcast %120 : vector<32x1xf32> to vector<32x32xf32>
      %122 = arith.subf %112, %121 : vector<32x32xf32>
      %123 = arith.mulf %122, %122 : vector<32x32xf32>
      %cst_74 = arith.constant dense<0.000000e+00> : vector<32xf32>
      %124 = vector.multi_reduction <add>, %123, %cst_74 [1] : vector<32x32xf32> to vector<32xf32>
      %125 = vector.shape_cast %124 : vector<32xf32> to vector<32x1xf32>
      %cst_75 = arith.constant 3.200000e+01 : f32
      %126 = vector.broadcast %cst_75 : f32 to vector<32x1xf32>
      %127 = arith.divf %125, %126 : vector<32x1xf32>
      %128 = vector.broadcast %120 : vector<32x1xf32> to vector<32x32xf32>
      %129 = arith.subf %112, %128 : vector<32x32xf32>
      %cst_76 = arith.constant 9.99999974E-6 : f32
      %130 = vector.broadcast %cst_76 : f32 to vector<32x1xf32>
      %131 = arith.addf %127, %130 : vector<32x1xf32>
      %132 = math.rsqrt %131 : vector<32x1xf32>
      %133 = vector.broadcast %132 : vector<32x1xf32> to vector<32x32xf32>
      %134 = arith.mulf %129, %133 : vector<32x32xf32>
      %135 = vector.broadcast %114 : vector<1x32xf32> to vector<32x32xf32>
      %136 = arith.mulf %134, %135 : vector<32x32xf32>
      %137 = vector.broadcast %116 : vector<1x32xf32> to vector<32x32xf32>
      %138 = arith.addf %136, %137 : vector<32x32xf32>
      %139 = vector.extract_strided_slice %1 {offsets = [0, 32], sizes = [32, 64], strides = [1, 1]} : vector<32x96xf32> to vector<32x64xf32>
      %cst_77 = arith.constant dense<0.000000e+00> : vector<32x64xf32>
      %140 = tpu.matmul %138, %139, %cst_77 {dimension_numbers = #tpu.dot_dimension_numbers<[1], [0], [0], [1], [0, 0, 1, 1], [], []>} : vector<32x32xf32>, vector<32x64xf32>, vector<32x64xf32> -> vector<32x64xf32>
      %141 = vector.extract_strided_slice %140 {offsets = [0, 0], sizes = [32, 32], strides = [1, 1]} : vector<32x64xf32> to vector<32x32xf32>
      %c0_78 = arith.constant 0 : index
      %c5 = arith.constant 5 : index
      %c0_79 = arith.constant 0 : index
      %142 = vector.load %arg5[%c0_78, %c5, %c0_79] : memref<1x16x32xf32, #tpu.memory_space<vmem>>, vector<1x1x32xf32>
      %143 = vector.shape_cast %142 : vector<1x1x32xf32> to vector<1x32xf32>
      %144 = vector.broadcast %143 : vector<1x32xf32> to vector<32x32xf32>
      %145 = arith.addf %141, %144 : vector<32x32xf32>
      %146 = vector.extract_strided_slice %140 {offsets = [0, 32], sizes = [32, 32], strides = [1, 1]} : vector<32x64xf32> to vector<32x32xf32>
      %c0_80 = arith.constant 0 : index
      %c6 = arith.constant 6 : index
      %c0_81 = arith.constant 0 : index
      %147 = vector.load %arg5[%c0_80, %c6, %c0_81] : memref<1x16x32xf32, #tpu.memory_space<vmem>>, vector<1x1x32xf32>
      %148 = vector.shape_cast %147 : vector<1x1x32xf32> to vector<1x32xf32>
      %149 = vector.broadcast %148 : vector<1x32xf32> to vector<32x32xf32>
      %150 = arith.addf %146, %149 : vector<32x32xf32>
      %151 = tpu.iota {dimensions = array<i32: 0>} : vector<16x32xi32>
      %152 = tpu.iota {dimensions = array<i32: 1>} : vector<16x32xi32>
      %c2_i32_82 = arith.constant 2 : i32
      %c0_i32_83 = arith.constant 0 : i32
      %153 = arith.cmpi eq, %c2_i32_82, %c0_i32_83 : i32
      %c1_i32 = arith.constant 1 : i32
      %154 = arith.select %153, %c1_i32, %c2_i32_82 : i32
      %155 = vector.broadcast %154 : i32 to vector<16x32xi32>
      %156 = arith.remsi %151, %155 : vector<16x32xi32>
      %c0_i32_84 = arith.constant 0 : i32
      %157 = vector.broadcast %c0_i32_84 : i32 to vector<16x32xi32>
      %158 = arith.cmpi ne, %156, %157 : vector<16x32xi32>
      %c0_i32_85 = arith.constant 0 : i32
      %159 = vector.broadcast %c0_i32_85 : i32 to vector<16x32xi32>
      %160 = arith.cmpi slt, %156, %159 : vector<16x32xi32>
      %c0_i32_86 = arith.constant 0 : i32
      %161 = arith.cmpi slt, %154, %c0_i32_86 : i32
      %162 = vector.broadcast %161 : i1 to vector<16x32xi1>
      %163 = vector.broadcast %162 : vector<16x32xi1> to vector<16x32xi1>
      %164 = arith.xori %160, %163 : vector<16x32xi1>
      %165 = arith.andi %164, %158 : vector<16x32xi1>
      %166 = vector.broadcast %154 : i32 to vector<16x32xi32>
      %167 = arith.addi %156, %166 : vector<16x32xi32>
      %168 = arith.select %165, %167, %156 : vector<16x32xi1>, vector<16x32xi32>
      %c2_i32_87 = arith.constant 2 : i32
      %c0_i32_88 = arith.constant 0 : i32
      %169 = arith.cmpi eq, %c2_i32_87, %c0_i32_88 : i32
      %c1_i32_89 = arith.constant 1 : i32
      %170 = arith.select %169, %c1_i32_89, %c2_i32_87 : i32
      %171 = vector.broadcast %170 : i32 to vector<16x32xi32>
      %172 = arith.remsi %152, %171 : vector<16x32xi32>
      %c0_i32_90 = arith.constant 0 : i32
      %173 = vector.broadcast %c0_i32_90 : i32 to vector<16x32xi32>
      %174 = arith.cmpi ne, %172, %173 : vector<16x32xi32>
      %c0_i32_91 = arith.constant 0 : i32
      %175 = vector.broadcast %c0_i32_91 : i32 to vector<16x32xi32>
      %176 = arith.cmpi slt, %172, %175 : vector<16x32xi32>
      %c0_i32_92 = arith.constant 0 : i32
      %177 = arith.cmpi slt, %170, %c0_i32_92 : i32
      %178 = vector.broadcast %177 : i1 to vector<16x32xi1>
      %179 = vector.broadcast %178 : vector<16x32xi1> to vector<16x32xi1>
      %180 = arith.xori %176, %179 : vector<16x32xi1>
      %181 = arith.andi %180, %174 : vector<16x32xi1>
      %182 = vector.broadcast %170 : i32 to vector<16x32xi32>
      %183 = arith.addi %172, %182 : vector<16x32xi32>
      %184 = arith.select %181, %183, %172 : vector<16x32xi1>, vector<16x32xi32>
      %185 = arith.cmpi eq, %168, %184 : vector<16x32xi32>
      %cst_93 = arith.constant 0.176776692 : f32
      %186 = vector.broadcast %cst_93 : f32 to vector<16x32xf32>
      %187 = arith.mulf %37, %186 : vector<16x32xf32>
      %c0_94 = arith.constant 0 : index
      %c7 = arith.constant 7 : index
      %c0_95 = arith.constant 0 : index
      %188 = vector.load %arg5[%c0_94, %c7, %c0_95] : memref<1x16x32xf32, #tpu.memory_space<vmem>>, vector<1x1x32xf32>
      %189 = vector.shape_cast %188 : vector<1x1x32xf32> to vector<1x32xf32>
      %c0_96 = arith.constant 0 : index
      %c8 = arith.constant 8 : index
      %c0_97 = arith.constant 0 : index
      %190 = vector.load %arg5[%c0_96, %c8, %c0_97] : memref<1x16x32xf32, #tpu.memory_space<vmem>>, vector<1x1x32xf32>
      %191 = vector.shape_cast %190 : vector<1x1x32xf32> to vector<1x32xf32>
      %cst_98 = arith.constant dense<0.000000e+00> : vector<16x32xf32>
      %192 = tpu.matmul %187, %145, %cst_98 {dimension_numbers = #tpu.dot_dimension_numbers<[1], [1], [0], [0], [0, 0, 1, 0], [], []>} : vector<16x32xf32>, vector<32x32xf32>, vector<16x32xf32> -> vector<16x32xf32>
      %cst_99 = arith.constant -1.000000e+30 : f32
      %193 = vector.broadcast %cst_99 : f32 to vector<16x32xf32>
      %194 = arith.select %185, %192, %193 : vector<16x32xi1>, vector<16x32xf32>
      %195 = vector.broadcast %189 : vector<1x32xf32> to vector<16x32xf32>
      %196 = arith.mulf %187, %195 : vector<16x32xf32>
      %cst_100 = arith.constant dense<0.000000e+00> : vector<16xf32>
      %197 = vector.multi_reduction <add>, %196, %cst_100 [1] : vector<16x32xf32> to vector<16xf32>
      %198 = vector.shape_cast %197 : vector<16xf32> to vector<16x1xf32>
      %cst_101 = arith.constant dense<0xFF800000> : vector<16xf32>
      %199 = vector.multi_reduction <maximumf>, %194, %cst_101 [1] : vector<16x32xf32> to vector<16xf32>
      %200 = vector.shape_cast %199 : vector<16xf32> to vector<16x1xf32>
      %201 = arith.maximumf %200, %198 : vector<16x1xf32>
      %202 = vector.broadcast %201 : vector<16x1xf32> to vector<16x32xf32>
      %203 = arith.subf %194, %202 : vector<16x32xf32>
      %204 = math.exp %203 : vector<16x32xf32>
      %205 = arith.subf %198, %201 : vector<16x1xf32>
      %206 = math.exp %205 : vector<16x1xf32>
      %cst_102 = arith.constant dense<0.000000e+00> : vector<16xf32>
      %207 = vector.multi_reduction <add>, %204, %cst_102 [1] : vector<16x32xf32> to vector<16xf32>
      %208 = vector.shape_cast %207 : vector<16xf32> to vector<16x1xf32>
      %209 = arith.addf %208, %206 : vector<16x1xf32>
      %cst_103 = arith.constant dense<0.000000e+00> : vector<16x32xf32>
      %210 = tpu.matmul %204, %150, %cst_103 {dimension_numbers = #tpu.dot_dimension_numbers<[1], [0], [0], [1], [0, 0, 1, 1], [], []>} : vector<16x32xf32>, vector<32x32xf32>, vector<16x32xf32> -> vector<16x32xf32>
      %211 = vector.broadcast %206 : vector<16x1xf32> to vector<16x32xf32>
      %212 = vector.broadcast %191 : vector<1x32xf32> to vector<16x32xf32>
      %213 = arith.mulf %211, %212 : vector<16x32xf32>
      %214 = arith.addf %210, %213 : vector<16x32xf32>
      %215 = tpu.reciprocal %209 {approx = true} : vector<16x1xf32> -> vector<16x1xf32>
      %216 = vector.broadcast %215 : vector<16x1xf32> to vector<16x32xf32>
      %217 = arith.mulf %214, %216 : vector<16x32xf32>
      %c0_104 = arith.constant 0 : index
      %c0_105 = arith.constant 0 : index
      %218 = vector.load %arg7[%c0_104, %c0_105] : memref<16x32xf32, #tpu.memory_space<vmem>>, vector<16x32xf32>
      tpu.vector_store %arg7[%c0_104, %c0_105], %217 {strides = array<i32>} : memref<16x32xf32, #tpu.memory_space<vmem>>, vector<16x32xf32>,
    } else {
    }
    %c0_i32_18 = arith.constant 0 : i32
    %41 = arith.cmpi sgt, %arg0, %c0_i32_18 : i32
    %42 = arith.extui %41 : i1 to i32
    %c0_i32_19 = arith.constant 0 : i32
    %43 = arith.cmpi ne, %42, %c0_i32_19 : i32
    scf.if %43 {
      %c0_64 = arith.constant 0 : index
      %c0_65 = arith.constant 0 : index
      %c0_66 = arith.constant 0 : index
      %112 = vector.load %arg5[%c0_64, %c0_65, %c0_66] : memref<1x16x32xf32, #tpu.memory_space<vmem>>, vector<1x1x32xf32>
      %113 = vector.shape_cast %112 : vector<1x1x32xf32> to vector<1x32xf32>
      %c0_67 = arith.constant 0 : index
      %c1_68 = arith.constant 1 : index
      %c0_69 = arith.constant 0 : index
      %114 = vector.load %arg5[%c0_67, %c1_68, %c0_69] : memref<1x16x32xf32, #tpu.memory_space<vmem>>, vector<1x1x32xf32>
      %115 = vector.shape_cast %114 : vector<1x1x32xf32> to vector<1x32xf32>
      %cst_70 = arith.constant dense<0.000000e+00> : vector<16xf32>
      %116 = vector.multi_reduction <add>, %5, %cst_70 [1] : vector<16x32xf32> to vector<16xf32>
      %117 = vector.shape_cast %116 : vector<16xf32> to vector<16x1xf32>
      %cst_71 = arith.constant 3.200000e+01 : f32
      %118 = vector.broadcast %cst_71 : f32 to vector<16x1xf32>
      %119 = arith.divf %117, %118 : vector<16x1xf32>
      %120 = vector.broadcast %119 : vector<16x1xf32> to vector<16x32xf32>
      %121 = arith.subf %5, %120 : vector<16x32xf32>
      %122 = arith.mulf %121, %121 : vector<16x32xf32>
      %cst_72 = arith.constant dense<0.000000e+00> : vector<16xf32>
      %123 = vector.multi_reduction <add>, %122, %cst_72 [1] : vector<16x32xf32> to vector<16xf32>
      %124 = vector.shape_cast %123 : vector<16xf32> to vector<16x1xf32>
      %cst_73 = arith.constant 3.200000e+01 : f32
      %125 = vector.broadcast %cst_73 : f32 to vector<16x1xf32>
      %126 = arith.divf %124, %125 : vector<16x1xf32>
      %127 = vector.broadcast %119 : vector<16x1xf32> to vector<16x32xf32>
      %128 = arith.subf %5, %127 : vector<16x32xf32>
      %cst_74 = arith.constant 9.99999974E-6 : f32
      %129 = vector.broadcast %cst_74 : f32 to vector<16x1xf32>
      %130 = arith.addf %126, %129 : vector<16x1xf32>
      %131 = math.rsqrt %130 : vector<16x1xf32>
      %132 = vector.broadcast %131 : vector<16x1xf32> to vector<16x32xf32>
      %133 = arith.mulf %128, %132 : vector<16x32xf32>
      %134 = vector.broadcast %113 : vector<1x32xf32> to vector<16x32xf32>
      %135 = arith.mulf %133, %134 : vector<16x32xf32>
      %136 = vector.broadcast %115 : vector<1x32xf32> to vector<16x32xf32>
      %137 = arith.addf %135, %136 : vector<16x32xf32>
      %138 = vector.extract_strided_slice %1 {offsets = [0, 32], sizes = [32, 64], strides = [1, 1]} : vector<32x96xf32> to vector<32x64xf32>
      %cst_75 = arith.constant dense<0.000000e+00> : vector<16x64xf32>
      %139 = tpu.matmul %137, %138, %cst_75 {dimension_numbers = #tpu.dot_dimension_numbers<[1], [0], [0], [1], [0, 0, 1, 1], [], []>} : vector<16x32xf32>, vector<32x64xf32>, vector<16x64xf32> -> vector<16x64xf32>
      %140 = vector.extract_strided_slice %139 {offsets = [0, 0], sizes = [16, 32], strides = [1, 1]} : vector<16x64xf32> to vector<16x32xf32>
      %c0_76 = arith.constant 0 : index
      %c5 = arith.constant 5 : index
      %c0_77 = arith.constant 0 : index
      %141 = vector.load %arg5[%c0_76, %c5, %c0_77] : memref<1x16x32xf32, #tpu.memory_space<vmem>>, vector<1x1x32xf32>
      %142 = vector.shape_cast %141 : vector<1x1x32xf32> to vector<1x32xf32>
      %143 = vector.broadcast %142 : vector<1x32xf32> to vector<16x32xf32>
      %144 = arith.addf %140, %143 : vector<16x32xf32>
      %145 = vector.extract_strided_slice %139 {offsets = [0, 32], sizes = [16, 32], strides = [1, 1]} : vector<16x64xf32> to vector<16x32xf32>
      %c0_78 = arith.constant 0 : index
      %c6 = arith.constant 6 : index
      %c0_79 = arith.constant 0 : index
      %146 = vector.load %arg5[%c0_78, %c6, %c0_79] : memref<1x16x32xf32, #tpu.memory_space<vmem>>, vector<1x1x32xf32>
      %147 = vector.shape_cast %146 : vector<1x1x32xf32> to vector<1x32xf32>
      %148 = vector.broadcast %147 : vector<1x32xf32> to vector<16x32xf32>
      %149 = arith.addf %145, %148 : vector<16x32xf32>
      %150 = tpu.iota {dimensions = array<i32: 0>} : vector<16x16xi32>
      %151 = tpu.iota {dimensions = array<i32: 1>} : vector<16x16xi32>
      %c2_i32_80 = arith.constant 2 : i32
      %c0_i32_81 = arith.constant 0 : i32
      %152 = arith.cmpi eq, %c2_i32_80, %c0_i32_81 : i32
      %c1_i32 = arith.constant 1 : i32
      %153 = arith.select %152, %c1_i32, %c2_i32_80 : i32
      %154 = vector.broadcast %153 : i32 to vector<16x16xi32>
      %155 = arith.remsi %150, %154 : vector<16x16xi32>
      %c0_i32_82 = arith.constant 0 : i32
      %156 = vector.broadcast %c0_i32_82 : i32 to vector<16x16xi32>
      %157 = arith.cmpi ne, %155, %156 : vector<16x16xi32>
      %c0_i32_83 = arith.constant 0 : i32
      %158 = vector.broadcast %c0_i32_83 : i32 to vector<16x16xi32>
      %159 = arith.cmpi slt, %155, %158 : vector<16x16xi32>
      %c0_i32_84 = arith.constant 0 : i32
      %160 = arith.cmpi slt, %153, %c0_i32_84 : i32
      %161 = vector.broadcast %160 : i1 to vector<16x16xi1>
      %162 = vector.broadcast %161 : vector<16x16xi1> to vector<16x16xi1>
      %163 = arith.xori %159, %162 : vector<16x16xi1>
      %164 = arith.andi %163, %157 : vector<16x16xi1>
      %165 = vector.broadcast %153 : i32 to vector<16x16xi32>
      %166 = arith.addi %155, %165 : vector<16x16xi32>
      %167 = arith.select %164, %166, %155 : vector<16x16xi1>, vector<16x16xi32>
      %c2_i32_85 = arith.constant 2 : i32
      %c0_i32_86 = arith.constant 0 : i32
      %168 = arith.cmpi eq, %c2_i32_85, %c0_i32_86 : i32
      %c1_i32_87 = arith.constant 1 : i32
      %169 = arith.select %168, %c1_i32_87, %c2_i32_85 : i32
      %170 = vector.broadcast %169 : i32 to vector<16x16xi32>
      %171 = arith.remsi %151, %170 : vector<16x16xi32>
      %c0_i32_88 = arith.constant 0 : i32
      %172 = vector.broadcast %c0_i32_88 : i32 to vector<16x16xi32>
      %173 = arith.cmpi ne, %171, %172 : vector<16x16xi32>
      %c0_i32_89 = arith.constant 0 : i32
      %174 = vector.broadcast %c0_i32_89 : i32 to vector<16x16xi32>
      %175 = arith.cmpi slt, %171, %174 : vector<16x16xi32>
      %c0_i32_90 = arith.constant 0 : i32
      %176 = arith.cmpi slt, %169, %c0_i32_90 : i32
      %177 = vector.broadcast %176 : i1 to vector<16x16xi1>
      %178 = vector.broadcast %177 : vector<16x16xi1> to vector<16x16xi1>
      %179 = arith.xori %175, %178 : vector<16x16xi1>
      %180 = arith.andi %179, %173 : vector<16x16xi1>
      %181 = vector.broadcast %169 : i32 to vector<16x16xi32>
      %182 = arith.addi %171, %181 : vector<16x16xi32>
      %183 = arith.select %180, %182, %171 : vector<16x16xi1>, vector<16x16xi32>
      %184 = arith.cmpi eq, %167, %183 : vector<16x16xi32>
      %185 = vector.extract_strided_slice %37 {offsets = [0, 0], sizes = [16, 8], strides = [1, 1]} : vector<16x32xf32> to vector<16x8xf32>
      %cst_91 = arith.constant 0.353553385 : f32
      %186 = vector.broadcast %cst_91 : f32 to vector<16x8xf32>
      %187 = arith.mulf %185, %186 : vector<16x8xf32>
      %188 = vector.extract_strided_slice %144 {offsets = [0, 0], sizes = [16, 8], strides = [1, 1]} : vector<16x32xf32> to vector<16x8xf32>
      %189 = vector.extract_strided_slice %149 {offsets = [0, 0], sizes = [16, 8], strides = [1, 1]} : vector<16x32xf32> to vector<16x8xf32>
      %c0_92 = arith.constant 0 : index
      %c7 = arith.constant 7 : index
      %c0_93 = arith.constant 0 : index
      %190 = vector.load %arg5[%c0_92, %c7, %c0_93] : memref<1x16x32xf32, #tpu.memory_space<vmem>>, vector<1x1x32xf32>
      %191 = vector.shape_cast %190 : vector<1x1x32xf32> to vector<1x32xf32>
      %192 = vector.extract_strided_slice %191 {offsets = [0, 0], sizes = [1, 8], strides = [1, 1]} : vector<1x32xf32> to vector<1x8xf32>
      %c0_94 = arith.constant 0 : index
      %c8 = arith.constant 8 : index
      %c0_95 = arith.constant 0 : index
      %193 = vector.load %arg5[%c0_94, %c8, %c0_95] : memref<1x16x32xf32, #tpu.memory_space<vmem>>, vector<1x1x32xf32>
      %194 = vector.shape_cast %193 : vector<1x1x32xf32> to vector<1x32xf32>
      %195 = vector.extract_strided_slice %194 {offsets = [0, 0], sizes = [1, 8], strides = [1, 1]} : vector<1x32xf32> to vector<1x8xf32>
      %cst_96 = arith.constant dense<0.000000e+00> : vector<16x16xf32>
      %196 = tpu.matmul %187, %188, %cst_96 {dimension_numbers = #tpu.dot_dimension_numbers<[1], [1], [0], [0], [0, 0, 1, 0], [], []>} : vector<16x8xf32>, vector<16x8xf32>, vector<16x16xf32> -> vector<16x16xf32>
      %cst_97 = arith.constant -1.000000e+30 : f32
      %197 = vector.broadcast %cst_97 : f32 to vector<16x16xf32>
      %198 = arith.select %184, %196, %197 : vector<16x16xi1>, vector<16x16xf32>
      %199 = vector.broadcast %192 : vector<1x8xf32> to vector<16x8xf32>
      %200 = arith.mulf %187, %199 : vector<16x8xf32>
      %cst_98 = arith.constant dense<0.000000e+00> : vector<16xf32>
      %201 = vector.multi_reduction <add>, %200, %cst_98 [1] : vector<16x8xf32> to vector<16xf32>
      %202 = vector.shape_cast %201 : vector<16xf32> to vector<16x1xf32>
      %cst_99 = arith.constant dense<0xFF800000> : vector<16xf32>
      %203 = vector.multi_reduction <maximumf>, %198, %cst_99 [1] : vector<16x16xf32> to vector<16xf32>
      %204 = vector.shape_cast %203 : vector<16xf32> to vector<16x1xf32>
      %205 = arith.maximumf %204, %202 : vector<16x1xf32>
      %206 = vector.broadcast %205 : vector<16x1xf32> to vector<16x16xf32>
      %207 = arith.subf %198, %206 : vector<16x16xf32>
      %208 = math.exp %207 : vector<16x16xf32>
      %209 = arith.subf %202, %205 : vector<16x1xf32>
      %210 = math.exp %209 : vector<16x1xf32>
      %cst_100 = arith.constant dense<0.000000e+00> : vector<16xf32>
      %211 = vector.multi_reduction <add>, %208, %cst_100 [1] : vector<16x16xf32> to vector<16xf32>
      %212 = vector.shape_cast %211 : vector<16xf32> to vector<16x1xf32>
      %213 = arith.addf %212, %210 : vector<16x1xf32>
      %cst_101 = arith.constant dense<0.000000e+00> : vector<16x8xf32>
      %214 = tpu.matmul %208, %189, %cst_101 {dimension_numbers = #tpu.dot_dimension_numbers<[1], [0], [0], [1], [0, 0, 1, 1], [], []>} : vector<16x16xf32>, vector<16x8xf32>, vector<16x8xf32> -> vector<16x8xf32>
      %215 = vector.broadcast %210 : vector<16x1xf32> to vector<16x8xf32>
      %216 = vector.broadcast %195 : vector<1x8xf32> to vector<16x8xf32>
      %217 = arith.mulf %215, %216 : vector<16x8xf32>
      %218 = arith.addf %214, %217 : vector<16x8xf32>
      %219 = tpu.reciprocal %213 {approx = true} : vector<16x1xf32> -> vector<16x1xf32>
      %220 = vector.broadcast %219 : vector<16x1xf32> to vector<16x8xf32>
      %221 = arith.mulf %218, %220 : vector<16x8xf32>
      %c0_102 = arith.constant 0 : index
      %c0_103 = arith.constant 0 : index
      %222 = vector.load %arg7[%c0_102, %c0_103] : memref<16x32xf32, #tpu.memory_space<vmem>>, vector<16x8xf32>
      tpu.vector_store %arg7[%c0_102, %c0_103], %221 {strides = array<i32>} : memref<16x32xf32, #tpu.memory_space<vmem>>, vector<16x8xf32>,
      %223 = vector.extract_strided_slice %37 {offsets = [0, 8], sizes = [16, 8], strides = [1, 1]} : vector<16x32xf32> to vector<16x8xf32>
      %cst_104 = arith.constant 0.353553385 : f32
      %224 = vector.broadcast %cst_104 : f32 to vector<16x8xf32>
      %225 = arith.mulf %223, %224 : vector<16x8xf32>
      %226 = vector.extract_strided_slice %144 {offsets = [0, 8], sizes = [16, 8], strides = [1, 1]} : vector<16x32xf32> to vector<16x8xf32>
      %227 = vector.extract_strided_slice %149 {offsets = [0, 8], sizes = [16, 8], strides = [1, 1]} : vector<16x32xf32> to vector<16x8xf32>
      %c0_105 = arith.constant 0 : index
      %c7_106 = arith.constant 7 : index
      %c0_107 = arith.constant 0 : index
      %228 = vector.load %arg5[%c0_105, %c7_106, %c0_107] : memref<1x16x32xf32, #tpu.memory_space<vmem>>, vector<1x1x32xf32>
      %229 = vector.shape_cast %228 : vector<1x1x32xf32> to vector<1x32xf32>
      %230 = vector.extract_strided_slice %229 {offsets = [0, 8], sizes = [1, 8], strides = [1, 1]} : vector<1x32xf32> to vector<1x8xf32>
      %c0_108 = arith.constant 0 : index
      %c8_109 = arith.constant 8 : index
      %c0_110 = arith.constant 0 : index
      %231 = vector.load %arg5[%c0_108, %c8_109, %c0_110] : memref<1x16x32xf32, #tpu.memory_space<vmem>>, vector<1x1x32xf32>
      %232 = vector.shape_cast %231 : vector<1x1x32xf32> to vector<1x32xf32>
      %233 = vector.extract_strided_slice %232 {offsets = [0, 8], sizes = [1, 8], strides = [1, 1]} : vector<1x32xf32> to vector<1x8xf32>
      %cst_111 = arith.constant dense<0.000000e+00> : vector<16x16xf32>
      %234 = tpu.matmul %225, %226, %cst_111 {dimension_numbers = #tpu.dot_dimension_numbers<[1], [1], [0], [0], [0, 0, 1, 0], [], []>} : vector<16x8xf32>, vector<16x8xf32>, vector<16x16xf32> -> vector<16x16xf32>
      %cst_112 = arith.constant -1.000000e+30 : f32
      %235 = vector.broadcast %cst_112 : f32 to vector<16x16xf32>
      %236 = arith.select %184, %234, %235 : vector<16x16xi1>, vector<16x16xf32>
      %237 = vector.broadcast %230 : vector<1x8xf32> to vector<16x8xf32>
      %238 = arith.mulf %225, %237 : vector<16x8xf32>
      %cst_113 = arith.constant dense<0.000000e+00> : vector<16xf32>
      %239 = vector.multi_reduction <add>, %238, %cst_113 [1] : vector<16x8xf32> to vector<16xf32>
      %240 = vector.shape_cast %239 : vector<16xf32> to vector<16x1xf32>
      %cst_114 = arith.constant dense<0xFF800000> : vector<16xf32>
      %241 = vector.multi_reduction <maximumf>, %236, %cst_114 [1] : vector<16x16xf32> to vector<16xf32>
      %242 = vector.shape_cast %241 : vector<16xf32> to vector<16x1xf32>
      %243 = arith.maximumf %242, %240 : vector<16x1xf32>
      %244 = vector.broadcast %243 : vector<16x1xf32> to vector<16x16xf32>
      %245 = arith.subf %236, %244 : vector<16x16xf32>
      %246 = math.exp %245 : vector<16x16xf32>
      %247 = arith.subf %240, %243 : vector<16x1xf32>
      %248 = math.exp %247 : vector<16x1xf32>
      %cst_115 = arith.constant dense<0.000000e+00> : vector<16xf32>
      %249 = vector.multi_reduction <add>, %246, %cst_115 [1] : vector<16x16xf32> to vector<16xf32>
      %250 = vector.shape_cast %249 : vector<16xf32> to vector<16x1xf32>
      %251 = arith.addf %250, %248 : vector<16x1xf32>
      %cst_116 = arith.constant dense<0.000000e+00> : vector<16x8xf32>
      %252 = tpu.matmul %246, %227, %cst_116 {dimension_numbers = #tpu.dot_dimension_numbers<[1], [0], [0], [1], [0, 0, 1, 1], [], []>} : vector<16x16xf32>, vector<16x8xf32>, vector<16x8xf32> -> vector<16x8xf32>
      %253 = vector.broadcast %248 : vector<16x1xf32> to vector<16x8xf32>
      %254 = vector.broadcast %233 : vector<1x8xf32> to vector<16x8xf32>
      %255 = arith.mulf %253, %254 : vector<16x8xf32>
      %256 = arith.addf %252, %255 : vector<16x8xf32>
      %257 = tpu.reciprocal %251 {approx = true} : vector<16x1xf32> -> vector<16x1xf32>
      %258 = vector.broadcast %257 : vector<16x1xf32> to vector<16x8xf32>
      %259 = arith.mulf %256, %258 : vector<16x8xf32>
      %c0_117 = arith.constant 0 : index
      %c8_118 = arith.constant 8 : index
      %260 = vector.load %arg7[%c0_117, %c8_118] : memref<16x32xf32, #tpu.memory_space<vmem>>, vector<16x8xf32>
      tpu.vector_store %arg7[%c0_117, %c8_118], %259 {strides = array<i32>} : memref<16x32xf32, #tpu.memory_space<vmem>>, vector<16x8xf32>,
      %261 = vector.extract_strided_slice %37 {offsets = [0, 16], sizes = [16, 8], strides = [1, 1]} : vector<16x32xf32> to vector<16x8xf32>
      %cst_119 = arith.constant 0.353553385 : f32
      %262 = vector.broadcast %cst_119 : f32 to vector<16x8xf32>
      %263 = arith.mulf %261, %262 : vector<16x8xf32>
      %264 = vector.extract_strided_slice %144 {offsets = [0, 16], sizes = [16, 8], strides = [1, 1]} : vector<16x32xf32> to vector<16x8xf32>
      %265 = vector.extract_strided_slice %149 {offsets = [0, 16], sizes = [16, 8], strides = [1, 1]} : vector<16x32xf32> to vector<16x8xf32>
      %c0_120 = arith.constant 0 : index
      %c7_121 = arith.constant 7 : index
      %c0_122 = arith.constant 0 : index
      %266 = vector.load %arg5[%c0_120, %c7_121, %c0_122] : memref<1x16x32xf32, #tpu.memory_space<vmem>>, vector<1x1x32xf32>
      %267 = vector.shape_cast %266 : vector<1x1x32xf32> to vector<1x32xf32>
      %268 = vector.extract_strided_slice %267 {offsets = [0, 16], sizes = [1, 8], strides = [1, 1]} : vector<1x32xf32> to vector<1x8xf32>
      %c0_123 = arith.constant 0 : index
      %c8_124 = arith.constant 8 : index
      %c0_125 = arith.constant 0 : index
      %269 = vector.load %arg5[%c0_123, %c8_124, %c0_125] : memref<1x16x32xf32, #tpu.memory_space<vmem>>, vector<1x1x32xf32>
      %270 = vector.shape_cast %269 : vector<1x1x32xf32> to vector<1x32xf32>
      %271 = vector.extract_strided_slice %270 {offsets = [0, 16], sizes = [1, 8], strides = [1, 1]} : vector<1x32xf32> to vector<1x8xf32>
      %cst_126 = arith.constant dense<0.000000e+00> : vector<16x16xf32>
      %272 = tpu.matmul %263, %264, %cst_126 {dimension_numbers = #tpu.dot_dimension_numbers<[1], [1], [0], [0], [0, 0, 1, 0], [], []>} : vector<16x8xf32>, vector<16x8xf32>, vector<16x16xf32> -> vector<16x16xf32>
      %cst_127 = arith.constant -1.000000e+30 : f32
      %273 = vector.broadcast %cst_127 : f32 to vector<16x16xf32>
      %274 = arith.select %184, %272, %273 : vector<16x16xi1>, vector<16x16xf32>
      %275 = vector.broadcast %268 : vector<1x8xf32> to vector<16x8xf32>
      %276 = arith.mulf %263, %275 : vector<16x8xf32>
      %cst_128 = arith.constant dense<0.000000e+00> : vector<16xf32>
      %277 = vector.multi_reduction <add>, %276, %cst_128 [1] : vector<16x8xf32> to vector<16xf32>
      %278 = vector.shape_cast %277 : vector<16xf32> to vector<16x1xf32>
      %cst_129 = arith.constant dense<0xFF800000> : vector<16xf32>
      %279 = vector.multi_reduction <maximumf>, %274, %cst_129 [1] : vector<16x16xf32> to vector<16xf32>
      %280 = vector.shape_cast %279 : vector<16xf32> to vector<16x1xf32>
      %281 = arith.maximumf %280, %278 : vector<16x1xf32>
      %282 = vector.broadcast %281 : vector<16x1xf32> to vector<16x16xf32>
      %283 = arith.subf %274, %282 : vector<16x16xf32>
      %284 = math.exp %283 : vector<16x16xf32>
      %285 = arith.subf %278, %281 : vector<16x1xf32>
      %286 = math.exp %285 : vector<16x1xf32>
      %cst_130 = arith.constant dense<0.000000e+00> : vector<16xf32>
      %287 = vector.multi_reduction <add>, %284, %cst_130 [1] : vector<16x16xf32> to vector<16xf32>
      %288 = vector.shape_cast %287 : vector<16xf32> to vector<16x1xf32>
      %289 = arith.addf %288, %286 : vector<16x1xf32>
      %cst_131 = arith.constant dense<0.000000e+00> : vector<16x8xf32>
      %290 = tpu.matmul %284, %265, %cst_131 {dimension_numbers = #tpu.dot_dimension_numbers<[1], [0], [0], [1], [0, 0, 1, 1], [], []>} : vector<16x16xf32>, vector<16x8xf32>, vector<16x8xf32> -> vector<16x8xf32>
      %291 = vector.broadcast %286 : vector<16x1xf32> to vector<16x8xf32>
      %292 = vector.broadcast %271 : vector<1x8xf32> to vector<16x8xf32>
      %293 = arith.mulf %291, %292 : vector<16x8xf32>
      %294 = arith.addf %290, %293 : vector<16x8xf32>
      %295 = tpu.reciprocal %289 {approx = true} : vector<16x1xf32> -> vector<16x1xf32>
      %296 = vector.broadcast %295 : vector<16x1xf32> to vector<16x8xf32>
      %297 = arith.mulf %294, %296 : vector<16x8xf32>
      %c0_132 = arith.constant 0 : index
      %c16 = arith.constant 16 : index
      %298 = vector.load %arg7[%c0_132, %c16] : memref<16x32xf32, #tpu.memory_space<vmem>>, vector<16x8xf32>
      tpu.vector_store %arg7[%c0_132, %c16], %297 {strides = array<i32>} : memref<16x32xf32, #tpu.memory_space<vmem>>, vector<16x8xf32>,
      %299 = vector.extract_strided_slice %37 {offsets = [0, 24], sizes = [16, 8], strides = [1, 1]} : vector<16x32xf32> to vector<16x8xf32>
      %cst_133 = arith.constant 0.353553385 : f32
      %300 = vector.broadcast %cst_133 : f32 to vector<16x8xf32>
      %301 = arith.mulf %299, %300 : vector<16x8xf32>
      %302 = vector.extract_strided_slice %144 {offsets = [0, 24], sizes = [16, 8], strides = [1, 1]} : vector<16x32xf32> to vector<16x8xf32>
      %303 = vector.extract_strided_slice %149 {offsets = [0, 24], sizes = [16, 8], strides = [1, 1]} : vector<16x32xf32> to vector<16x8xf32>
      %c0_134 = arith.constant 0 : index
      %c7_135 = arith.constant 7 : index
      %c0_136 = arith.constant 0 : index
      %304 = vector.load %arg5[%c0_134, %c7_135, %c0_136] : memref<1x16x32xf32, #tpu.memory_space<vmem>>, vector<1x1x32xf32>
      %305 = vector.shape_cast %304 : vector<1x1x32xf32> to vector<1x32xf32>
      %306 = vector.extract_strided_slice %305 {offsets = [0, 24], sizes = [1, 8], strides = [1, 1]} : vector<1x32xf32> to vector<1x8xf32>
      %c0_137 = arith.constant 0 : index
      %c8_138 = arith.constant 8 : index
      %c0_139 = arith.constant 0 : index
      %307 = vector.load %arg5[%c0_137, %c8_138, %c0_139] : memref<1x16x32xf32, #tpu.memory_space<vmem>>, vector<1x1x32xf32>
      %308 = vector.shape_cast %307 : vector<1x1x32xf32> to vector<1x32xf32>
      %309 = vector.extract_strided_slice %308 {offsets = [0, 24], sizes = [1, 8], strides = [1, 1]} : vector<1x32xf32> to vector<1x8xf32>
      %cst_140 = arith.constant dense<0.000000e+00> : vector<16x16xf32>
      %310 = tpu.matmul %301, %302, %cst_140 {dimension_numbers = #tpu.dot_dimension_numbers<[1], [1], [0], [0], [0, 0, 1, 0], [], []>} : vector<16x8xf32>, vector<16x8xf32>, vector<16x16xf32> -> vector<16x16xf32>
      %cst_141 = arith.constant -1.000000e+30 : f32
      %311 = vector.broadcast %cst_141 : f32 to vector<16x16xf32>
      %312 = arith.select %184, %310, %311 : vector<16x16xi1>, vector<16x16xf32>
      %313 = vector.broadcast %306 : vector<1x8xf32> to vector<16x8xf32>
      %314 = arith.mulf %301, %313 : vector<16x8xf32>
      %cst_142 = arith.constant dense<0.000000e+00> : vector<16xf32>
      %315 = vector.multi_reduction <add>, %314, %cst_142 [1] : vector<16x8xf32> to vector<16xf32>
      %316 = vector.shape_cast %315 : vector<16xf32> to vector<16x1xf32>
      %cst_143 = arith.constant dense<0xFF800000> : vector<16xf32>
      %317 = vector.multi_reduction <maximumf>, %312, %cst_143 [1] : vector<16x16xf32> to vector<16xf32>
      %318 = vector.shape_cast %317 : vector<16xf32> to vector<16x1xf32>
      %319 = arith.maximumf %318, %316 : vector<16x1xf32>
      %320 = vector.broadcast %319 : vector<16x1xf32> to vector<16x16xf32>
      %321 = arith.subf %312, %320 : vector<16x16xf32>
      %322 = math.exp %321 : vector<16x16xf32>
      %323 = arith.subf %316, %319 : vector<16x1xf32>
      %324 = math.exp %323 : vector<16x1xf32>
      %cst_144 = arith.constant dense<0.000000e+00> : vector<16xf32>
      %325 = vector.multi_reduction <add>, %322, %cst_144 [1] : vector<16x16xf32> to vector<16xf32>
      %326 = vector.shape_cast %325 : vector<16xf32> to vector<16x1xf32>
      %327 = arith.addf %326, %324 : vector<16x1xf32>
      %cst_145 = arith.constant dense<0.000000e+00> : vector<16x8xf32>
      %328 = tpu.matmul %322, %303, %cst_145 {dimension_numbers = #tpu.dot_dimension_numbers<[1], [0], [0], [1], [0, 0, 1, 1], [], []>} : vector<16x16xf32>, vector<16x8xf32>, vector<16x8xf32> -> vector<16x8xf32>
      %329 = vector.broadcast %324 : vector<16x1xf32> to vector<16x8xf32>
      %330 = vector.broadcast %309 : vector<1x8xf32> to vector<16x8xf32>
      %331 = arith.mulf %329, %330 : vector<16x8xf32>
      %332 = arith.addf %328, %331 : vector<16x8xf32>
      %333 = tpu.reciprocal %327 {approx = true} : vector<16x1xf32> -> vector<16x1xf32>
      %334 = vector.broadcast %333 : vector<16x1xf32> to vector<16x8xf32>
      %335 = arith.mulf %332, %334 : vector<16x8xf32>
      %c0_146 = arith.constant 0 : index
      %c24 = arith.constant 24 : index
      %336 = vector.load %arg7[%c0_146, %c24] : memref<16x32xf32, #tpu.memory_space<vmem>>, vector<16x8xf32>
      tpu.vector_store %arg7[%c0_146, %c24], %335 {strides = array<i32>} : memref<16x32xf32, #tpu.memory_space<vmem>>, vector<16x8xf32>,
    } else {
    }
    %c0_20 = arith.constant 0 : index
    %c0_21 = arith.constant 0 : index
    %44 = vector.load %arg7[%c0_20, %c0_21] : memref<16x32xf32, #tpu.memory_space<vmem>>, vector<16x32xf32>
    %c0_22 = arith.constant 0 : index
    %c0_23 = arith.constant 0 : index
    %c0_24 = arith.constant 0 : index
    %c0_25 = arith.constant 0 : index
    %45 = vector.load %arg4[%c0_22, %c0_23, %c0_24, %c0_25] : memref<1x4x32x32xf32, #tpu.memory_space<vmem>>, vector<1x1x32x32xf32>
    %46 = vector.shape_cast %45 : vector<1x1x32x32xf32> to vector<32x32xf32>
    %cst_26 = arith.constant dense<0.000000e+00> : vector<16x32xf32>
    %47 = tpu.matmul %44, %46, %cst_26 {dimension_numbers = #tpu.dot_dimension_numbers<[1], [0], [0], [1], [0, 0, 1, 1], [], []>} : vector<16x32xf32>, vector<32x32xf32>, vector<16x32xf32> -> vector<16x32xf32>
    %c0_27 = arith.constant 0 : index
    %c9 = arith.constant 9 : index
    %c0_28 = arith.constant 0 : index
    %48 = vector.load %arg5[%c0_27, %c9, %c0_28] : memref<1x16x32xf32, #tpu.memory_space<vmem>>, vector<1x1x32xf32>
    %49 = vector.shape_cast %48 : vector<1x1x32xf32> to vector<1x32xf32>
    %50 = vector.broadcast %49 : vector<1x32xf32> to vector<16x32xf32>
    %51 = arith.addf %47, %50 : vector<16x32xf32>
    %c0_29 = arith.constant 0 : index
    %c1 = arith.constant 1 : index
    %c0_30 = arith.constant 0 : index
    %c0_31 = arith.constant 0 : index
    %52 = vector.load %arg4[%c0_29, %c1, %c0_30, %c0_31] : memref<1x4x32x32xf32, #tpu.memory_space<vmem>>, vector<1x1x32x32xf32>
    %53 = vector.shape_cast %52 : vector<1x1x32x32xf32> to vector<32x32xf32>
    %cst_32 = arith.constant dense<0.000000e+00> : vector<16x32xf32>
    %54 = tpu.matmul %51, %53, %cst_32 {dimension_numbers = #tpu.dot_dimension_numbers<[1], [0], [0], [1], [0, 0, 1, 1], [], []>} : vector<16x32xf32>, vector<32x32xf32>, vector<16x32xf32> -> vector<16x32xf32>
    %c0_33 = arith.constant 0 : index
    %c10 = arith.constant 10 : index
    %c0_34 = arith.constant 0 : index
    %55 = vector.load %arg5[%c0_33, %c10, %c0_34] : memref<1x16x32xf32, #tpu.memory_space<vmem>>, vector<1x1x32xf32>
    %56 = vector.shape_cast %55 : vector<1x1x32xf32> to vector<1x32xf32>
    %57 = vector.broadcast %56 : vector<1x32xf32> to vector<16x32xf32>
    %58 = arith.addf %54, %57 : vector<16x32xf32>
    %c0_35 = arith.constant 0 : index
    %c11 = arith.constant 11 : index
    %c0_36 = arith.constant 0 : index
    %59 = vector.load %arg5[%c0_35, %c11, %c0_36] : memref<1x16x32xf32, #tpu.memory_space<vmem>>, vector<1x1x32xf32>
    %60 = vector.shape_cast %59 : vector<1x1x32xf32> to vector<1x32xf32>
    %c0_37 = arith.constant 0 : index
    %c12 = arith.constant 12 : index
    %c0_38 = arith.constant 0 : index
    %61 = vector.load %arg5[%c0_37, %c12, %c0_38] : memref<1x16x32xf32, #tpu.memory_space<vmem>>, vector<1x1x32xf32>
    %62 = vector.shape_cast %61 : vector<1x1x32xf32> to vector<1x32xf32>
    %cst_39 = arith.constant dense<0.000000e+00> : vector<16xf32>
    %63 = vector.multi_reduction <add>, %58, %cst_39 [1] : vector<16x32xf32> to vector<16xf32>
    %64 = vector.shape_cast %63 : vector<16xf32> to vector<16x1xf32>
    %cst_40 = arith.constant 3.200000e+01 : f32
    %65 = vector.broadcast %cst_40 : f32 to vector<16x1xf32>
    %66 = arith.divf %64, %65 : vector<16x1xf32>
    %67 = vector.broadcast %66 : vector<16x1xf32> to vector<16x32xf32>
    %68 = arith.subf %58, %67 : vector<16x32xf32>
    %69 = arith.mulf %68, %68 : vector<16x32xf32>
    %cst_41 = arith.constant dense<0.000000e+00> : vector<16xf32>
    %70 = vector.multi_reduction <add>, %69, %cst_41 [1] : vector<16x32xf32> to vector<16xf32>
    %71 = vector.shape_cast %70 : vector<16xf32> to vector<16x1xf32>
    %cst_42 = arith.constant 3.200000e+01 : f32
    %72 = vector.broadcast %cst_42 : f32 to vector<16x1xf32>
    %73 = arith.divf %71, %72 : vector<16x1xf32>
    %74 = vector.broadcast %66 : vector<16x1xf32> to vector<16x32xf32>
    %75 = arith.subf %58, %74 : vector<16x32xf32>
    %cst_43 = arith.constant 9.99999974E-6 : f32
    %76 = vector.broadcast %cst_43 : f32 to vector<16x1xf32>
    %77 = arith.addf %73, %76 : vector<16x1xf32>
    %78 = math.rsqrt %77 : vector<16x1xf32>
    %79 = vector.broadcast %78 : vector<16x1xf32> to vector<16x32xf32>
    %80 = arith.mulf %75, %79 : vector<16x32xf32>
    %81 = vector.broadcast %60 : vector<1x32xf32> to vector<16x32xf32>
    %82 = arith.mulf %80, %81 : vector<16x32xf32>
    %83 = vector.broadcast %62 : vector<1x32xf32> to vector<16x32xf32>
    %84 = arith.addf %82, %83 : vector<16x32xf32>
    %c0_44 = arith.constant 0 : index
    %c2_45 = arith.constant 2 : index
    %c0_46 = arith.constant 0 : index
    %c0_47 = arith.constant 0 : index
    %85 = vector.load %arg4[%c0_44, %c2_45, %c0_46, %c0_47] : memref<1x4x32x32xf32, #tpu.memory_space<vmem>>, vector<1x1x32x32xf32>
    %86 = vector.shape_cast %85 : vector<1x1x32x32xf32> to vector<32x32xf32>
    %cst_48 = arith.constant dense<0.000000e+00> : vector<16x32xf32>
    %87 = tpu.matmul %84, %86, %cst_48 {dimension_numbers = #tpu.dot_dimension_numbers<[1], [0], [0], [1], [0, 0, 1, 1], [], []>} : vector<16x32xf32>, vector<32x32xf32>, vector<16x32xf32> -> vector<16x32xf32>
    %c0_49 = arith.constant 0 : index
    %c13 = arith.constant 13 : index
    %c0_50 = arith.constant 0 : index
    %88 = vector.load %arg5[%c0_49, %c13, %c0_50] : memref<1x16x32xf32, #tpu.memory_space<vmem>>, vector<1x1x32xf32>
    %89 = vector.shape_cast %88 : vector<1x1x32xf32> to vector<1x32xf32>
    %90 = vector.broadcast %89 : vector<1x32xf32> to vector<16x32xf32>
    %91 = arith.addf %87, %90 : vector<16x32xf32>
    %cst_51 = arith.constant 5.000000e-01 : f32
    %92 = vector.broadcast %cst_51 : f32 to vector<16x32xf32>
    %93 = arith.mulf %92, %91 : vector<16x32xf32>
    %cst_52 = arith.constant 0.707106769 : f32
    %94 = vector.broadcast %cst_52 : f32 to vector<16x32xf32>
    %95 = arith.mulf %91, %94 : vector<16x32xf32>
    %96 = math.erf %95 : vector<16x32xf32>
    %cst_53 = arith.constant 1.000000e+00 : f32
    %97 = vector.broadcast %cst_53 : f32 to vector<16x32xf32>
    %98 = arith.addf %97, %96 : vector<16x32xf32>
    %99 = arith.mulf %93, %98 : vector<16x32xf32>
    %c0_54 = arith.constant 0 : index
    %c3_55 = arith.constant 3 : index
    %c0_56 = arith.constant 0 : index
    %c0_57 = arith.constant 0 : index
    %100 = vector.load %arg4[%c0_54, %c3_55, %c0_56, %c0_57] : memref<1x4x32x32xf32, #tpu.memory_space<vmem>>, vector<1x1x32x32xf32>
    %101 = vector.shape_cast %100 : vector<1x1x32x32xf32> to vector<32x32xf32>
    %cst_58 = arith.constant dense<0.000000e+00> : vector<16x32xf32>
    %102 = tpu.matmul %99, %101, %cst_58 {dimension_numbers = #tpu.dot_dimension_numbers<[1], [0], [0], [1], [0, 0, 1, 1], [], []>} : vector<16x32xf32>, vector<32x32xf32>, vector<16x32xf32> -> vector<16x32xf32>
    %c0_59 = arith.constant 0 : index
    %c14 = arith.constant 14 : index
    %c0_60 = arith.constant 0 : index
    %103 = vector.load %arg5[%c0_59, %c14, %c0_60] : memref<1x16x32xf32, #tpu.memory_space<vmem>>, vector<1x1x32xf32>
    %104 = vector.shape_cast %103 : vector<1x1x32xf32> to vector<1x32xf32>
    %105 = vector.broadcast %104 : vector<1x32xf32> to vector<16x32xf32>
    %106 = arith.addf %102, %105 : vector<16x32xf32>
    %107 = arith.addf %106, %5 : vector<16x32xf32>
    %c0_61 = arith.constant 0 : index
    %c0_62 = arith.constant 0 : index
    %108 = vector.load %arg8[%c0_61, %c0_62] : memref<16x32xf32, #tpu.memory_space<vmem>>, vector<16x32xf32>
    tpu.vector_store %arg8[%c0_61, %c0_62], %107 {strides = array<i32>} : memref<16x32xf32, #tpu.memory_space<vmem>>, vector<16x32xf32>,
    %c2_i32 = arith.constant 2 : i32
    %109 = arith.cmpi eq, %arg0, %c2_i32 : i32
    %110 = arith.extui %109 : i1 to i32
    %c0_i32_63 = arith.constant 0 : i32
    %111 = arith.cmpi ne, %110, %c0_i32_63 : i32
    scf.if %111 {
      %c0_64 = arith.constant 0 : index
      %c0_65 = arith.constant 0 : index
      %112 = vector.load %arg6[%c0_64, %c0_65] : memref<16x32xf32, #tpu.memory_space<vmem>>, vector<16x32xf32>
      tpu.vector_store %arg6[%c0_64, %c0_65], %107 {strides = array<i32>} : memref<16x32xf32, #tpu.memory_space<vmem>>, vector<16x32xf32>,
    } else {
    }
    return
  }
  func.func @transform_0(%arg0: i32) -> (i32, i32) {
    %c0_i32 = arith.constant 0 : i32
    %c0_i32_0 = arith.constant 0 : i32
    %c0_i32_1 = arith.constant 0 : i32
    return %c0_i32, %c0_i32_0 : i32, i32
  }
  func.func @transform_1(%arg0: i32) -> (i32, i32) {
    %c0_i32 = arith.constant 0 : i32
    %c0_i32_0 = arith.constant 0 : i32
    %c0_i32_1 = arith.constant 0 : i32
    return %c0_i32, %c0_i32_0 : i32, i32
  }
  func.func @transform_2(%arg0: i32) -> (i32, i32, i32) {
    %c0_i32 = arith.constant 0 : i32
    %c0_i32_0 = arith.constant 0 : i32
    %c0_i32_1 = arith.constant 0 : i32
    return %arg0, %c0_i32, %c0_i32_0 : i32, i32, i32
  }
  func.func @transform_3(%arg0: i32) -> (i32, i32, i32, i32) {
    %c0_i32 = arith.constant 0 : i32
    %c0_i32_0 = arith.constant 0 : i32
    %c0_i32_1 = arith.constant 0 : i32
    %c0_i32_2 = arith.constant 0 : i32
    return %arg0, %c0_i32, %c0_i32_0, %c0_i32_1 : i32, i32, i32, i32
  }
  func.func @transform_4(%arg0: i32) -> (i32, i32, i32) {
    %c0_i32 = arith.constant 0 : i32
    %c0_i32_0 = arith.constant 0 : i32
    %c0_i32_1 = arith.constant 0 : i32
    return %arg0, %c0_i32, %c0_i32_0 : i32, i32, i32
  }
  func.func @transform_5(%arg0: i32) -> (i32, i32) {
    %c0_i32 = arith.constant 0 : i32
    %c0_i32_0 = arith.constant 0 : i32
    %c0_i32_1 = arith.constant 0 : i32
    return %c0_i32, %c0_i32_0 : i32, i32
  }
}

</mosaic_0001>

<llo_original>
// kernel: perceiver_block.1
$region0: #{perceiver_block.1}
  #allocation0 [shape = 'u32[]', space=smem, size = 0x4, offset = 0x4, fixed_abs, tag = 'smem constant byte address 0x4 - core index']
  #allocation1 [shape = 'u32[144,128]{1,0:T(1,128)}', space=vmem, size = 0x12000, scoped, tag = 'internal scratch']
  #allocation2 [shape = 'f32[16,32]{1,0:T(8,128)}', space=vmem, size = 0x2000, scoped, tag = 'scratch operand']
  #allocation3 [shape = 'f32[16,32]{1,0:T(8,128)}', space=vmem, size = 0x2000, scoped, tag = 'scratch operand']
  %s0 = inlined_call_operand.hbm [shape: f32[32,32], index: 0, kind: input, shape index: {}]
  %s1 = inlined_call_operand.hbm [shape: f32[16,32], index: 1, kind: input, shape index: {}]
  %s2 = inlined_call_operand.hbm [shape: f32[3,32,96], index: 2, kind: input, shape index: {}]
  %s3 = inlined_call_operand.hbm [shape: f32[3,4,32,32], index: 3, kind: input, shape index: {}]
  %s4 = inlined_call_operand.hbm [shape: f32[3,16,32], index: 4, kind: input, shape index: {}]
  %s5 = inlined_call_operand.hbm [shape: f32[16,32], index: 5, kind: output, shape index: {}]
  %s6 = sld [smem:[#allocation0]]
  $region89: #{perceiver_block.1} parent=0
    _
  %s8 = ssub.s32 1, %s6
  %s9 = scalar_select 0, %s8, %s6
  $region1: #{perceiver_block.1} parent=0
    #allocation4 [shape = 'u8[16384]{0}', space=vmem, size = 0x4000, scoped, tag = 'input window, operand 0, single buffered']
    #allocation5 [shape = 's32[2]{0}', space=sflag, size = 0x8, scoped, tag = 'scoped memory for perceiver_block.1']
    #allocation6 [shape = 's32[2]{0}', space=sflag, size = 0x8, scoped, tag = 'scoped memory for perceiver_block.1']
    #allocation7 [shape = 'u8[8192]{0}', space=vmem, size = 0x2000, scoped, tag = 'input window, operand 1, single buffered']
    #allocation8 [shape = 's32[1]{0}', space=sflag, size = 0x4, scoped, tag = 'scoped memory for perceiver_block.1']
    #allocation9 [shape = 'u8[32768]{0}', space=vmem, size = 0x8000, scoped, tag = 'input window, operand 2']
    #allocation10 [shape = 'u8[131072]{0}', space=vmem, size = 0x20000, scoped, tag = 'input window, operand 3']
    #allocation11 [shape = 'u8[16384]{0}', space=vmem, size = 0x4000, scoped, tag = 'input window, operand 4']
    #allocation12 [shape = 'u8[8192]{0}', space=vmem, size = 0x2000, scoped, tag = 'output window, operand 0, single buffered']
    %10 = vsyncpa [#allocation5], 0
    %11 = vsyncpa [#allocation8], 0
    %12 = vsyncpa [#allocation6], 0
    loop: start=0, step=1, limit=5
    $region2: #{perceiver_block.1} parent=1 // loop_pre_header
      _
    $region3: #{perceiver_block.1} parent=1 // loop_header
      %s14 = sphi 0, %s18
      %p15 = scmp.ge.s32.totalorder %s14, 5
      %s22 = sphi 0, %s22
      %s24 = sphi 0, %s22
      %s25 = sphi 0, %s24
      %s39 = sphi 0, %s25
      %s43 = sphi 0, %s43
      %s45 = sphi 0, %s43
      %s46 = sphi 0, %s45
      %s60 = sphi 0, %s46
      %s66 = sphi 0, %s68
      %s69 = sphi 0, %s66
      %s70 = sphi 0, %s69
      %s86 = sphi 0, %s70
      %s92 = sphi 0, %s94
      %s95 = sphi 0, %s92
      %s96 = sphi 0, %s95
      %s112 = sphi 0, %s96
      %s118 = sphi 0, %s120
      %s121 = sphi 0, %s118
      %s122 = sphi 0, %s121
      %s138 = sphi 0, %s122
      %s142 = sphi 0, %s142
      %s144 = sphi 0, %s142
      %s145 = sphi 0, %s144
      %s159 = sphi 0, %s145
    $region4: #{perceiver_block.1} parent=1 // loop_header_branch
      %17 = sbr.rel (%p15) target = $region8
    $region5: #{perceiver_block.1} parent=1 // loop_body
      %s19 = ssub.s32 %s14, 1
      %s20 = ssub.s32 %s14, 2
      %s21 = sadd.s32 %s14, 1
      %s23 = sadd.s32 %s22, 1
      %p26 = scmp.eq.s32.totalorder %s14, 2
      %p27 = scmp.ne.s32.totalorder %s22, %s24
      %p28 = scmp.eq.s32.totalorder %s14, 0
      %p29 = por %p27, %p28
      %p30 = scmp.ne.s32.totalorder %s22, %s24
      %p31 = scmp.eq.s32.totalorder %s19, 2
      %p32 = por %p30, %p31
      %p33 = scmp.ne.s32.totalorder %s24, %s25
      %p34 = scmp.eq.s32.totalorder %s19, 0
      %p35 = por %p33, %p34
      %p36 = scmp.ne.s32.totalorder %s24, %s25
      %p37 = scmp.eq.s32.totalorder %s20, 2
      %p38 = por %p36, %p37
      %p40 = scmp.ne.s32.totalorder %s25, %s39
      %p41 = scmp.eq.s32.totalorder %s20, 0
      %p42 = por %p40, %p41
      %s44 = sadd.s32 %s43, 1
      %p47 = scmp.eq.s32.totalorder %s14, 2
      %p48 = scmp.ne.s32.totalorder %s43, %s45
      %p49 = scmp.eq.s32.totalorder %s14, 0
      %p50 = por %p48, %p49
      %p51 = scmp.ne.s32.totalorder %s43, %s45
      %p52 = scmp.eq.s32.totalorder %s19, 2
      %p53 = por %p51, %p52
      %p54 = scmp.ne.s32.totalorder %s45, %s46
      %p55 = scmp.eq.s32.totalorder %s19, 0
      %p56 = por %p54, %p55
      %p57 = scmp.ne.s32.totalorder %s45, %s46
      %p58 = scmp.eq.s32.totalorder %s20, 2
      %p59 = por %p57, %p58
      %p61 = scmp.ne.s32.totalorder %s46, %s60
      %p62 = scmp.eq.s32.totalorder %s20, 0
      %p63 = por %p61, %p62
      %s64 = ssub.s32 %s14, %s21
      %p65 = scmp.eq.s32.totalorder %s64, 0
      %s67 = sadd.s32 %s66, 1
      %s68 = scalar_select %p65, %s66, %s67
      %p71 = pneg %p65
      %p72 = scmp.eq.s32.totalorder %s14, 2
      %p73 = por %p71, %p72
      %p74 = scmp.ne.s32.totalorder %s66, %s69
      %p75 = scmp.eq.s32.totalorder %s14, 0
      %p76 = por %p74, %p75
      %p77 = scmp.ne.s32.totalorder %s66, %s69
      %p78 = scmp.eq.s32.totalorder %s19, 2
      %p79 = por %p77, %p78
      %p80 = scmp.ne.s32.totalorder %s69, %s70
      %p81 = scmp.eq.s32.totalorder %s19, 0
      %p82 = por %p80, %p81
      %p83 = scmp.ne.s32.totalorder %s69, %s70
      %p84 = scmp.eq.s32.totalorder %s20, 2
      %p85 = por %p83, %p84
      %p87 = scmp.ne.s32.totalorder %s70, %s86
      %p88 = scmp.eq.s32.totalorder %s20, 0
      %p89 = por %p87, %p88
      %s90 = ssub.s32 %s14, %s21
      %p91 = scmp.eq.s32.totalorder %s90, 0
      %s93 = sadd.s32 %s92, 1
      %s94 = scalar_select %p91, %s92, %s93
      %p97 = pneg %p91
      %p98 = scmp.eq.s32.totalorder %s14, 2
      %p99 = por %p97, %p98
      %p100 = scmp.ne.s32.totalorder %s92, %s95
      %p101 = scmp.eq.s32.totalorder %s14, 0
      %p102 = por %p100, %p101
      %p103 = scmp.ne.s32.totalorder %s92, %s95
      %p104 = scmp.eq.s32.totalorder %s19, 2
      %p105 = por %p103, %p104
      %p106 = scmp.ne.s32.totalorder %s95, %s96
      %p107 = scmp.eq.s32.totalorder %s19, 0
      %p108 = por %p106, %p107
      %p109 = scmp.ne.s32.totalorder %s95, %s96
      %p110 = scmp.eq.s32.totalorder %s20, 2
      %p111 = por %p109, %p110
      %p113 = scmp.ne.s32.totalorder %s96, %s112
      %p114 = scmp.eq.s32.totalorder %s20, 0
      %p115 = por %p113, %p114
      %s116 = ssub.s32 %s14, %s21
      %p117 = scmp.eq.s32.totalorder %s116, 0
      %s119 = sadd.s32 %s118, 1
      %s120 = scalar_select %p117, %s118, %s119
      %p123 = pneg %p117
      %p124 = scmp.eq.s32.totalorder %s14, 2
      %p125 = por %p123, %p124
      %p126 = scmp.ne.s32.totalorder %s118, %s121
      %p127 = scmp.eq.s32.totalorder %s14, 0
      %p128 = por %p126, %p127
      %p129 = scmp.ne.s32.totalorder %s118, %s121
      %p130 = scmp.eq.s32.totalorder %s19, 2
      %p131 = por %p129, %p130
      %p132 = scmp.ne.s32.totalorder %s121, %s122
      %p133 = scmp.eq.s32.totalorder %s19, 0
      %p134 = por %p132, %p133
      %p135 = scmp.ne.s32.totalorder %s121, %s122
      %p136 = scmp.eq.s32.totalorder %s20, 2
      %p137 = por %p135, %p136
      %p139 = scmp.ne.s32.totalorder %s122, %s138
      %p140 = scmp.eq.s32.totalorder %s20, 0
      %p141 = por %p139, %p140
      %s143 = sadd.s32 %s142, 1
      %p146 = scmp.eq.s32.totalorder %s14, 2
      %p147 = scmp.ne.s32.totalorder %s142, %s144
      %p148 = scmp.eq.s32.totalorder %s14, 0
      %p149 = por %p147, %p148
      %p150 = scmp.ne.s32.totalorder %s142, %s144
      %p151 = scmp.eq.s32.totalorder %s19, 2
      %p152 = por %p150, %p151
      %p153 = scmp.ne.s32.totalorder %s144, %s145
      %p154 = scmp.eq.s32.totalorder %s19, 0
      %p155 = por %p153, %p154
      %p156 = scmp.ne.s32.totalorder %s144, %s145
      %p157 = scmp.eq.s32.totalorder %s20, 2
      %p158 = por %p156, %p157
      %p160 = scmp.ne.s32.totalorder %s145, %s159
      %p161 = scmp.eq.s32.totalorder %s20, 0
      %p162 = por %p160, %p161
      %p163 = scmp.le.s32.totalorder 1, %s14
      %p164 = scmp.lt.s32.totalorder %s14, 4
      %p165 = pnand %p163, %p164
      %p166 = pneg %p165
      // Predicated region
      $region9: #{perceiver_block.1} parent=5 // pred_check
        _
      $region10: #{perceiver_block.1} parent=5 // pred_check_branch
        %168 = sbr.rel (%p165) target = $region12
      $region11: #{perceiver_block.1} parent=5 // pred_region
        %s169 = ssub.s32 %s14, 1
        // Predicated region
        $region13: #{perceiver_block.1} parent=11 // pred_check
          %p170 = pneg %p35
        $region14: #{perceiver_block.1} parent=11 // pred_check_branch
          %172 = sbr.rel (%p170) target = $region16
        $region15: #{perceiver_block.1} parent=11 // pred_region
          %s174 = ssub.s32 512, 512
          %175 = vsyncadd [#allocation5], %s174
          %s176 = sshll.u32 [#allocation4], 4
          %s177 = int_to_ptr.vmem [resolvable:$true] %s176
          %182 = dma.hbm_to_vmem [thread:$0]  %s0, 512, %s177, [#allocation5], 128, 128, 8
        $region16: #{perceiver_block.1} parent=11 // pred_fallthru
          _
        // Predicated region
        $region17: #{perceiver_block.1} parent=11 // pred_check
          %p183 = pneg %p56
        $region18: #{perceiver_block.1} parent=11 // pred_check_branch
          %185 = sbr.rel (%p183) target = $region20
        $region19: #{perceiver_block.1} parent=11 // pred_region
          %s187 = ssub.s32 256, 256
          %188 = vsyncadd [#allocation8], %s187
          %s189 = sshll.u32 [#allocation7], 4
          %s190 = int_to_ptr.vmem [resolvable:$true] %s189
          %195 = dma.hbm_to_vmem [thread:$0]  %s1, 256, %s190, [#allocation8], 128, 128, 8
        $region20: #{perceiver_block.1} parent=11 // pred_fallthru
          _
      $region12: #{perceiver_block.1} parent=5 // pred_fallthru
        _
      %p196 = scmp.lt.s32.totalorder %s14, 3
      // Predicated region
      $region21: #{perceiver_block.1} parent=5 // pred_check
        %p197 = pneg %p196
      $region22: #{perceiver_block.1} parent=5 // pred_check_branch
        %199 = sbr.rel (%p197) target = $region24
      $region23: #{perceiver_block.1} parent=5 // pred_region
        // Predicated region
        $region25: #{perceiver_block.1} parent=23 // pred_check
          %p200 = pneg %p76
        $region26: #{perceiver_block.1} parent=23 // pred_check_branch
          %202 = sbr.rel (%p200) target = $region28
        $region27: #{perceiver_block.1} parent=23 // pred_region
          %s203 = sand.u32 %s14, 1
          %s204 = scalar_lea.sflag [#allocation5], %s203
          %s205 = sand.u32 %s66, 1
          %s206 = smul.addr %s205, 32
          %s207 = scalar_lea.vmem [#allocation9], %s206
          %s209 = ssub.s32 512, 512
          %210 = vsyncadd %s204, %s209
          %s211 = smul.addr %s14, 4
          %s212 = smul.addr %s211, 128
          %s213 = scalar_lea.hbm %s2, %s212
          %s214 = sshll.u32 %s207, 4
          %s215 = int_to_ptr.vmem [resolvable:$true] %s214
          %220 = dma.hbm_to_vmem [thread:$0]  %s213, 512, %s215, %s204, 128, 128, 8
        $region28: #{perceiver_block.1} parent=23 // pred_fallthru
          _
        // Predicated region
        $region29: #{perceiver_block.1} parent=23 // pred_check
          %p221 = pneg %p102
        $region30: #{perceiver_block.1} parent=23 // pred_check_branch
          %223 = sbr.rel (%p221) target = $region32
        $region31: #{perceiver_block.1} parent=23 // pred_region
          %s224 = sand.u32 %s14, 1
          %s225 = scalar_lea.sflag [#allocation5], %s224
          %s226 = sand.u32 %s92, 1
          %s227 = smul.addr %s226, 128
          %s228 = scalar_lea.vmem [#allocation10], %s227
          %s230 = ssub.s32 2048, 2048
          %231 = vsyncadd %s225, %s230
          %s232 = smul.addr %s14, 16
          %s233 = smul.addr %s232, 128
          %s234 = scalar_lea.hbm %s3, %s233
          %s235 = sshll.u32 %s228, 4
          %s236 = int_to_ptr.vmem [resolvable:$true] %s235
          %241 = dma.hbm_to_vmem [thread:$0]  %s234, 2048, %s236, %s225, 128, 128, 8
        $region32: #{perceiver_block.1} parent=23 // pred_fallthru
          _
        // Predicated region
        $region33: #{perceiver_block.1} parent=23 // pred_check
          %p242 = pneg %p128
        $region34: #{perceiver_block.1} parent=23 // pred_check_branch
          %244 = sbr.rel (%p242) target = $region36
        $region35: #{perceiver_block.1} parent=23 // pred_region
          %s245 = sand.u32 %s14, 1
          %s246 = scalar_lea.sflag [#allocation5], %s245
          %s247 = sand.u32 %s118, 1
          %s248 = smul.addr %s247, 16
          %s249 = scalar_lea.vmem [#allocation11], %s248
          %s251 = ssub.s32 256, 256
          %252 = vsyncadd %s246, %s251
          %s253 = smul.addr %s14, 2
          %s254 = smul.addr %s253, 128
          %s255 = scalar_lea.hbm %s4, %s254
          %s256 = sshll.u32 %s249, 4
          %s257 = int_to_ptr.vmem [resolvable:$true] %s256
          %262 = dma.hbm_to_vmem [thread:$0]  %s255, 256, %s257, %s246, 128, 128, 8
        $region36: #{perceiver_block.1} parent=23 // pred_fallthru
          _
      $region24: #{perceiver_block.1} parent=5 // pred_fallthru
        _
      %p263 = scmp.le.s32.totalorder 1, %s14
      %p264 = scmp.lt.s32.totalorder %s14, 4
      %p265 = pnand %p263, %p264
      %p266 = pneg %p265
      // Predicated region
      $region37: #{perceiver_block.1} parent=5 // pred_check
        _
      $region38: #{perceiver_block.1} parent=5 // pred_check_branch
        %268 = sbr.rel (%p265) target = $region40
      $region39: #{perceiver_block.1} parent=5 // pred_region
        %s269 = ssub.s32 %s14, 1
        // Predicated region
        $region41: #{perceiver_block.1} parent=39 // pred_check
          %p270 = pneg %p35
        $region42: #{perceiver_block.1} parent=39 // pred_check_branch
          %272 = sbr.rel (%p270) target = $region44
        $region43: #{perceiver_block.1} parent=39 // pred_region
          %273 = dma.done [#allocation5], 512
        $region44: #{perceiver_block.1} parent=39 // pred_fallthru
          _
        // Predicated region
        $region45: #{perceiver_block.1} parent=39 // pred_check
          %p274 = pneg %p56
        $region46: #{perceiver_block.1} parent=39 // pred_check_branch
          %276 = sbr.rel (%p274) target = $region48
        $region47: #{perceiver_block.1} parent=39 // pred_region
          %277 = dma.done [#allocation8], 256
        $region48: #{perceiver_block.1} parent=39 // pred_fallthru
          _
        %s278 = sand.u32 %s19, 1
        %s279 = scalar_lea.sflag [#allocation5], %s278
        %s280 = sand.u32 %s69, 1
        %s281 = smul.addr %s280, 32
        %s282 = scalar_lea.vmem [#allocation9], %s281
        // Predicated region
        $region49: #{perceiver_block.1} parent=39 // pred_check
          %p283 = pneg %p82
        $region50: #{perceiver_block.1} parent=39 // pred_check_branch
          %285 = sbr.rel (%p283) target = $region52
        $region51: #{perceiver_block.1} parent=39 // pred_region
          %286 = dma.done %s279, 512
        $region52: #{perceiver_block.1} parent=39 // pred_fallthru
          _
        %s287 = sand.u32 %s19, 1
        %s288 = scalar_lea.sflag [#allocation5], %s287
        %s289 = sand.u32 %s95, 1
        %s290 = smul.addr %s289, 128
        %s291 = scalar_lea.vmem [#allocation10], %s290
        // Predicated region
        $region53: #{perceiver_block.1} parent=39 // pred_check
          %p292 = pneg %p108
        $region54: #{perceiver_block.1} parent=39 // pred_check_branch
          %294 = sbr.rel (%p292) target = $region56
        $region55: #{perceiver_block.1} parent=39 // pred_region
          %295 = dma.done %s288, 2048
        $region56: #{perceiver_block.1} parent=39 // pred_fallthru
          _
        %s296 = sand.u32 %s19, 1
        %s297 = scalar_lea.sflag [#allocation5], %s296
        %s298 = sand.u32 %s121, 1
        %s299 = smul.addr %s298, 16
        %s300 = scalar_lea.vmem [#allocation11], %s299
        // Predicated region
        $region57: #{perceiver_block.1} parent=39 // pred_check
          %p301 = pneg %p134
        $region58: #{perceiver_block.1} parent=39 // pred_check_branch
          %303 = sbr.rel (%p301) target = $region60
        $region59: #{perceiver_block.1} parent=39 // pred_region
          %304 = dma.done %s297, 256
        $region60: #{perceiver_block.1} parent=39 // pred_fallthru
          _
        %p305 = pneg %p35
        %p306 = pneg %p32
        %p307 = pneg %p56
        %p308 = pneg %p53
        %s309 = sand.u32 %s19, 1
        %s310 = scalar_lea.sflag [#allocation5], %s309
        %s311 = sand.u32 %s69, 1
        %s312 = smul.addr %s311, 32
        %s313 = scalar_lea.vmem [#allocation9], %s312
        %p314 = pneg %p82
        %p315 = pneg %p79
        %s316 = sand.u32 %s19, 1
        %s317 = scalar_lea.sflag [#allocation5], %s316
        %s318 = sand.u32 %s95, 1
        %s319 = smul.addr %s318, 128
        %s320 = scalar_lea.vmem [#allocation10], %s319
        %p321 = pneg %p108
        %p322 = pneg %p105
        %s323 = sand.u32 %s19, 1
        %s324 = scalar_lea.sflag [#allocation5], %s323
        %s325 = sand.u32 %s121, 1
        %s326 = smul.addr %s325, 16
        %s327 = scalar_lea.vmem [#allocation11], %s326
        %p328 = pneg %p134
        %p329 = pneg %p131
        %p330 = pneg %p155
        %p331 = pneg %p152
        %v332 = vld [vmem:[%s282] sm:$0xff]
        %v333 = vld [vmem:[%s282 + $0x8] sm:$0xff]
        %v334 = vld [vmem:[%s282 + $0x10] sm:$0xff]
        %v335 = vld [vmem:[%s282 + $0x18] sm:$0xff]
        %p336 = scmp.eq.s32.totalorder %s19, 0
        // Predicated region
        $region61: #{perceiver_block.1} parent=39 // pred_check
          %p337 = pneg %p336
        $region62: #{perceiver_block.1} parent=39 // pred_check_branch
          %339 = sbr.rel (%p337) target = $region64
        $region63: #{perceiver_block.1} parent=39 // pred_region
          %v340 = vld [vmem:[#allocation7] sm:$0xff]
          %v341 = vld [vmem:[#allocation7 + $0x8] sm:$0xff]
          %vm342 = vcmask 261120
          %343 = vst.msk [vmem:[#allocation3] sm:$0xff] %vm342, %v340
          %344 = vst.msk [vmem:[#allocation3 + $0x8] sm:$0xff] %vm342, %v341
        $region64: #{perceiver_block.1} parent=39 // pred_fallthru
          _
        %v345 = vld [vmem:[#allocation3] sm:$0xff]
        %v346 = vld [vmem:[#allocation3 + $0x8] sm:$0xff]
        %v347 = vld [vmem:[%s300 + $0x2] sm:$0x1]
        %v348 = vld [vmem:[%s300 + $0x3] sm:$0x1]
        %vm349 = vcmask 261120
        %v350 = vsel %vm349, %v345, 0.0
        %351 = vadd.xlane.f32.xlu0 %v350
        %v352 = vpop.xlane.xlu0 %351
        %v353 = vsel %vm349, %v346, 0.0
        %354 = vadd.xlane.f32.xlu0 %v353
        %v355 = vpop.xlane.xlu0 %354
        %v356 = vrcp.pop 32.0
        %v357 = vmul.f32 %v352, %v356
        %v358 = vmul.f32 %v355, %v356
        %v359 = vsub.f32 %v345, %v357
        %v360 = vsub.f32 %v346, %v358
        %v361 = vmul.f32 %v359, %v359
        %v362 = vmul.f32 %v360, %v360
        %v363 = vsel %vm349, %v361, 0.0
        %364 = vadd.xlane.f32.xlu0 %v363
        %v365 = vpop.xlane.xlu0 %364
        %v366 = vsel %vm349, %v362, 0.0
        %367 = vadd.xlane.f32.xlu0 %v366
        %v368 = vpop.xlane.xlu0 %367
        %v369 = vmul.f32 %v365, %v356
        %v370 = vmul.f32 %v368, %v356
        %v371 = vadd.f32 %v369, 1e-05
        %v372 = vadd.f32 %v370, 1e-05
        %v373 = vrsqrt.pop %v371
        %v374 = vrsqrt.pop %v372
        %v375 = vmul.f32 %v359, %v373
        %v376 = vmul.f32 %v360, %v374
        %v377 = vlaneseq
        %v378 = vshrl.u32 %v377, 7
        %v379 = vsub.s32 0, %v378
        %v380 = vrot.slane %v347, %v379
        %v381 = vmul.f32 %v375, %v380
        %v382 = vmul.f32 %v376, %v380
        %v383 = vlaneseq
        %v384 = vshrl.u32 %v383, 7
        %v385 = vsub.s32 0, %v384
        %v386 = vrot.slane %v348, %v385
        %v387 = vadd.f32 %v381, %v386
        %v388 = vadd.f32 %v382, %v386
        %v389 = vld [vmem:[%s300 + $0x4] sm:$0x1]
        %v390 = vlaneseq
        %v391 = vshrl.u32 %v390, 7
        %v392 = vsub.s32 0, %v391
        %v393 = vrot.slane %v389, %v392
        %v395 = vsel %vm349, %v387, 0
        %v398 = vsel %vm349, %v388, 0
        %400 = vmatprep.subr.mxu0 0.0
        %401 = vmatpush1.msra.mxu0 0.0
        %402 = vmatprep.subr.mxu0 0.0
        %403 = vmatpush1.msra.mxu0 0.0
        %404 = vmatprep.subr.mxu0 0.0
        %405 = vmatpush1.msra.mxu0 0.0
        %406 = vmatprep.subr.mxu0 0.0
        %407 = vmatpush1.msra.mxu0 0.0
        %408 = vmatprep.subr.mxu0 0.0
        %409 = vmatpush1.msra.mxu0 0.0
        %410 = vmatprep.subr.mxu0 0.0
        %411 = vmatpush1.msra.mxu0 0.0
        %412 = vmatprep.subr.mxu0 0.0
        %413 = vmatpush1.msra.mxu0 0.0
        %414 = vmatprep.subr.mxu0 0.0
        %415 = vmatpush1.msra.mxu0 0.0
        %416 = vmatprep.subr.mxu0 0.0
        %417 = vmatpush1.msra.mxu0 0.0
        %418 = vmatprep.subr.mxu0 0.0
        %419 = vmatpush1.msra.mxu0 0.0
        %420 = vmatprep.subr.mxu0 0.0
        %421 = vmatpush1.msra.mxu0 0.0
        %422 = vmatprep.subr.mxu0 0.0
        %423 = vmatpush1.msra.mxu0 0.0
        %424 = vmatprep.subr.mxu0 0.0
        %425 = vmatpush1.msra.mxu0 %v335
        %426 = vmatprep.subr.mxu0 0.0
        %427 = vmatpush1.msra.mxu0 %v334
        %428 = vmatprep.subr.mxu0 0.0
        %429 = vmatpush1.msra.mxu0 %v333
        %430 = vmatprep.subr.mxu0 0.0
        %431 = vmatpush1.msra.mxu0 %v332
        %432 = vmatprep.subr.mxu0 0.0
        %433 = vmatpush2.msra.mxu0 0.0
        %434 = vmatprep.subr.mxu0 0.0
        %435 = vmatpush2.msra.mxu0 0.0
        %436 = vmatprep.subr.mxu0 0.0
        %437 = vmatpush2.msra.mxu0 0.0
        %438 = vmatprep.subr.mxu0 0.0
        %439 = vmatpush2.msra.mxu0 0.0
        %440 = vmatprep.subr.mxu0 0.0
        %441 = vmatpush2.msra.mxu0 0.0
        %442 = vmatprep.subr.mxu0 0.0
        %443 = vmatpush2.msra.mxu0 0.0
        %444 = vmatprep.subr.mxu0 0.0
        %445 = vmatpush2.msra.mxu0 0.0
        %446 = vmatprep.subr.mxu0 0.0
        %447 = vmatpush2.msra.mxu0 0.0
        %448 = vmatprep.subr.mxu0 0.0
        %449 = vmatpush2.msra.mxu0 0.0
        %450 = vmatprep.subr.mxu0 0.0
        %451 = vmatpush2.msra.mxu0 0.0
        %452 = vmatprep.subr.mxu0 0.0
        %453 = vmatpush2.msra.mxu0 0.0
        %454 = vmatprep.subr.mxu0 0.0
        %455 = vmatpush2.msra.mxu0 0.0
        %456 = vmatprep.subr.mxu0 0.0
        %457 = vmatpush2.msra.mxu0 0.0
        %458 = vmatprep.subr.mxu0 0.0
        %459 = vmatpush2.msra.mxu0 0.0
        %460 = vmatprep.subr.mxu0 0.0
        %461 = vmatpush2.msra.mxu0 0.0
        %462 = vmatprep.subr.mxu0 0.0
        %463 = vmatpush2.msra.mxu0 0.0
        %464 = vmatprep.mubr.f32.mxu0 0.0
        %465 = vmatmul.mubr.f32.gmra.mxu0 %v395
        %v466 = vpop.f32.mrf.mxu0
        %v467 = vadd.f32 %v393, %v466
        %v468 = vpop.f32.mrf.mxu0
        %469 = vmatprep.mubr.f32.mxu0 0.0
        %470 = vmatmul.mubr.f32.gmra.mxu0 %v398
        %v471 = vpop.f32.mrf.mxu0
        %v472 = vadd.f32 %v393, %v471
        %v473 = vpop.f32.mrf.mxu0
        %474 = vdwg.mxu0
        // Predicated region
        $region65: #{perceiver_block.1} parent=39 // pred_check
          %p475 = pneg %p336
        $region66: #{perceiver_block.1} parent=39 // pred_check_branch
          %477 = sbr.rel (%p475) target = $region68
        $region67: #{perceiver_block.1} parent=39 // pred_region
          %v478 = vld [vmem:[#allocation4] sm:$0xff]
          %v479 = vld [vmem:[#allocation4 + $0x8] sm:$0xff]
          %v480 = vld [vmem:[#allocation4 + $0x10] sm:$0xff]
          %v481 = vld [vmem:[#allocation4 + $0x18] sm:$0xff]
          %v482 = vld [vmem:[%s300] sm:$0x1]
          %v483 = vld [vmem:[%s300 + $0x1] sm:$0x1]
          %v484 = vsel %vm349, %v478, 0.0
          %485 = vadd.xlane.f32.xlu0 %v484
          %v486 = vpop.xlane.xlu0 %485
          %v487 = vsel %vm349, %v479, 0.0
          %488 = vadd.xlane.f32.xlu0 %v487
          %v489 = vpop.xlane.xlu0 %488
          %v490 = vsel %vm349, %v480, 0.0
          %491 = vadd.xlane.f32.xlu0 %v490
          %v492 = vpop.xlane.xlu0 %491
          %v493 = vsel %vm349, %v481, 0.0
          %494 = vadd.xlane.f32.xlu0 %v493
          %v495 = vpop.xlane.xlu0 %494
          %v496 = vmul.f32 %v486, %v356
          %v497 = vmul.f32 %v489, %v356
          %v498 = vmul.f32 %v492, %v356
          %v499 = vmul.f32 %v495, %v356
          %v500 = vsub.f32 %v478, %v496
          %v501 = vsub.f32 %v479, %v497
          %v502 = vsub.f32 %v480, %v498
          %v503 = vsub.f32 %v481, %v499
          %v504 = vmul.f32 %v500, %v500
          %v505 = vmul.f32 %v501, %v501
          %v506 = vmul.f32 %v502, %v502
          %v507 = vmul.f32 %v503, %v503
          %v508 = vsel %vm349, %v504, 0.0
          %509 = vadd.xlane.f32.xlu0 %v508
          %v510 = vpop.xlane.xlu0 %509
          %v511 = vsel %vm349, %v505, 0.0
          %512 = vadd.xlane.f32.xlu0 %v511
          %v513 = vpop.xlane.xlu0 %512
          %v514 = vsel %vm349, %v506, 0.0
          %515 = vadd.xlane.f32.xlu0 %v514
          %v516 = vpop.xlane.xlu0 %515
          %v517 = vsel %vm349, %v507, 0.0
          %518 = vadd.xlane.f32.xlu0 %v517
          %v519 = vpop.xlane.xlu0 %518
          %v520 = vmul.f32 %v510, %v356
          %v521 = vmul.f32 %v513, %v356
          %v522 = vmul.f32 %v516, %v356
          %v523 = vmul.f32 %v519, %v356
          %v524 = vadd.f32 %v520, 1e-05
          %v525 = vadd.f32 %v521, 1e-05
          %v526 = vadd.f32 %v522, 1e-05
          %v527 = vadd.f32 %v523, 1e-05
          %v528 = vrsqrt.pop %v524
          %v529 = vrsqrt.pop %v525
          %v530 = vrsqrt.pop %v526
          %v531 = vrsqrt.pop %v527
          %v532 = vmul.f32 %v500, %v528
          %v533 = vmul.f32 %v501, %v529
          %v534 = vmul.f32 %v502, %v530
          %v535 = vmul.f32 %v503, %v531
          %v536 = vlaneseq
          %v537 = vshrl.u32 %v536, 7
          %v538 = vsub.s32 0, %v537
          %v539 = vrot.slane %v482, %v538
          %v540 = vmul.f32 %v532, %v539
          %v541 = vmul.f32 %v533, %v539
          %v542 = vmul.f32 %v534, %v539
          %v543 = vmul.f32 %v535, %v539
          %v544 = vlaneseq
          %v545 = vshrl.u32 %v544, 7
          %v546 = vsub.s32 0, %v545
          %v547 = vrot.slane %v483, %v546
          %v548 = vadd.f32 %v540, %v547
          %v549 = vadd.f32 %v541, %v547
          %v550 = vadd.f32 %v542, %v547
          %v551 = vadd.f32 %v543, %v547
          %556 = vrot.lane.b32.xlu0 %v332, 96
          %v557 = vpop.permute.xlu0 %556
          %558 = vrot.lane.b32.xlu0 %v333, 96
          %v559 = vpop.permute.xlu0 %558
          %560 = vrot.lane.b32.xlu0 %v334, 96
          %v561 = vpop.permute.xlu0 %560
          %562 = vrot.lane.b32.xlu0 %v335, 96
          %v563 = vpop.permute.xlu0 %562
          %v569 = vsel %vm349, %v548, 0
          %v572 = vsel %vm349, %v549, 0
          %v575 = vsel %vm349, %v550, 0
          %v578 = vsel %vm349, %v551, 0
          %580 = vmatprep.subr.mxu0 0.0
          %581 = vmatpush1.msra.mxu0 0.0
          %582 = vmatprep.subr.mxu0 0.0
          %583 = vmatpush1.msra.mxu0 0.0
          %584 = vmatprep.subr.mxu0 0.0
          %585 = vmatpush1.msra.mxu0 0.0
          %586 = vmatprep.subr.mxu0 0.0
          %587 = vmatpush1.msra.mxu0 0.0
          %588 = vmatprep.subr.mxu0 0.0
          %589 = vmatpush1.msra.mxu0 0.0
          %590 = vmatprep.subr.mxu0 0.0
          %591 = vmatpush1.msra.mxu0 0.0
          %592 = vmatprep.subr.mxu0 0.0
          %593 = vmatpush1.msra.mxu0 0.0
          %594 = vmatprep.subr.mxu0 0.0
          %595 = vmatpush1.msra.mxu0 0.0
          %596 = vmatprep.subr.mxu0 0.0
          %597 = vmatpush1.msra.mxu0 0.0
          %598 = vmatprep.subr.mxu0 0.0
          %599 = vmatpush1.msra.mxu0 0.0
          %600 = vmatprep.subr.mxu0 0.0
          %601 = vmatpush1.msra.mxu0 0.0
          %602 = vmatprep.subr.mxu0 0.0
          %603 = vmatpush1.msra.mxu0 0.0
          %604 = vmatprep.subr.mxu0 0.0
          %605 = vmatpush1.msra.mxu0 %v563
          %606 = vmatprep.subr.mxu0 0.0
          %607 = vmatpush1.msra.mxu0 %v561
          %608 = vmatprep.subr.mxu0 0.0
          %609 = vmatpush1.msra.mxu0 %v559
          %610 = vmatprep.subr.mxu0 0.0
          %611 = vmatpush1.msra.mxu0 %v557
          %612 = vmatprep.subr.mxu0 0.0
          %613 = vmatpush2.msra.mxu0 0.0
          %614 = vmatprep.subr.mxu0 0.0
          %615 = vmatpush2.msra.mxu0 0.0
          %616 = vmatprep.subr.mxu0 0.0
          %617 = vmatpush2.msra.mxu0 0.0
          %618 = vmatprep.subr.mxu0 0.0
          %619 = vmatpush2.msra.mxu0 0.0
          %620 = vmatprep.subr.mxu0 0.0
          %621 = vmatpush2.msra.mxu0 0.0
          %622 = vmatprep.subr.mxu0 0.0
          %623 = vmatpush2.msra.mxu0 0.0
          %624 = vmatprep.subr.mxu0 0.0
          %625 = vmatpush2.msra.mxu0 0.0
          %626 = vmatprep.subr.mxu0 0.0
          %627 = vmatpush2.msra.mxu0 0.0
          %628 = vmatprep.subr.mxu0 0.0
          %629 = vmatpush2.msra.mxu0 0.0
          %630 = vmatprep.subr.mxu0 0.0
          %631 = vmatpush2.msra.mxu0 0.0
          %632 = vmatprep.subr.mxu0 0.0
          %633 = vmatpush2.msra.mxu0 0.0
          %634 = vmatprep.subr.mxu0 0.0
          %635 = vmatpush2.msra.mxu0 0.0
          %636 = vmatprep.subr.mxu0 0.0
          %637 = vmatpush2.msra.mxu0 0.0
          %638 = vmatprep.subr.mxu0 0.0
          %639 = vmatpush2.msra.mxu0 0.0
          %640 = vmatprep.subr.mxu0 0.0
          %641 = vmatpush2.msra.mxu0 0.0
          %642 = vmatprep.subr.mxu0 0.0
          %643 = vmatpush2.msra.mxu0 0.0
          %644 = vmatprep.mubr.f32.mxu0 0.0
          %645 = vmatmul.mubr.f32.gmra.mxu0 %v569
          %v646 = vpop.f32.mrf.mxu0
          %v647 = vadd.f32 0.0, %v646
          %v648 = vpop.f32.mrf.mxu0
          %649 = vmatprep.mubr.f32.mxu0 0.0
          %650 = vmatmul.mubr.f32.gmra.mxu0 %v572
          %v651 = vpop.f32.mrf.mxu0
          %v652 = vadd.f32 0.0, %v651
          %v653 = vpop.f32.mrf.mxu0
          %654 = vmatprep.mubr.f32.mxu0 0.0
          %655 = vmatmul.mubr.f32.gmra.mxu0 %v575
          %v656 = vpop.f32.mrf.mxu0
          %v657 = vadd.f32 0.0, %v656
          %v658 = vpop.f32.mrf.mxu0
          %659 = vmatprep.mubr.f32.mxu0 0.0
          %660 = vmatmul.mubr.f32.gmra.mxu0 %v578
          %v661 = vpop.f32.mrf.mxu0
          %v662 = vadd.f32 0.0, %v661
          %v663 = vpop.f32.mrf.mxu0
          %664 = vdwg.mxu0
          %v665 = vld [vmem:[%s300 + $0x5] sm:$0x1]
          %v666 = vlaneseq
          %v667 = vshrl.u32 %v666, 7
          %v668 = vsub.s32 0, %v667
          %v669 = vrot.slane %v665, %v668
          %v670 = vadd.f32 %v647, %v669
          %v671 = vadd.f32 %v652, %v669
          %v672 = vadd.f32 %v657, %v669
          %v673 = vadd.f32 %v662, %v669
          %v674 = vld [vmem:[%s300 + $0x6] sm:$0x1]
          %v675 = vlaneseq
          %v676 = vshrl.u32 %v675, 7
          %v677 = vsub.s32 0, %v676
          %v678 = vrot.slane %v674, %v677
          %680 = vrot.lane.b32.xlu0 %v678, 32
          %v681 = vpop.permute.xlu0 %680
          %v683 = vadd.f32 %v647, %v681
          %v684 = vadd.f32 %v652, %v681
          %v685 = vadd.f32 %v657, %v681
          %v686 = vadd.f32 %v662, %v681
          %v687 = vlaneseq
          %v688 = vshrl.u32 %v687, 7
          %v689 = vadd.s32 %v688, 8
          %v690 = vlaneseq
          %v691 = vand.u32 %v690, 127
          %vm692 = vcmp.lt.s32.totalorder %v688, 0
          %v693 = vsub.s32 0, %v688
          %v694 = vsel %vm692, %v693, %v688
          %v695 = vshrl.u32 %v694, 1
          %v696 = vand.u32 %v694, 1
          %v697 = vsub.s32 0, %v696
          %v698 = vsel %vm692, %v697, %v696
          %vm699 = vcmp.lt.s32.totalorder %v689, 0
          %v700 = vsub.s32 0, %v689
          %v701 = vsel %vm699, %v700, %v689
          %v702 = vshrl.u32 %v701, 1
          %v703 = vand.u32 %v701, 1
          %v704 = vsub.s32 0, %v703
          %v705 = vsel %vm699, %v704, %v703
          %vm706 = vcmp.ne.s32.totalorder %v698, 0
          %vm707 = vcmp.ne.s32.totalorder %v705, 0
          %vm708 = vcmp.lt.s32.totalorder %v698, 0
          %vm709 = vcmp.lt.s32.totalorder %v705, 0
          %vm710 = vmand %vm708, %vm706
          %vm711 = vmand %vm709, %vm707
          %v712 = vadd.s32 %v698, 2
          %v713 = vadd.s32 %v705, 2
          %v714 = vsel %vm710, %v712, %v698
          %v715 = vsel %vm711, %v713, %v705
          %vm716 = vcmp.lt.s32.totalorder %v691, 0
          %v717 = vsub.s32 0, %v691
          %v718 = vsel %vm716, %v717, %v691
          %v719 = vshrl.u32 %v718, 1
          %v720 = vand.u32 %v718, 1
          %v721 = vsub.s32 0, %v720
          %v722 = vsel %vm716, %v721, %v720
          %vm723 = vcmp.ne.s32.totalorder %v722, 0
          %vm724 = vcmp.lt.s32.totalorder %v722, 0
          %vm725 = vmand %vm724, %vm723
          %v726 = vadd.s32 %v722, 2
          %v727 = vsel %vm725, %v726, %v722
          %vm728 = vcmp.eq.s32.totalorder %v714, %v727
          %vm729 = vcmp.eq.s32.totalorder %v715, %v727
          %v730 = vmul.f32 %v467, 0.17677669
          %v731 = vmul.f32 %v472, 0.17677669
          %v732 = vld [vmem:[%s300 + $0x7] sm:$0x1]
          %v733 = vld [vmem:[%s300 + $0x8] sm:$0x1]
          %v735 = vsel %vm349, %v730, 0
          %v738 = vsel %vm349, %v731, 0
          %v741 = vsel %vm349, %v670, 0
          %v744 = vsel %vm349, %v671, 0
          %v747 = vsel %vm349, %v672, 0
          %v750 = vsel %vm349, %v673, 0
          %752 = vmatprep.subr.mxu0 0.0
          %753 = vmatpush1.xpose.msra.mxu0 0.0
          %754 = vmatprep.subr.mxu0 0.0
          %755 = vmatpush1.xpose.msra.mxu0 0.0
          %756 = vmatprep.subr.mxu0 0.0
          %757 = vmatpush1.xpose.msra.mxu0 0.0
          %758 = vmatprep.subr.mxu0 0.0
          %759 = vmatpush1.xpose.msra.mxu0 0.0
          %760 = vmatprep.subr.mxu0 0.0
          %761 = vmatpush1.xpose.msra.mxu0 0.0
          %762 = vmatprep.subr.mxu0 0.0
          %763 = vmatpush1.xpose.msra.mxu0 0.0
          %764 = vmatprep.subr.mxu0 0.0
          %765 = vmatpush1.xpose.msra.mxu0 0.0
          %766 = vmatprep.subr.mxu0 0.0
          %767 = vmatpush1.xpose.msra.mxu0 0.0
          %768 = vmatprep.subr.mxu0 0.0
          %769 = vmatpush1.xpose.msra.mxu0 0.0
          %770 = vmatprep.subr.mxu0 0.0
          %771 = vmatpush1.xpose.msra.mxu0 0.0
          %772 = vmatprep.subr.mxu0 0.0
          %773 = vmatpush1.xpose.msra.mxu0 0.0
          %774 = vmatprep.subr.mxu0 0.0
          %775 = vmatpush1.xpose.msra.mxu0 0.0
          %776 = vmatprep.subr.mxu0 0.0
          %777 = vmatpush1.xpose.msra.mxu0 %v750
          %778 = vmatprep.subr.mxu0 0.0
          %779 = vmatpush1.xpose.msra.mxu0 %v747
          %780 = vmatprep.subr.mxu0 0.0
          %781 = vmatpush1.xpose.msra.mxu0 %v744
          %782 = vmatprep.subr.mxu0 0.0
          %783 = vmatpush1.xpose.msra.mxu0 %v741
          %784 = vmatprep.subr.mxu0 0.0
          %785 = vmatpush2.xpose.msra.mxu0 0.0
          %786 = vmatprep.subr.mxu0 0.0
          %787 = vmatpush2.xpose.msra.mxu0 0.0
          %788 = vmatprep.subr.mxu0 0.0
          %789 = vmatpush2.xpose.msra.mxu0 0.0
          %790 = vmatprep.subr.mxu0 0.0
          %791 = vmatpush2.xpose.msra.mxu0 0.0
          %792 = vmatprep.subr.mxu0 0.0
          %793 = vmatpush2.xpose.msra.mxu0 0.0
          %794 = vmatprep.subr.mxu0 0.0
          %795 = vmatpush2.xpose.msra.mxu0 0.0
          %796 = vmatprep.subr.mxu0 0.0
          %797 = vmatpush2.xpose.msra.mxu0 0.0
          %798 = vmatprep.subr.mxu0 0.0
          %799 = vmatpush2.xpose.msra.mxu0 0.0
          %800 = vmatprep.subr.mxu0 0.0
          %801 = vmatpush2.xpose.msra.mxu0 0.0
          %802 = vmatprep.subr.mxu0 0.0
          %803 = vmatpush2.xpose.msra.mxu0 0.0
          %804 = vmatprep.subr.mxu0 0.0
          %805 = vmatpush2.xpose.msra.mxu0 0.0
          %806 = vmatprep.subr.mxu0 0.0
          %807 = vmatpush2.xpose.msra.mxu0 0.0
          %808 = vmatprep.subr.mxu0 0.0
          %809 = vmatpush2.xpose.msra.mxu0 0.0
          %810 = vmatprep.subr.mxu0 0.0
          %811 = vmatpush2.xpose.msra.mxu0 0.0
          %812 = vmatprep.subr.mxu0 0.0
          %813 = vmatpush2.xpose.msra.mxu0 0.0
          %814 = vmatprep.subr.mxu0 0.0
          %815 = vmatpush2.xpose.msra.mxu0 0.0
          %816 = vmatprep.mubr.f32.mxu0 0.0
          %817 = vmatmul.mubr.f32.gmra.mxu0 %v735
          %v818 = vpop.f32.mrf.mxu0
          %v819 = vadd.f32 0.0, %v818
          %v820 = vpop.f32.mrf.mxu0
          %821 = vmatprep.mubr.f32.mxu0 0.0
          %822 = vmatmul.mubr.f32.gmra.mxu0 %v738
          %v823 = vpop.f32.mrf.mxu0
          %v824 = vadd.f32 0.0, %v823
          %v825 = vpop.f32.mrf.mxu0
          %826 = vdwg.mxu0
          %v827 = vsel %vm728, %v819, -1e+30
          %v828 = vsel %vm729, %v824, -1e+30
          %v829 = vlaneseq
          %v830 = vshrl.u32 %v829, 7
          %v831 = vsub.s32 0, %v830
          %v832 = vrot.slane %v732, %v831
          %v833 = vmul.f32 %v730, %v832
          %v834 = vmul.f32 %v731, %v832
          %v835 = vsel %vm349, %v833, 0.0
          %836 = vadd.xlane.f32.xlu0 %v835
          %v837 = vpop.xlane.xlu0 %836
          %v838 = vsel %vm349, %v834, 0.0
          %839 = vadd.xlane.f32.xlu0 %v838
          %v840 = vpop.xlane.xlu0 %839
          %v841 = vsel %vm349, %v827, -inf
          %842 = vmax.xlane.f32.xlu0 %v841
          %v843 = vpop.xlane.xlu0 %842
          %v844 = vsel %vm349, %v828, -inf
          %845 = vmax.xlane.f32.xlu0 %v844
          %v846 = vpop.xlane.xlu0 %845
          %v847 = vmax.f32 %v843, %v837
          %v848 = vmax.f32 %v846, %v840
          %v849 = vsub.f32 %v827, %v847
          %v850 = vsub.f32 %v828, %v848
          %v851 = vmul.f32 %v849, 1.442695
          %v852 = vpow.pop %v851
          %v853 = vmul.f32 %v850, 1.442695
          %v854 = vpow.pop %v853
          %v855 = vsub.f32 %v837, %v847
          %v856 = vsub.f32 %v840, %v848
          %v857 = vmul.f32 %v855, 1.442695
          %v858 = vpow.pop %v857
          %v859 = vmul.f32 %v856, 1.442695
          %v860 = vpow.pop %v859
          %v861 = vsel %vm349, %v852, 0.0
          %862 = vadd.xlane.f32.xlu0 %v861
          %v863 = vpop.xlane.xlu0 %862
          %v864 = vsel %vm349, %v854, 0.0
          %865 = vadd.xlane.f32.xlu0 %v864
          %v866 = vpop.xlane.xlu0 %865
          %v867 = vadd.f32 %v863, %v858
          %v868 = vadd.f32 %v866, %v860
          %v869 = vlaneseq
          %v870 = vshrl.u32 %v869, 7
          %v871 = vsub.s32 0, %v870
          %v872 = vrot.slane %v733, %v871
          %v873 = vmul.f32 %v858, %v872
          %v874 = vmul.f32 %v860, %v872
          %879 = vrot.lane.b32.xlu0 %v683, 96
          %v880 = vpop.permute.xlu0 %879
          %881 = vrot.lane.b32.xlu0 %v684, 96
          %v882 = vpop.permute.xlu0 %881
          %883 = vrot.lane.b32.xlu0 %v685, 96
          %v884 = vpop.permute.xlu0 %883
          %885 = vrot.lane.b32.xlu0 %v686, 96
          %v886 = vpop.permute.xlu0 %885
          %v892 = vsel %vm349, %v852, 0
          %v895 = vsel %vm349, %v854, 0
          %897 = vmatprep.subr.mxu0 0.0
          %898 = vmatpush1.msra.mxu0 0.0
          %899 = vmatprep.subr.mxu0 0.0
          %900 = vmatpush1.msra.mxu0 0.0
          %901 = vmatprep.subr.mxu0 0.0
          %902 = vmatpush1.msra.mxu0 0.0
          %903 = vmatprep.subr.mxu0 0.0
          %904 = vmatpush1.msra.mxu0 0.0
          %905 = vmatprep.subr.mxu0 0.0
          %906 = vmatpush1.msra.mxu0 0.0
          %907 = vmatprep.subr.mxu0 0.0
          %908 = vmatpush1.msra.mxu0 0.0
          %909 = vmatprep.subr.mxu0 0.0
          %910 = vmatpush1.msra.mxu0 0.0
          %911 = vmatprep.subr.mxu0 0.0
          %912 = vmatpush1.msra.mxu0 0.0
          %913 = vmatprep.subr.mxu0 0.0
          %914 = vmatpush1.msra.mxu0 0.0
          %915 = vmatprep.subr.mxu0 0.0
          %916 = vmatpush1.msra.mxu0 0.0
          %917 = vmatprep.subr.mxu0 0.0
          %918 = vmatpush1.msra.mxu0 0.0
          %919 = vmatprep.subr.mxu0 0.0
          %920 = vmatpush1.msra.mxu0 0.0
          %921 = vmatprep.subr.mxu0 0.0
          %922 = vmatpush1.msra.mxu0 %v886
          %923 = vmatprep.subr.mxu0 0.0
          %924 = vmatpush1.msra.mxu0 %v884
          %925 = vmatprep.subr.mxu0 0.0
          %926 = vmatpush1.msra.mxu0 %v882
          %927 = vmatprep.subr.mxu0 0.0
          %928 = vmatpush1.msra.mxu0 %v880
          %929 = vmatprep.subr.mxu0 0.0
          %930 = vmatpush2.msra.mxu0 0.0
          %931 = vmatprep.subr.mxu0 0.0
          %932 = vmatpush2.msra.mxu0 0.0
          %933 = vmatprep.subr.mxu0 0.0
          %934 = vmatpush2.msra.mxu0 0.0
          %935 = vmatprep.subr.mxu0 0.0
          %936 = vmatpush2.msra.mxu0 0.0
          %937 = vmatprep.subr.mxu0 0.0
          %938 = vmatpush2.msra.mxu0 0.0
          %939 = vmatprep.subr.mxu0 0.0
          %940 = vmatpush2.msra.mxu0 0.0
          %941 = vmatprep.subr.mxu0 0.0
          %942 = vmatpush2.msra.mxu0 0.0
          %943 = vmatprep.subr.mxu0 0.0
          %944 = vmatpush2.msra.mxu0 0.0
          %945 = vmatprep.subr.mxu0 0.0
          %946 = vmatpush2.msra.mxu0 0.0
          %947 = vmatprep.subr.mxu0 0.0
          %948 = vmatpush2.msra.mxu0 0.0
          %949 = vmatprep.subr.mxu0 0.0
          %950 = vmatpush2.msra.mxu0 0.0
          %951 = vmatprep.subr.mxu0 0.0
          %952 = vmatpush2.msra.mxu0 0.0
          %953 = vmatprep.subr.mxu0 0.0
          %954 = vmatpush2.msra.mxu0 0.0
          %955 = vmatprep.subr.mxu0 0.0
          %956 = vmatpush2.msra.mxu0 0.0
          %957 = vmatprep.subr.mxu0 0.0
          %958 = vmatpush2.msra.mxu0 0.0
          %959 = vmatprep.subr.mxu0 0.0
          %960 = vmatpush2.msra.mxu0 0.0
          %961 = vmatprep.mubr.f32.mxu0 0.0
          %962 = vmatmul.mubr.f32.gmra.mxu0 %v892
          %v963 = vpop.f32.mrf.mxu0
          %v964 = vadd.f32 %v873, %v963
          %v965 = vpop.f32.mrf.mxu0
          %966 = vmatprep.mubr.f32.mxu0 0.0
          %967 = vmatmul.mubr.f32.gmra.mxu0 %v895
          %v968 = vpop.f32.mrf.mxu0
          %v969 = vadd.f32 %v874, %v968
          %v970 = vpop.f32.mrf.mxu0
          %971 = vdwg.mxu0
          %v972 = vrcp.pop %v867
          %v973 = vrcp.pop %v868
          %v974 = vmul.f32 %v964, %v972
          %v975 = vmul.f32 %v969, %v973
          %976 = vst.msk [vmem:[#allocation2] sm:$0xff] %vm349, %v974
          %977 = vst.msk [vmem:[#allocation2 + $0x8] sm:$0xff] %vm349, %v975
        $region68: #{perceiver_block.1} parent=39 // pred_fallthru
          _
        %p978 = scmp.gt.s32.totalorder %s19, 0
        // Predicated region
        $region69: #{perceiver_block.1} parent=39 // pred_check
          %p979 = pneg %p978
        $region70: #{perceiver_block.1} parent=39 // pred_check_branch
          %981 = sbr.rel (%p979) target = $region72
        $region71: #{perceiver_block.1} parent=39 // pred_region
          %v982 = vld [vmem:[%s300] sm:$0x1]
          %v983 = vld [vmem:[%s300 + $0x1] sm:$0x1]
          %v984 = vlaneseq
          %v985 = vshrl.u32 %v984, 7
          %v986 = vsub.s32 0, %v985
          %v987 = vrot.slane %v982, %v986
          %v988 = vmul.f32 %v375, %v987
          %v989 = vmul.f32 %v376, %v987
          %v990 = vlaneseq
          %v991 = vshrl.u32 %v990, 7
          %v992 = vsub.s32 0, %v991
          %v993 = vrot.slane %v983, %v992
          %v994 = vadd.f32 %v988, %v993
          %v995 = vadd.f32 %v989, %v993
          %1000 = vrot.lane.b32.xlu0 %v332, 96
          %v1001 = vpop.permute.xlu0 %1000
          %1002 = vrot.lane.b32.xlu0 %v333, 96
          %v1003 = vpop.permute.xlu0 %1002
          %1004 = vrot.lane.b32.xlu0 %v334, 96
          %v1005 = vpop.permute.xlu0 %1004
          %1006 = vrot.lane.b32.xlu0 %v335, 96
          %v1007 = vpop.permute.xlu0 %1006
          %v1013 = vsel %vm349, %v994, 0
          %v1016 = vsel %vm349, %v995, 0
          %1018 = vmatprep.subr.mxu0 0.0
          %1019 = vmatpush1.msra.mxu0 0.0
          %1020 = vmatprep.subr.mxu0 0.0
          %1021 = vmatpush1.msra.mxu0 0.0
          %1022 = vmatprep.subr.mxu0 0.0
          %1023 = vmatpush1.msra.mxu0 0.0
          %1024 = vmatprep.subr.mxu0 0.0
          %1025 = vmatpush1.msra.mxu0 0.0
          %1026 = vmatprep.subr.mxu0 0.0
          %1027 = vmatpush1.msra.mxu0 0.0
          %1028 = vmatprep.subr.mxu0 0.0
          %1029 = vmatpush1.msra.mxu0 0.0
          %1030 = vmatprep.subr.mxu0 0.0
          %1031 = vmatpush1.msra.mxu0 0.0
          %1032 = vmatprep.subr.mxu0 0.0
          %1033 = vmatpush1.msra.mxu0 0.0
          %1034 = vmatprep.subr.mxu0 0.0
          %1035 = vmatpush1.msra.mxu0 0.0
          %1036 = vmatprep.subr.mxu0 0.0
          %1037 = vmatpush1.msra.mxu0 0.0
          %1038 = vmatprep.subr.mxu0 0.0
          %1039 = vmatpush1.msra.mxu0 0.0
          %1040 = vmatprep.subr.mxu0 0.0
          %1041 = vmatpush1.msra.mxu0 0.0
          %1042 = vmatprep.subr.mxu0 0.0
          %1043 = vmatpush1.msra.mxu0 %v1007
          %1044 = vmatprep.subr.mxu0 0.0
          %1045 = vmatpush1.msra.mxu0 %v1005
          %1046 = vmatprep.subr.mxu0 0.0
          %1047 = vmatpush1.msra.mxu0 %v1003
          %1048 = vmatprep.subr.mxu0 0.0
          %1049 = vmatpush1.msra.mxu0 %v1001
          %1050 = vmatprep.subr.mxu0 0.0
          %1051 = vmatpush2.msra.mxu0 0.0
          %1052 = vmatprep.subr.mxu0 0.0
          %1053 = vmatpush2.msra.mxu0 0.0
          %1054 = vmatprep.subr.mxu0 0.0
          %1055 = vmatpush2.msra.mxu0 0.0
          %1056 = vmatprep.subr.mxu0 0.0
          %1057 = vmatpush2.msra.mxu0 0.0
          %1058 = vmatprep.subr.mxu0 0.0
          %1059 = vmatpush2.msra.mxu0 0.0
          %1060 = vmatprep.subr.mxu0 0.0
          %1061 = vmatpush2.msra.mxu0 0.0
          %1062 = vmatprep.subr.mxu0 0.0
          %1063 = vmatpush2.msra.mxu0 0.0
          %1064 = vmatprep.subr.mxu0 0.0
          %1065 = vmatpush2.msra.mxu0 0.0
          %1066 = vmatprep.subr.mxu0 0.0
          %1067 = vmatpush2.msra.mxu0 0.0
          %1068 = vmatprep.subr.mxu0 0.0
          %1069 = vmatpush2.msra.mxu0 0.0
          %1070 = vmatprep.subr.mxu0 0.0
          %1071 = vmatpush2.msra.mxu0 0.0
          %1072 = vmatprep.subr.mxu0 0.0
          %1073 = vmatpush2.msra.mxu0 0.0
          %1074 = vmatprep.subr.mxu0 0.0
          %1075 = vmatpush2.msra.mxu0 0.0
          %1076 = vmatprep.subr.mxu0 0.0
          %1077 = vmatpush2.msra.mxu0 0.0
          %1078 = vmatprep.subr.mxu0 0.0
          %1079 = vmatpush2.msra.mxu0 0.0
          %1080 = vmatprep.subr.mxu0 0.0
          %1081 = vmatpush2.msra.mxu0 0.0
          %1082 = vmatprep.mubr.f32.mxu0 0.0
          %1083 = vmatmul.mubr.f32.gmra.mxu0 %v1013
          %v1084 = vpop.f32.mrf.mxu0
          %v1085 = vadd.f32 0.0, %v1084
          %v1086 = vpop.f32.mrf.mxu0
          %1087 = vmatprep.mubr.f32.mxu0 0.0
          %1088 = vmatmul.mubr.f32.gmra.mxu0 %v1016
          %v1089 = vpop.f32.mrf.mxu0
          %v1090 = vadd.f32 0.0, %v1089
          %v1091 = vpop.f32.mrf.mxu0
          %1092 = vdwg.mxu0
          %v1093 = vld [vmem:[%s300 + $0x5] sm:$0x1]
          %v1094 = vlaneseq
          %v1095 = vshrl.u32 %v1094, 7
          %v1096 = vsub.s32 0, %v1095
          %v1097 = vrot.slane %v1093, %v1096
          %v1098 = vadd.f32 %v1085, %v1097
          %v1099 = vadd.f32 %v1090, %v1097
          %v1100 = vld [vmem:[%s300 + $0x6] sm:$0x1]
          %v1101 = vlaneseq
          %v1102 = vshrl.u32 %v1101, 7
          %v1103 = vsub.s32 0, %v1102
          %v1104 = vrot.slane %v1100, %v1103
          %1106 = vrot.lane.b32.xlu0 %v1104, 32
          %v1107 = vpop.permute.xlu0 %1106
          %v1109 = vadd.f32 %v1085, %v1107
          %v1110 = vadd.f32 %v1090, %v1107
          %v1111 = vlaneseq
          %v1112 = vshrl.u32 %v1111, 7
          %v1113 = vadd.s32 %v1112, 8
          %v1114 = vlaneseq
          %v1115 = vand.u32 %v1114, 127
          %vm1116 = vcmp.lt.s32.totalorder %v1112, 0
          %v1117 = vsub.s32 0, %v1112
          %v1118 = vsel %vm1116, %v1117, %v1112
          %v1119 = vshrl.u32 %v1118, 1
          %v1120 = vand.u32 %v1118, 1
          %v1121 = vsub.s32 0, %v1120
          %v1122 = vsel %vm1116, %v1121, %v1120
          %vm1123 = vcmp.lt.s32.totalorder %v1113, 0
          %v1124 = vsub.s32 0, %v1113
          %v1125 = vsel %vm1123, %v1124, %v1113
          %v1126 = vshrl.u32 %v1125, 1
          %v1127 = vand.u32 %v1125, 1
          %v1128 = vsub.s32 0, %v1127
          %v1129 = vsel %vm1123, %v1128, %v1127
          %vm1130 = vcmp.ne.s32.totalorder %v1122, 0
          %vm1131 = vcmp.ne.s32.totalorder %v1129, 0
          %vm1132 = vcmp.lt.s32.totalorder %v1122, 0
          %vm1133 = vcmp.lt.s32.totalorder %v1129, 0
          %vm1134 = vmand %vm1132, %vm1130
          %vm1135 = vmand %vm1133, %vm1131
          %v1136 = vadd.s32 %v1122, 2
          %v1137 = vadd.s32 %v1129, 2
          %v1138 = vsel %vm1134, %v1136, %v1122
          %v1139 = vsel %vm1135, %v1137, %v1129
          %vm1140 = vcmp.lt.s32.totalorder %v1115, 0
          %v1141 = vsub.s32 0, %v1115
          %v1142 = vsel %vm1140, %v1141, %v1115
          %v1143 = vshrl.u32 %v1142, 1
          %v1144 = vand.u32 %v1142, 1
          %v1145 = vsub.s32 0, %v1144
          %v1146 = vsel %vm1140, %v1145, %v1144
          %vm1147 = vcmp.ne.s32.totalorder %v1146, 0
          %vm1148 = vcmp.lt.s32.totalorder %v1146, 0
          %vm1149 = vmand %vm1148, %vm1147
          %v1150 = vadd.s32 %v1146, 2
          %v1151 = vsel %vm1149, %v1150, %v1146
          %vm1152 = vcmp.eq.s32.totalorder %v1138, %v1151
          %vm1153 = vcmp.eq.s32.totalorder %v1139, %v1151
          %v1154 = vmul.f32 %v467, 0.35355338
          %v1155 = vmul.f32 %v472, 0.35355338
          %v1156 = vld [vmem:[%s300 + $0x7] sm:$0x1]
          %v1157 = vld [vmem:[%s300 + $0x8] sm:$0x1]
          %vm1158 = vcmask 64512
          %v1160 = vsel %vm1158, %v1154, 0
          %v1163 = vsel %vm1158, %v1155, 0
          %v1166 = vsel %vm1158, %v1098, 0
          %v1169 = vsel %vm1158, %v1099, 0
          %1171 = vmatprep.subr.mxu0 0.0
          %1172 = vmatpush1.xpose.msra.mxu0 0.0
          %1173 = vmatprep.subr.mxu0 0.0
          %1174 = vmatpush1.xpose.msra.mxu0 0.0
          %1175 = vmatprep.subr.mxu0 0.0
          %1176 = vmatpush1.xpose.msra.mxu0 0.0
          %1177 = vmatprep.subr.mxu0 0.0
          %1178 = vmatpush1.xpose.msra.mxu0 0.0
          %1179 = vmatprep.subr.mxu0 0.0
          %1180 = vmatpush1.xpose.msra.mxu0 0.0
          %1181 = vmatprep.subr.mxu0 0.0
          %1182 = vmatpush1.xpose.msra.mxu0 0.0
          %1183 = vmatprep.subr.mxu0 0.0
          %1184 = vmatpush1.xpose.msra.mxu0 0.0
          %1185 = vmatprep.subr.mxu0 0.0
          %1186 = vmatpush1.xpose.msra.mxu0 0.0
          %1187 = vmatprep.subr.mxu0 0.0
          %1188 = vmatpush1.xpose.msra.mxu0 0.0
          %1189 = vmatprep.subr.mxu0 0.0
          %1190 = vmatpush1.xpose.msra.mxu0 0.0
          %1191 = vmatprep.subr.mxu0 0.0
          %1192 = vmatpush1.xpose.msra.mxu0 0.0
          %1193 = vmatprep.subr.mxu0 0.0
          %1194 = vmatpush1.xpose.msra.mxu0 0.0
          %1195 = vmatprep.subr.mxu0 0.0
          %1196 = vmatpush1.xpose.msra.mxu0 0.0
          %1197 = vmatprep.subr.mxu0 0.0
          %1198 = vmatpush1.xpose.msra.mxu0 0.0
          %1199 = vmatprep.subr.mxu0 0.0
          %1200 = vmatpush1.xpose.msra.mxu0 %v1169
          %1201 = vmatprep.subr.mxu0 0.0
          %1202 = vmatpush1.xpose.msra.mxu0 %v1166
          %1203 = vmatprep.subr.mxu0 0.0
          %1204 = vmatpush2.xpose.msra.mxu0 0.0
          %1205 = vmatprep.subr.mxu0 0.0
          %1206 = vmatpush2.xpose.msra.mxu0 0.0
          %1207 = vmatprep.subr.mxu0 0.0
          %1208 = vmatpush2.xpose.msra.mxu0 0.0
          %1209 = vmatprep.subr.mxu0 0.0
          %1210 = vmatpush2.xpose.msra.mxu0 0.0
          %1211 = vmatprep.subr.mxu0 0.0
          %1212 = vmatpush2.xpose.msra.mxu0 0.0
          %1213 = vmatprep.subr.mxu0 0.0
          %1214 = vmatpush2.xpose.msra.mxu0 0.0
          %1215 = vmatprep.subr.mxu0 0.0
          %1216 = vmatpush2.xpose.msra.mxu0 0.0
          %1217 = vmatprep.subr.mxu0 0.0
          %1218 = vmatpush2.xpose.msra.mxu0 0.0
          %1219 = vmatprep.subr.mxu0 0.0
          %1220 = vmatpush2.xpose.msra.mxu0 0.0
          %1221 = vmatprep.subr.mxu0 0.0
          %1222 = vmatpush2.xpose.msra.mxu0 0.0
          %1223 = vmatprep.subr.mxu0 0.0
          %1224 = vmatpush2.xpose.msra.mxu0 0.0
          %1225 = vmatprep.subr.mxu0 0.0
          %1226 = vmatpush2.xpose.msra.mxu0 0.0
          %1227 = vmatprep.subr.mxu0 0.0
          %1228 = vmatpush2.xpose.msra.mxu0 0.0
          %1229 = vmatprep.subr.mxu0 0.0
          %1230 = vmatpush2.xpose.msra.mxu0 0.0
          %1231 = vmatprep.subr.mxu0 0.0
          %1232 = vmatpush2.xpose.msra.mxu0 0.0
          %1233 = vmatprep.subr.mxu0 0.0
          %1234 = vmatpush2.xpose.msra.mxu0 0.0
          %1235 = vmatprep.mubr.f32.mxu0 0.0
          %1236 = vmatmul.mubr.f32.gmra.mxu0 %v1160
          %v1237 = vpop.f32.mrf.mxu0
          %v1238 = vadd.f32 0.0, %v1237
          %v1239 = vpop.f32.mrf.mxu0
          %1240 = vmatprep.mubr.f32.mxu0 0.0
          %1241 = vmatmul.mubr.f32.gmra.mxu0 %v1163
          %v1242 = vpop.f32.mrf.mxu0
          %v1243 = vadd.f32 0.0, %v1242
          %v1244 = vpop.f32.mrf.mxu0
          %1245 = vdwg.mxu0
          %v1246 = vsel %vm1152, %v1238, -1e+30
          %v1247 = vsel %vm1153, %v1243, -1e+30
          %v1248 = vlaneseq
          %v1249 = vshrl.u32 %v1248, 7
          %v1250 = vsub.s32 0, %v1249
          %v1251 = vrot.slane %v1156, %v1250
          %v1252 = vmul.f32 %v1154, %v1251
          %v1253 = vmul.f32 %v1155, %v1251
          %v1254 = vsel %vm1158, %v1252, 0.0
          %1255 = vadd.xlane.f32.xlu0 %v1254
          %v1256 = vpop.xlane.xlu0 %1255
          %v1257 = vsel %vm1158, %v1253, 0.0
          %1258 = vadd.xlane.f32.xlu0 %v1257
          %v1259 = vpop.xlane.xlu0 %1258
          %vm1260 = vcmask 130048
          %v1261 = vsel %vm1260, %v1246, -inf
          %1262 = vmax.xlane.f32.xlu0 %v1261
          %v1263 = vpop.xlane.xlu0 %1262
          %v1264 = vsel %vm1260, %v1247, -inf
          %1265 = vmax.xlane.f32.xlu0 %v1264
          %v1266 = vpop.xlane.xlu0 %1265
          %v1267 = vmax.f32 %v1263, %v1256
          %v1268 = vmax.f32 %v1266, %v1259
          %v1269 = vsub.f32 %v1246, %v1267
          %v1270 = vsub.f32 %v1247, %v1268
          %v1271 = vmul.f32 %v1269, 1.442695
          %v1272 = vpow.pop %v1271
          %v1273 = vmul.f32 %v1270, 1.442695
          %v1274 = vpow.pop %v1273
          %v1275 = vsub.f32 %v1256, %v1267
          %v1276 = vsub.f32 %v1259, %v1268
          %v1277 = vmul.f32 %v1275, 1.442695
          %v1278 = vpow.pop %v1277
          %v1279 = vmul.f32 %v1276, 1.442695
          %v1280 = vpow.pop %v1279
          %v1281 = vsel %vm1260, %v1272, 0.0
          %1282 = vadd.xlane.f32.xlu0 %v1281
          %v1283 = vpop.xlane.xlu0 %1282
          %v1284 = vsel %vm1260, %v1274, 0.0
          %1285 = vadd.xlane.f32.xlu0 %v1284
          %v1286 = vpop.xlane.xlu0 %1285
          %v1287 = vadd.f32 %v1283, %v1278
          %v1288 = vadd.f32 %v1286, %v1280
          %v1289 = vlaneseq
          %v1290 = vshrl.u32 %v1289, 7
          %v1291 = vsub.s32 0, %v1290
          %v1292 = vrot.slane %v1157, %v1291
          %v1293 = vmul.f32 %v1278, %v1292
          %v1294 = vmul.f32 %v1280, %v1292
          %1297 = vrot.lane.b32.xlu0 %v1109, 96
          %v1298 = vpop.permute.xlu0 %1297
          %1299 = vrot.lane.b32.xlu0 %v1110, 96
          %v1300 = vpop.permute.xlu0 %1299
          %v1304 = vsel %vm1260, %v1272, 0
          %v1307 = vsel %vm1260, %v1274, 0
          %1309 = vmatprep.subr.mxu0 0.0
          %1310 = vmatpush1.msra.mxu0 0.0
          %1311 = vmatprep.subr.mxu0 0.0
          %1312 = vmatpush1.msra.mxu0 0.0
          %1313 = vmatprep.subr.mxu0 0.0
          %1314 = vmatpush1.msra.mxu0 0.0
          %1315 = vmatprep.subr.mxu0 0.0
          %1316 = vmatpush1.msra.mxu0 0.0
          %1317 = vmatprep.subr.mxu0 0.0
          %1318 = vmatpush1.msra.mxu0 0.0
          %1319 = vmatprep.subr.mxu0 0.0
          %1320 = vmatpush1.msra.mxu0 0.0
          %1321 = vmatprep.subr.mxu0 0.0
          %1322 = vmatpush1.msra.mxu0 0.0
          %1323 = vmatprep.subr.mxu0 0.0
          %1324 = vmatpush1.msra.mxu0 0.0
          %1325 = vmatprep.subr.mxu0 0.0
          %1326 = vmatpush1.msra.mxu0 0.0
          %1327 = vmatprep.subr.mxu0 0.0
          %1328 = vmatpush1.msra.mxu0 0.0
          %1329 = vmatprep.subr.mxu0 0.0
          %1330 = vmatpush1.msra.mxu0 0.0
          %1331 = vmatprep.subr.mxu0 0.0
          %1332 = vmatpush1.msra.mxu0 0.0
          %1333 = vmatprep.subr.mxu0 0.0
          %1334 = vmatpush1.msra.mxu0 0.0
          %1335 = vmatprep.subr.mxu0 0.0
          %1336 = vmatpush1.msra.mxu0 0.0
          %1337 = vmatprep.subr.mxu0 0.0
          %1338 = vmatpush1.msra.mxu0 %v1300
          %1339 = vmatprep.subr.mxu0 0.0
          %1340 = vmatpush1.msra.mxu0 %v1298
          %1341 = vmatprep.subr.mxu0 0.0
          %1342 = vmatpush2.msra.mxu0 0.0
          %1343 = vmatprep.subr.mxu0 0.0
          %1344 = vmatpush2.msra.mxu0 0.0
          %1345 = vmatprep.subr.mxu0 0.0
          %1346 = vmatpush2.msra.mxu0 0.0
          %1347 = vmatprep.subr.mxu0 0.0
          %1348 = vmatpush2.msra.mxu0 0.0
          %1349 = vmatprep.subr.mxu0 0.0
          %1350 = vmatpush2.msra.mxu0 0.0
          %1351 = vmatprep.subr.mxu0 0.0
          %1352 = vmatpush2.msra.mxu0 0.0
          %1353 = vmatprep.subr.mxu0 0.0
          %1354 = vmatpush2.msra.mxu0 0.0
          %1355 = vmatprep.subr.mxu0 0.0
          %1356 = vmatpush2.msra.mxu0 0.0
          %1357 = vmatprep.subr.mxu0 0.0
          %1358 = vmatpush2.msra.mxu0 0.0
          %1359 = vmatprep.subr.mxu0 0.0
          %1360 = vmatpush2.msra.mxu0 0.0
          %1361 = vmatprep.subr.mxu0 0.0
          %1362 = vmatpush2.msra.mxu0 0.0
          %1363 = vmatprep.subr.mxu0 0.0
          %1364 = vmatpush2.msra.mxu0 0.0
          %1365 = vmatprep.subr.mxu0 0.0
          %1366 = vmatpush2.msra.mxu0 0.0
          %1367 = vmatprep.subr.mxu0 0.0
          %1368 = vmatpush2.msra.mxu0 0.0
          %1369 = vmatprep.subr.mxu0 0.0
          %1370 = vmatpush2.msra.mxu0 0.0
          %1371 = vmatprep.subr.mxu0 0.0
          %1372 = vmatpush2.msra.mxu0 0.0
          %1373 = vmatprep.mubr.f32.mxu0 0.0
          %1374 = vmatmul.mubr.f32.gmra.mxu0 %v1304
          %v1375 = vpop.f32.mrf.mxu0
          %v1376 = vadd.f32 %v1293, %v1375
          %v1377 = vpop.f32.mrf.mxu0
          %1378 = vmatprep.mubr.f32.mxu0 0.0
          %1379 = vmatmul.mubr.f32.gmra.mxu0 %v1307
          %v1380 = vpop.f32.mrf.mxu0
          %v1381 = vadd.f32 %v1294, %v1380
          %v1382 = vpop.f32.mrf.mxu0
          %1383 = vdwg.mxu0
          %v1384 = vrcp.pop %v1287
          %v1385 = vrcp.pop %v1288
          %v1386 = vmul.f32 %v1376, %v1384
          %v1387 = vmul.f32 %v1381, %v1385
          %1388 = vst.msk [vmem:[#allocation2] sm:$0xff] %vm1158, %v1386
          %1389 = vst.msk [vmem:[#allocation2 + $0x8] sm:$0xff] %vm1158, %v1387
          %v1390 = vld [vmem:[%s300 + $0x7] sm:$0x1]
          %v1391 = vld [vmem:[%s300 + $0x8] sm:$0x1]
          %1392 = vrot.lane.b32.xlu0 %v1154, 120
          %v1393 = vpop.permute.xlu0 %1392
          %1394 = vrot.lane.b32.xlu0 %v1155, 120
          %v1395 = vpop.permute.xlu0 %1394
          %1396 = vrot.lane.b32.xlu0 %v1098, 120
          %v1397 = vpop.permute.xlu0 %1396
          %1398 = vrot.lane.b32.xlu0 %v1099, 120
          %v1399 = vpop.permute.xlu0 %1398
          %v1400 = vsel %vm1158, %v1393, 0
          %v1402 = vsel %vm1158, %v1395, 0
          %v1404 = vsel %vm1158, %v1397, 0
          %v1406 = vsel %vm1158, %v1399, 0
          %1408 = vmatprep.subr.mxu0 0.0
          %1409 = vmatpush1.xpose.msra.mxu0 0.0
          %1410 = vmatprep.subr.mxu0 0.0
          %1411 = vmatpush1.xpose.msra.mxu0 0.0
          %1412 = vmatprep.subr.mxu0 0.0
          %1413 = vmatpush1.xpose.msra.mxu0 0.0
          %1414 = vmatprep.subr.mxu0 0.0
          %1415 = vmatpush1.xpose.msra.mxu0 0.0
          %1416 = vmatprep.subr.mxu0 0.0
          %1417 = vmatpush1.xpose.msra.mxu0 0.0
          %1418 = vmatprep.subr.mxu0 0.0
          %1419 = vmatpush1.xpose.msra.mxu0 0.0
          %1420 = vmatprep.subr.mxu0 0.0
          %1421 = vmatpush1.xpose.msra.mxu0 0.0
          %1422 = vmatprep.subr.mxu0 0.0
          %1423 = vmatpush1.xpose.msra.mxu0 0.0
          %1424 = vmatprep.subr.mxu0 0.0
          %1425 = vmatpush1.xpose.msra.mxu0 0.0
          %1426 = vmatprep.subr.mxu0 0.0
          %1427 = vmatpush1.xpose.msra.mxu0 0.0
          %1428 = vmatprep.subr.mxu0 0.0
          %1429 = vmatpush1.xpose.msra.mxu0 0.0
          %1430 = vmatprep.subr.mxu0 0.0
          %1431 = vmatpush1.xpose.msra.mxu0 0.0
          %1432 = vmatprep.subr.mxu0 0.0
          %1433 = vmatpush1.xpose.msra.mxu0 0.0
          %1434 = vmatprep.subr.mxu0 0.0
          %1435 = vmatpush1.xpose.msra.mxu0 0.0
          %1436 = vmatprep.subr.mxu0 0.0
          %1437 = vmatpush1.xpose.msra.mxu0 %v1406
          %1438 = vmatprep.subr.mxu0 0.0
          %1439 = vmatpush1.xpose.msra.mxu0 %v1404
          %1440 = vmatprep.subr.mxu0 0.0
          %1441 = vmatpush2.xpose.msra.mxu0 0.0
          %1442 = vmatprep.subr.mxu0 0.0
          %1443 = vmatpush2.xpose.msra.mxu0 0.0
          %1444 = vmatprep.subr.mxu0 0.0
          %1445 = vmatpush2.xpose.msra.mxu0 0.0
          %1446 = vmatprep.subr.mxu0 0.0
          %1447 = vmatpush2.xpose.msra.mxu0 0.0
          %1448 = vmatprep.subr.mxu0 0.0
          %1449 = vmatpush2.xpose.msra.mxu0 0.0
          %1450 = vmatprep.subr.mxu0 0.0
          %1451 = vmatpush2.xpose.msra.mxu0 0.0
          %1452 = vmatprep.subr.mxu0 0.0
          %1453 = vmatpush2.xpose.msra.mxu0 0.0
          %1454 = vmatprep.subr.mxu0 0.0
          %1455 = vmatpush2.xpose.msra.mxu0 0.0
          %1456 = vmatprep.subr.mxu0 0.0
          %1457 = vmatpush2.xpose.msra.mxu0 0.0
          %1458 = vmatprep.subr.mxu0 0.0
          %1459 = vmatpush2.xpose.msra.mxu0 0.0
          %1460 = vmatprep.subr.mxu0 0.0
          %1461 = vmatpush2.xpose.msra.mxu0 0.0
          %1462 = vmatprep.subr.mxu0 0.0
          %1463 = vmatpush2.xpose.msra.mxu0 0.0
          %1464 = vmatprep.subr.mxu0 0.0
          %1465 = vmatpush2.xpose.msra.mxu0 0.0
          %1466 = vmatprep.subr.mxu0 0.0
          %1467 = vmatpush2.xpose.msra.mxu0 0.0
          %1468 = vmatprep.subr.mxu0 0.0
          %1469 = vmatpush2.xpose.msra.mxu0 0.0
          %1470 = vmatprep.subr.mxu0 0.0
          %1471 = vmatpush2.xpose.msra.mxu0 0.0
          %1472 = vmatprep.mubr.f32.mxu0 0.0
          %1473 = vmatmul.mubr.f32.gmra.mxu0 %v1400
          %v1474 = vpop.f32.mrf.mxu0
          %v1475 = vadd.f32 0.0, %v1474
          %v1476 = vpop.f32.mrf.mxu0
          %1477 = vmatprep.mubr.f32.mxu0 0.0
          %1478 = vmatmul.mubr.f32.gmra.mxu0 %v1402
          %v1479 = vpop.f32.mrf.mxu0
          %v1480 = vadd.f32 0.0, %v1479
          %v1481 = vpop.f32.mrf.mxu0
          %1482 = vdwg.mxu0
          %v1483 = vsel %vm1152, %v1475, -1e+30
          %v1484 = vsel %vm1153, %v1480, -1e+30
          %v1485 = vlaneseq
          %v1486 = vshrl.u32 %v1485, 7
          %v1487 = vsub.s32 0, %v1486
          %v1488 = vrot.slane %v1390, %v1487
          %v1489 = vmul.f32 %v1154, %v1488
          %v1490 = vmul.f32 %v1155, %v1488
          %1493 = vrot.lane.b32.xlu0 %v1489, 120
          %v1494 = vpop.permute.xlu0 %1493
          %1495 = vrot.lane.b32.xlu0 %v1490, 120
          %v1496 = vpop.permute.xlu0 %1495
          %v1499 = vsel %vm1158, %v1494, 0.0
          %1500 = vadd.xlane.f32.xlu0 %v1499
          %v1501 = vpop.xlane.xlu0 %1500
          %v1502 = vsel %vm1158, %v1496, 0.0
          %1503 = vadd.xlane.f32.xlu0 %v1502
          %v1504 = vpop.xlane.xlu0 %1503
          %v1505 = vsel %vm1260, %v1483, -inf
          %1506 = vmax.xlane.f32.xlu0 %v1505
          %v1507 = vpop.xlane.xlu0 %1506
          %v1508 = vsel %vm1260, %v1484, -inf
          %1509 = vmax.xlane.f32.xlu0 %v1508
          %v1510 = vpop.xlane.xlu0 %1509
          %v1511 = vmax.f32 %v1507, %v1501
          %v1512 = vmax.f32 %v1510, %v1504
          %v1513 = vsub.f32 %v1483, %v1511
          %v1514 = vsub.f32 %v1484, %v1512
          %v1515 = vmul.f32 %v1513, 1.442695
          %v1516 = vpow.pop %v1515
          %v1517 = vmul.f32 %v1514, 1.442695
          %v1518 = vpow.pop %v1517
          %v1519 = vsub.f32 %v1501, %v1511
          %v1520 = vsub.f32 %v1504, %v1512
          %v1521 = vmul.f32 %v1519, 1.442695
          %v1522 = vpow.pop %v1521
          %v1523 = vmul.f32 %v1520, 1.442695
          %v1524 = vpow.pop %v1523
          %v1525 = vsel %vm1260, %v1516, 0.0
          %1526 = vadd.xlane.f32.xlu0 %v1525
          %v1527 = vpop.xlane.xlu0 %1526
          %v1528 = vsel %vm1260, %v1518, 0.0
          %1529 = vadd.xlane.f32.xlu0 %v1528
          %v1530 = vpop.xlane.xlu0 %1529
          %v1531 = vadd.f32 %v1527, %v1522
          %v1532 = vadd.f32 %v1530, %v1524
          %v1533 = vlaneseq
          %v1534 = vshrl.u32 %v1533, 7
          %v1535 = vsub.s32 0, %v1534
          %v1536 = vrot.slane %v1391, %v1535
          %v1537 = vmul.f32 %v1522, %v1536
          %v1538 = vmul.f32 %v1524, %v1536
          %1539 = vrot.lane.b32.xlu0 %v1109, 88
          %v1540 = vpop.permute.xlu0 %1539
          %1541 = vrot.lane.b32.xlu0 %v1110, 88
          %v1542 = vpop.permute.xlu0 %1541
          %1547 = vrot.lane.b32.xlu0 %v1537, 120
          %v1548 = vpop.permute.xlu0 %1547
          %1549 = vrot.lane.b32.xlu0 %v1538, 120
          %v1550 = vpop.permute.xlu0 %1549
          %v1554 = vsel %vm1260, %v1516, 0
          %v1557 = vsel %vm1260, %v1518, 0
          %1559 = vmatprep.subr.mxu0 0.0
          %1560 = vmatpush1.msra.mxu0 0.0
          %1561 = vmatprep.subr.mxu0 0.0
          %1562 = vmatpush1.msra.mxu0 0.0
          %1563 = vmatprep.subr.mxu0 0.0
          %1564 = vmatpush1.msra.mxu0 0.0
          %1565 = vmatprep.subr.mxu0 0.0
          %1566 = vmatpush1.msra.mxu0 0.0
          %1567 = vmatprep.subr.mxu0 0.0
          %1568 = vmatpush1.msra.mxu0 0.0
          %1569 = vmatprep.subr.mxu0 0.0
          %1570 = vmatpush1.msra.mxu0 0.0
          %1571 = vmatprep.subr.mxu0 0.0
          %1572 = vmatpush1.msra.mxu0 0.0
          %1573 = vmatprep.subr.mxu0 0.0
          %1574 = vmatpush1.msra.mxu0 0.0
          %1575 = vmatprep.subr.mxu0 0.0
          %1576 = vmatpush1.msra.mxu0 0.0
          %1577 = vmatprep.subr.mxu0 0.0
          %1578 = vmatpush1.msra.mxu0 0.0
          %1579 = vmatprep.subr.mxu0 0.0
          %1580 = vmatpush1.msra.mxu0 0.0
          %1581 = vmatprep.subr.mxu0 0.0
          %1582 = vmatpush1.msra.mxu0 0.0
          %1583 = vmatprep.subr.mxu0 0.0
          %1584 = vmatpush1.msra.mxu0 0.0
          %1585 = vmatprep.subr.mxu0 0.0
          %1586 = vmatpush1.msra.mxu0 0.0
          %1587 = vmatprep.subr.mxu0 0.0
          %1588 = vmatpush1.msra.mxu0 %v1542
          %1589 = vmatprep.subr.mxu0 0.0
          %1590 = vmatpush1.msra.mxu0 %v1540
          %1591 = vmatprep.subr.mxu0 0.0
          %1592 = vmatpush2.msra.mxu0 0.0
          %1593 = vmatprep.subr.mxu0 0.0
          %1594 = vmatpush2.msra.mxu0 0.0
          %1595 = vmatprep.subr.mxu0 0.0
          %1596 = vmatpush2.msra.mxu0 0.0
          %1597 = vmatprep.subr.mxu0 0.0
          %1598 = vmatpush2.msra.mxu0 0.0
          %1599 = vmatprep.subr.mxu0 0.0
          %1600 = vmatpush2.msra.mxu0 0.0
          %1601 = vmatprep.subr.mxu0 0.0
          %1602 = vmatpush2.msra.mxu0 0.0
          %1603 = vmatprep.subr.mxu0 0.0
          %1604 = vmatpush2.msra.mxu0 0.0
          %1605 = vmatprep.subr.mxu0 0.0
          %1606 = vmatpush2.msra.mxu0 0.0
          %1607 = vmatprep.subr.mxu0 0.0
          %1608 = vmatpush2.msra.mxu0 0.0
          %1609 = vmatprep.subr.mxu0 0.0
          %1610 = vmatpush2.msra.mxu0 0.0
          %1611 = vmatprep.subr.mxu0 0.0
          %1612 = vmatpush2.msra.mxu0 0.0
          %1613 = vmatprep.subr.mxu0 0.0
          %1614 = vmatpush2.msra.mxu0 0.0
          %1615 = vmatprep.subr.mxu0 0.0
          %1616 = vmatpush2.msra.mxu0 0.0
          %1617 = vmatprep.subr.mxu0 0.0
          %1618 = vmatpush2.msra.mxu0 0.0
          %1619 = vmatprep.subr.mxu0 0.0
          %1620 = vmatpush2.msra.mxu0 0.0
          %1621 = vmatprep.subr.mxu0 0.0
          %1622 = vmatpush2.msra.mxu0 0.0
          %1623 = vmatprep.mubr.f32.mxu0 0.0
          %1624 = vmatmul.mubr.f32.gmra.mxu0 %v1554
          %v1625 = vpop.f32.mrf.mxu0
          %v1626 = vadd.f32 %v1548, %v1625
          %v1627 = vpop.f32.mrf.mxu0
          %1628 = vmatprep.mubr.f32.mxu0 0.0
          %1629 = vmatmul.mubr.f32.gmra.mxu0 %v1557
          %v1630 = vpop.f32.mrf.mxu0
          %v1631 = vadd.f32 %v1550, %v1630
          %v1632 = vpop.f32.mrf.mxu0
          %1633 = vdwg.mxu0
          %v1634 = vrcp.pop %v1531
          %v1635 = vrcp.pop %v1532
          %v1636 = vmul.f32 %v1626, %v1634
          %v1637 = vmul.f32 %v1631, %v1635
          %1640 = vrot.lane.b32.xlu0 %v1636, 8
          %v1641 = vpop.permute.xlu0 %1640
          %1642 = vrot.lane.b32.xlu0 %v1637, 8
          %v1643 = vpop.permute.xlu0 %1642
          %vm1646 = vcmask 130112
          %1647 = vst.msk [vmem:[#allocation2] sm:$0xff] %vm1646, %v1641
          %1648 = vst.msk [vmem:[#allocation2 + $0x8] sm:$0xff] %vm1646, %v1643
          %v1649 = vld [vmem:[%s300 + $0x7] sm:$0x1]
          %v1650 = vld [vmem:[%s300 + $0x8] sm:$0x1]
          %1651 = vrot.lane.b32.xlu0 %v1154, 112
          %v1652 = vpop.permute.xlu0 %1651
          %1653 = vrot.lane.b32.xlu0 %v1155, 112
          %v1654 = vpop.permute.xlu0 %1653
          %1655 = vrot.lane.b32.xlu0 %v1098, 112
          %v1656 = vpop.permute.xlu0 %1655
          %1657 = vrot.lane.b32.xlu0 %v1099, 112
          %v1658 = vpop.permute.xlu0 %1657
          %v1659 = vsel %vm1158, %v1652, 0
          %v1661 = vsel %vm1158, %v1654, 0
          %v1663 = vsel %vm1158, %v1656, 0
          %v1665 = vsel %vm1158, %v1658, 0
          %1667 = vmatprep.subr.mxu0 0.0
          %1668 = vmatpush1.xpose.msra.mxu0 0.0
          %1669 = vmatprep.subr.mxu0 0.0
          %1670 = vmatpush1.xpose.msra.mxu0 0.0
          %1671 = vmatprep.subr.mxu0 0.0
          %1672 = vmatpush1.xpose.msra.mxu0 0.0
          %1673 = vmatprep.subr.mxu0 0.0
          %1674 = vmatpush1.xpose.msra.mxu0 0.0
          %1675 = vmatprep.subr.mxu0 0.0
          %1676 = vmatpush1.xpose.msra.mxu0 0.0
          %1677 = vmatprep.subr.mxu0 0.0
          %1678 = vmatpush1.xpose.msra.mxu0 0.0
          %1679 = vmatprep.subr.mxu0 0.0
          %1680 = vmatpush1.xpose.msra.mxu0 0.0
          %1681 = vmatprep.subr.mxu0 0.0
          %1682 = vmatpush1.xpose.msra.mxu0 0.0
          %1683 = vmatprep.subr.mxu0 0.0
          %1684 = vmatpush1.xpose.msra.mxu0 0.0
          %1685 = vmatprep.subr.mxu0 0.0
          %1686 = vmatpush1.xpose.msra.mxu0 0.0
          %1687 = vmatprep.subr.mxu0 0.0
          %1688 = vmatpush1.xpose.msra.mxu0 0.0
          %1689 = vmatprep.subr.mxu0 0.0
          %1690 = vmatpush1.xpose.msra.mxu0 0.0
          %1691 = vmatprep.subr.mxu0 0.0
          %1692 = vmatpush1.xpose.msra.mxu0 0.0
          %1693 = vmatprep.subr.mxu0 0.0
          %1694 = vmatpush1.xpose.msra.mxu0 0.0
          %1695 = vmatprep.subr.mxu0 0.0
          %1696 = vmatpush1.xpose.msra.mxu0 %v1665
          %1697 = vmatprep.subr.mxu0 0.0
          %1698 = vmatpush1.xpose.msra.mxu0 %v1663
          %1699 = vmatprep.subr.mxu0 0.0
          %1700 = vmatpush2.xpose.msra.mxu0 0.0
          %1701 = vmatprep.subr.mxu0 0.0
          %1702 = vmatpush2.xpose.msra.mxu0 0.0
          %1703 = vmatprep.subr.mxu0 0.0
          %1704 = vmatpush2.xpose.msra.mxu0 0.0
          %1705 = vmatprep.subr.mxu0 0.0
          %1706 = vmatpush2.xpose.msra.mxu0 0.0
          %1707 = vmatprep.subr.mxu0 0.0
          %1708 = vmatpush2.xpose.msra.mxu0 0.0
          %1709 = vmatprep.subr.mxu0 0.0
          %1710 = vmatpush2.xpose.msra.mxu0 0.0
          %1711 = vmatprep.subr.mxu0 0.0
          %1712 = vmatpush2.xpose.msra.mxu0 0.0
          %1713 = vmatprep.subr.mxu0 0.0
          %1714 = vmatpush2.xpose.msra.mxu0 0.0
          %1715 = vmatprep.subr.mxu0 0.0
          %1716 = vmatpush2.xpose.msra.mxu0 0.0
          %1717 = vmatprep.subr.mxu0 0.0
          %1718 = vmatpush2.xpose.msra.mxu0 0.0
          %1719 = vmatprep.subr.mxu0 0.0
          %1720 = vmatpush2.xpose.msra.mxu0 0.0
          %1721 = vmatprep.subr.mxu0 0.0
          %1722 = vmatpush2.xpose.msra.mxu0 0.0
          %1723 = vmatprep.subr.mxu0 0.0
          %1724 = vmatpush2.xpose.msra.mxu0 0.0
          %1725 = vmatprep.subr.mxu0 0.0
          %1726 = vmatpush2.xpose.msra.mxu0 0.0
          %1727 = vmatprep.subr.mxu0 0.0
          %1728 = vmatpush2.xpose.msra.mxu0 0.0
          %1729 = vmatprep.subr.mxu0 0.0
          %1730 = vmatpush2.xpose.msra.mxu0 0.0
          %1731 = vmatprep.mubr.f32.mxu0 0.0
          %1732 = vmatmul.mubr.f32.gmra.mxu0 %v1659
          %v1733 = vpop.f32.mrf.mxu0
          %v1734 = vadd.f32 0.0, %v1733
          %v1735 = vpop.f32.mrf.mxu0
          %1736 = vmatprep.mubr.f32.mxu0 0.0
          %1737 = vmatmul.mubr.f32.gmra.mxu0 %v1661
          %v1738 = vpop.f32.mrf.mxu0
          %v1739 = vadd.f32 0.0, %v1738
          %v1740 = vpop.f32.mrf.mxu0
          %1741 = vdwg.mxu0
          %v1742 = vsel %vm1152, %v1734, -1e+30
          %v1743 = vsel %vm1153, %v1739, -1e+30
          %v1744 = vlaneseq
          %v1745 = vshrl.u32 %v1744, 7
          %v1746 = vsub.s32 0, %v1745
          %v1747 = vrot.slane %v1649, %v1746
          %v1748 = vmul.f32 %v1154, %v1747
          %v1749 = vmul.f32 %v1155, %v1747
          %1752 = vrot.lane.b32.xlu0 %v1748, 112
          %v1753 = vpop.permute.xlu0 %1752
          %1754 = vrot.lane.b32.xlu0 %v1749, 112
          %v1755 = vpop.permute.xlu0 %1754
          %v1758 = vsel %vm1158, %v1753, 0.0
          %1759 = vadd.xlane.f32.xlu0 %v1758
          %v1760 = vpop.xlane.xlu0 %1759
          %v1761 = vsel %vm1158, %v1755, 0.0
          %1762 = vadd.xlane.f32.xlu0 %v1761
          %v1763 = vpop.xlane.xlu0 %1762
          %v1764 = vsel %vm1260, %v1742, -inf
          %1765 = vmax.xlane.f32.xlu0 %v1764
          %v1766 = vpop.xlane.xlu0 %1765
          %v1767 = vsel %vm1260, %v1743, -inf
          %1768 = vmax.xlane.f32.xlu0 %v1767
          %v1769 = vpop.xlane.xlu0 %1768
          %v1770 = vmax.f32 %v1766, %v1760
          %v1771 = vmax.f32 %v1769, %v1763
          %v1772 = vsub.f32 %v1742, %v1770
          %v1773 = vsub.f32 %v1743, %v1771
          %v1774 = vmul.f32 %v1772, 1.442695
          %v1775 = vpow.pop %v1774
          %v1776 = vmul.f32 %v1773, 1.442695
          %v1777 = vpow.pop %v1776
          %v1778 = vsub.f32 %v1760, %v1770
          %v1779 = vsub.f32 %v1763, %v1771
          %v1780 = vmul.f32 %v1778, 1.442695
          %v1781 = vpow.pop %v1780
          %v1782 = vmul.f32 %v1779, 1.442695
          %v1783 = vpow.pop %v1782
          %v1784 = vsel %vm1260, %v1775, 0.0
          %1785 = vadd.xlane.f32.xlu0 %v1784
          %v1786 = vpop.xlane.xlu0 %1785
          %v1787 = vsel %vm1260, %v1777, 0.0
          %1788 = vadd.xlane.f32.xlu0 %v1787
          %v1789 = vpop.xlane.xlu0 %1788
          %v1790 = vadd.f32 %v1786, %v1781
          %v1791 = vadd.f32 %v1789, %v1783
          %v1792 = vlaneseq
          %v1793 = vshrl.u32 %v1792, 7
          %v1794 = vsub.s32 0, %v1793
          %v1795 = vrot.slane %v1650, %v1794
          %v1796 = vmul.f32 %v1781, %v1795
          %v1797 = vmul.f32 %v1783, %v1795
          %1798 = vrot.lane.b32.xlu0 %v1109, 80
          %v1799 = vpop.permute.xlu0 %1798
          %1800 = vrot.lane.b32.xlu0 %v1110, 80
          %v1801 = vpop.permute.xlu0 %1800
          %1806 = vrot.lane.b32.xlu0 %v1796, 112
          %v1807 = vpop.permute.xlu0 %1806
          %1808 = vrot.lane.b32.xlu0 %v1797, 112
          %v1809 = vpop.permute.xlu0 %1808
          %v1813 = vsel %vm1260, %v1775, 0
          %v1816 = vsel %vm1260, %v1777, 0
          %1818 = vmatprep.subr.mxu0 0.0
          %1819 = vmatpush1.msra.mxu0 0.0
          %1820 = vmatprep.subr.mxu0 0.0
          %1821 = vmatpush1.msra.mxu0 0.0
          %1822 = vmatprep.subr.mxu0 0.0
          %1823 = vmatpush1.msra.mxu0 0.0
          %1824 = vmatprep.subr.mxu0 0.0
          %1825 = vmatpush1.msra.mxu0 0.0
          %1826 = vmatprep.subr.mxu0 0.0
          %1827 = vmatpush1.msra.mxu0 0.0
          %1828 = vmatprep.subr.mxu0 0.0
          %1829 = vmatpush1.msra.mxu0 0.0
          %1830 = vmatprep.subr.mxu0 0.0
          %1831 = vmatpush1.msra.mxu0 0.0
          %1832 = vmatprep.subr.mxu0 0.0
          %1833 = vmatpush1.msra.mxu0 0.0
          %1834 = vmatprep.subr.mxu0 0.0
          %1835 = vmatpush1.msra.mxu0 0.0
          %1836 = vmatprep.subr.mxu0 0.0
          %1837 = vmatpush1.msra.mxu0 0.0
          %1838 = vmatprep.subr.mxu0 0.0
          %1839 = vmatpush1.msra.mxu0 0.0
          %1840 = vmatprep.subr.mxu0 0.0
          %1841 = vmatpush1.msra.mxu0 0.0
          %1842 = vmatprep.subr.mxu0 0.0
          %1843 = vmatpush1.msra.mxu0 0.0
          %1844 = vmatprep.subr.mxu0 0.0
          %1845 = vmatpush1.msra.mxu0 0.0
          %1846 = vmatprep.subr.mxu0 0.0
          %1847 = vmatpush1.msra.mxu0 %v1801
          %1848 = vmatprep.subr.mxu0 0.0
          %1849 = vmatpush1.msra.mxu0 %v1799
          %1850 = vmatprep.subr.mxu0 0.0
          %1851 = vmatpush2.msra.mxu0 0.0
          %1852 = vmatprep.subr.mxu0 0.0
          %1853 = vmatpush2.msra.mxu0 0.0
          %1854 = vmatprep.subr.mxu0 0.0
          %1855 = vmatpush2.msra.mxu0 0.0
          %1856 = vmatprep.subr.mxu0 0.0
          %1857 = vmatpush2.msra.mxu0 0.0
          %1858 = vmatprep.subr.mxu0 0.0
          %1859 = vmatpush2.msra.mxu0 0.0
          %1860 = vmatprep.subr.mxu0 0.0
          %1861 = vmatpush2.msra.mxu0 0.0
          %1862 = vmatprep.subr.mxu0 0.0
          %1863 = vmatpush2.msra.mxu0 0.0
          %1864 = vmatprep.subr.mxu0 0.0
          %1865 = vmatpush2.msra.mxu0 0.0
          %1866 = vmatprep.subr.mxu0 0.0
          %1867 = vmatpush2.msra.mxu0 0.0
          %1868 = vmatprep.subr.mxu0 0.0
          %1869 = vmatpush2.msra.mxu0 0.0
          %1870 = vmatprep.subr.mxu0 0.0
          %1871 = vmatpush2.msra.mxu0 0.0
          %1872 = vmatprep.subr.mxu0 0.0
          %1873 = vmatpush2.msra.mxu0 0.0
          %1874 = vmatprep.subr.mxu0 0.0
          %1875 = vmatpush2.msra.mxu0 0.0
          %1876 = vmatprep.subr.mxu0 0.0
          %1877 = vmatpush2.msra.mxu0 0.0
          %1878 = vmatprep.subr.mxu0 0.0
          %1879 = vmatpush2.msra.mxu0 0.0
          %1880 = vmatprep.subr.mxu0 0.0
          %1881 = vmatpush2.msra.mxu0 0.0
          %1882 = vmatprep.mubr.f32.mxu0 0.0
          %1883 = vmatmul.mubr.f32.gmra.mxu0 %v1813
          %v1884 = vpop.f32.mrf.mxu0
          %v1885 = vadd.f32 %v1807, %v1884
          %v1886 = vpop.f32.mrf.mxu0
          %1887 = vmatprep.mubr.f32.mxu0 0.0
          %1888 = vmatmul.mubr.f32.gmra.mxu0 %v1816
          %v1889 = vpop.f32.mrf.mxu0
          %v1890 = vadd.f32 %v1809, %v1889
          %v1891 = vpop.f32.mrf.mxu0
          %1892 = vdwg.mxu0
          %v1893 = vrcp.pop %v1790
          %v1894 = vrcp.pop %v1791
          %v1895 = vmul.f32 %v1885, %v1893
          %v1896 = vmul.f32 %v1890, %v1894
          %1899 = vrot.lane.b32.xlu0 %v1895, 16
          %v1900 = vpop.permute.xlu0 %1899
          %1901 = vrot.lane.b32.xlu0 %v1896, 16
          %v1902 = vpop.permute.xlu0 %1901
          %vm1905 = vcmask 195712
          %1906 = vst.msk [vmem:[#allocation2] sm:$0xff] %vm1905, %v1900
          %1907 = vst.msk [vmem:[#allocation2 + $0x8] sm:$0xff] %vm1905, %v1902
          %v1908 = vld [vmem:[%s300 + $0x7] sm:$0x1]
          %v1909 = vld [vmem:[%s300 + $0x8] sm:$0x1]
          %1910 = vrot.lane.b32.xlu0 %v1154, 104
          %v1911 = vpop.permute.xlu0 %1910
          %1912 = vrot.lane.b32.xlu0 %v1155, 104
          %v1913 = vpop.permute.xlu0 %1912
          %1914 = vrot.lane.b32.xlu0 %v1098, 104
          %v1915 = vpop.permute.xlu0 %1914
          %1916 = vrot.lane.b32.xlu0 %v1099, 104
          %v1917 = vpop.permute.xlu0 %1916
          %v1918 = vsel %vm1158, %v1911, 0
          %v1920 = vsel %vm1158, %v1913, 0
          %v1922 = vsel %vm1158, %v1915, 0
          %v1924 = vsel %vm1158, %v1917, 0
          %1926 = vmatprep.subr.mxu0 0.0
          %1927 = vmatpush1.xpose.msra.mxu0 0.0
          %1928 = vmatprep.subr.mxu0 0.0
          %1929 = vmatpush1.xpose.msra.mxu0 0.0
          %1930 = vmatprep.subr.mxu0 0.0
          %1931 = vmatpush1.xpose.msra.mxu0 0.0
          %1932 = vmatprep.subr.mxu0 0.0
          %1933 = vmatpush1.xpose.msra.mxu0 0.0
          %1934 = vmatprep.subr.mxu0 0.0
          %1935 = vmatpush1.xpose.msra.mxu0 0.0
          %1936 = vmatprep.subr.mxu0 0.0
          %1937 = vmatpush1.xpose.msra.mxu0 0.0
          %1938 = vmatprep.subr.mxu0 0.0
          %1939 = vmatpush1.xpose.msra.mxu0 0.0
          %1940 = vmatprep.subr.mxu0 0.0
          %1941 = vmatpush1.xpose.msra.mxu0 0.0
          %1942 = vmatprep.subr.mxu0 0.0
          %1943 = vmatpush1.xpose.msra.mxu0 0.0
          %1944 = vmatprep.subr.mxu0 0.0
          %1945 = vmatpush1.xpose.msra.mxu0 0.0
          %1946 = vmatprep.subr.mxu0 0.0
          %1947 = vmatpush1.xpose.msra.mxu0 0.0
          %1948 = vmatprep.subr.mxu0 0.0
          %1949 = vmatpush1.xpose.msra.mxu0 0.0
          %1950 = vmatprep.subr.mxu0 0.0
          %1951 = vmatpush1.xpose.msra.mxu0 0.0
          %1952 = vmatprep.subr.mxu0 0.0
          %1953 = vmatpush1.xpose.msra.mxu0 0.0
          %1954 = vmatprep.subr.mxu0 0.0
          %1955 = vmatpush1.xpose.msra.mxu0 %v1924
          %1956 = vmatprep.subr.mxu0 0.0
          %1957 = vmatpush1.xpose.msra.mxu0 %v1922
          %1958 = vmatprep.subr.mxu0 0.0
          %1959 = vmatpush2.xpose.msra.mxu0 0.0
          %1960 = vmatprep.subr.mxu0 0.0
          %1961 = vmatpush2.xpose.msra.mxu0 0.0
          %1962 = vmatprep.subr.mxu0 0.0
          %1963 = vmatpush2.xpose.msra.mxu0 0.0
          %1964 = vmatprep.subr.mxu0 0.0
          %1965 = vmatpush2.xpose.msra.mxu0 0.0
          %1966 = vmatprep.subr.mxu0 0.0
          %1967 = vmatpush2.xpose.msra.mxu0 0.0
          %1968 = vmatprep.subr.mxu0 0.0
          %1969 = vmatpush2.xpose.msra.mxu0 0.0
          %1970 = vmatprep.subr.mxu0 0.0
          %1971 = vmatpush2.xpose.msra.mxu0 0.0
          %1972 = vmatprep.subr.mxu0 0.0
          %1973 = vmatpush2.xpose.msra.mxu0 0.0
          %1974 = vmatprep.subr.mxu0 0.0
          %1975 = vmatpush2.xpose.msra.mxu0 0.0
          %1976 = vmatprep.subr.mxu0 0.0
          %1977 = vmatpush2.xpose.msra.mxu0 0.0
          %1978 = vmatprep.subr.mxu0 0.0
          %1979 = vmatpush2.xpose.msra.mxu0 0.0
          %1980 = vmatprep.subr.mxu0 0.0
          %1981 = vmatpush2.xpose.msra.mxu0 0.0
          %1982 = vmatprep.subr.mxu0 0.0
          %1983 = vmatpush2.xpose.msra.mxu0 0.0
          %1984 = vmatprep.subr.mxu0 0.0
          %1985 = vmatpush2.xpose.msra.mxu0 0.0
          %1986 = vmatprep.subr.mxu0 0.0
          %1987 = vmatpush2.xpose.msra.mxu0 0.0
          %1988 = vmatprep.subr.mxu0 0.0
          %1989 = vmatpush2.xpose.msra.mxu0 0.0
          %1990 = vmatprep.mubr.f32.mxu0 0.0
          %1991 = vmatmul.mubr.f32.gmra.mxu0 %v1918
          %v1992 = vpop.f32.mrf.mxu0
          %v1993 = vadd.f32 0.0, %v1992
          %v1994 = vpop.f32.mrf.mxu0
          %1995 = vmatprep.mubr.f32.mxu0 0.0
          %1996 = vmatmul.mubr.f32.gmra.mxu0 %v1920
          %v1997 = vpop.f32.mrf.mxu0
          %v1998 = vadd.f32 0.0, %v1997
          %v1999 = vpop.f32.mrf.mxu0
          %2000 = vdwg.mxu0
          %v2001 = vsel %vm1152, %v1993, -1e+30
          %v2002 = vsel %vm1153, %v1998, -1e+30
          %v2003 = vlaneseq
          %v2004 = vshrl.u32 %v2003, 7
          %v2005 = vsub.s32 0, %v2004
          %v2006 = vrot.slane %v1908, %v2005
          %v2007 = vmul.f32 %v1154, %v2006
          %v2008 = vmul.f32 %v1155, %v2006
          %2011 = vrot.lane.b32.xlu0 %v2007, 104
          %v2012 = vpop.permute.xlu0 %2011
          %2013 = vrot.lane.b32.xlu0 %v2008, 104
          %v2014 = vpop.permute.xlu0 %2013
          %v2017 = vsel %vm1158, %v2012, 0.0
          %2018 = vadd.xlane.f32.xlu0 %v2017
          %v2019 = vpop.xlane.xlu0 %2018
          %v2020 = vsel %vm1158, %v2014, 0.0
          %2021 = vadd.xlane.f32.xlu0 %v2020
          %v2022 = vpop.xlane.xlu0 %2021
          %v2023 = vsel %vm1260, %v2001, -inf
          %2024 = vmax.xlane.f32.xlu0 %v2023
          %v2025 = vpop.xlane.xlu0 %2024
          %v2026 = vsel %vm1260, %v2002, -inf
          %2027 = vmax.xlane.f32.xlu0 %v2026
          %v2028 = vpop.xlane.xlu0 %2027
          %v2029 = vmax.f32 %v2025, %v2019
          %v2030 = vmax.f32 %v2028, %v2022
          %v2031 = vsub.f32 %v2001, %v2029
          %v2032 = vsub.f32 %v2002, %v2030
          %v2033 = vmul.f32 %v2031, 1.442695
          %v2034 = vpow.pop %v2033
          %v2035 = vmul.f32 %v2032, 1.442695
          %v2036 = vpow.pop %v2035
          %v2037 = vsub.f32 %v2019, %v2029
          %v2038 = vsub.f32 %v2022, %v2030
          %v2039 = vmul.f32 %v2037, 1.442695
          %v2040 = vpow.pop %v2039
          %v2041 = vmul.f32 %v2038, 1.442695
          %v2042 = vpow.pop %v2041
          %v2043 = vsel %vm1260, %v2034, 0.0
          %2044 = vadd.xlane.f32.xlu0 %v2043
          %v2045 = vpop.xlane.xlu0 %2044
          %v2046 = vsel %vm1260, %v2036, 0.0
          %2047 = vadd.xlane.f32.xlu0 %v2046
          %v2048 = vpop.xlane.xlu0 %2047
          %v2049 = vadd.f32 %v2045, %v2040
          %v2050 = vadd.f32 %v2048, %v2042
          %v2051 = vlaneseq
          %v2052 = vshrl.u32 %v2051, 7
          %v2053 = vsub.s32 0, %v2052
          %v2054 = vrot.slane %v1909, %v2053
          %v2055 = vmul.f32 %v2040, %v2054
          %v2056 = vmul.f32 %v2042, %v2054
          %2057 = vrot.lane.b32.xlu0 %v1109, 72
          %v2058 = vpop.permute.xlu0 %2057
          %2059 = vrot.lane.b32.xlu0 %v1110, 72
          %v2060 = vpop.permute.xlu0 %2059
          %2065 = vrot.lane.b32.xlu0 %v2055, 104
          %v2066 = vpop.permute.xlu0 %2065
          %2067 = vrot.lane.b32.xlu0 %v2056, 104
          %v2068 = vpop.permute.xlu0 %2067
          %v2072 = vsel %vm1260, %v2034, 0
          %v2075 = vsel %vm1260, %v2036, 0
          %2077 = vmatprep.subr.mxu0 0.0
          %2078 = vmatpush1.msra.mxu0 0.0
          %2079 = vmatprep.subr.mxu0 0.0
          %2080 = vmatpush1.msra.mxu0 0.0
          %2081 = vmatprep.subr.mxu0 0.0
          %2082 = vmatpush1.msra.mxu0 0.0
          %2083 = vmatprep.subr.mxu0 0.0
          %2084 = vmatpush1.msra.mxu0 0.0
          %2085 = vmatprep.subr.mxu0 0.0
          %2086 = vmatpush1.msra.mxu0 0.0
          %2087 = vmatprep.subr.mxu0 0.0
          %2088 = vmatpush1.msra.mxu0 0.0
          %2089 = vmatprep.subr.mxu0 0.0
          %2090 = vmatpush1.msra.mxu0 0.0
          %2091 = vmatprep.subr.mxu0 0.0
          %2092 = vmatpush1.msra.mxu0 0.0
          %2093 = vmatprep.subr.mxu0 0.0
          %2094 = vmatpush1.msra.mxu0 0.0
          %2095 = vmatprep.subr.mxu0 0.0
          %2096 = vmatpush1.msra.mxu0 0.0
          %2097 = vmatprep.subr.mxu0 0.0
          %2098 = vmatpush1.msra.mxu0 0.0
          %2099 = vmatprep.subr.mxu0 0.0
          %2100 = vmatpush1.msra.mxu0 0.0
          %2101 = vmatprep.subr.mxu0 0.0
          %2102 = vmatpush1.msra.mxu0 0.0
          %2103 = vmatprep.subr.mxu0 0.0
          %2104 = vmatpush1.msra.mxu0 0.0
          %2105 = vmatprep.subr.mxu0 0.0
          %2106 = vmatpush1.msra.mxu0 %v2060
          %2107 = vmatprep.subr.mxu0 0.0
          %2108 = vmatpush1.msra.mxu0 %v2058
          %2109 = vmatprep.subr.mxu0 0.0
          %2110 = vmatpush2.msra.mxu0 0.0
          %2111 = vmatprep.subr.mxu0 0.0
          %2112 = vmatpush2.msra.mxu0 0.0
          %2113 = vmatprep.subr.mxu0 0.0
          %2114 = vmatpush2.msra.mxu0 0.0
          %2115 = vmatprep.subr.mxu0 0.0
          %2116 = vmatpush2.msra.mxu0 0.0
          %2117 = vmatprep.subr.mxu0 0.0
          %2118 = vmatpush2.msra.mxu0 0.0
          %2119 = vmatprep.subr.mxu0 0.0
          %2120 = vmatpush2.msra.mxu0 0.0
          %2121 = vmatprep.subr.mxu0 0.0
          %2122 = vmatpush2.msra.mxu0 0.0
          %2123 = vmatprep.subr.mxu0 0.0
          %2124 = vmatpush2.msra.mxu0 0.0
          %2125 = vmatprep.subr.mxu0 0.0
          %2126 = vmatpush2.msra.mxu0 0.0
          %2127 = vmatprep.subr.mxu0 0.0
          %2128 = vmatpush2.msra.mxu0 0.0
          %2129 = vmatprep.subr.mxu0 0.0
          %2130 = vmatpush2.msra.mxu0 0.0
          %2131 = vmatprep.subr.mxu0 0.0
          %2132 = vmatpush2.msra.mxu0 0.0
          %2133 = vmatprep.subr.mxu0 0.0
          %2134 = vmatpush2.msra.mxu0 0.0
          %2135 = vmatprep.subr.mxu0 0.0
          %2136 = vmatpush2.msra.mxu0 0.0
          %2137 = vmatprep.subr.mxu0 0.0
          %2138 = vmatpush2.msra.mxu0 0.0
          %2139 = vmatprep.subr.mxu0 0.0
          %2140 = vmatpush2.msra.mxu0 0.0
          %2141 = vmatprep.mubr.f32.mxu0 0.0
          %2142 = vmatmul.mubr.f32.gmra.mxu0 %v2072
          %v2143 = vpop.f32.mrf.mxu0
          %v2144 = vadd.f32 %v2066, %v2143
          %v2145 = vpop.f32.mrf.mxu0
          %2146 = vmatprep.mubr.f32.mxu0 0.0
          %2147 = vmatmul.mubr.f32.gmra.mxu0 %v2075
          %v2148 = vpop.f32.mrf.mxu0
          %v2149 = vadd.f32 %v2068, %v2148
          %v2150 = vpop.f32.mrf.mxu0
          %2151 = vdwg.mxu0
          %v2152 = vrcp.pop %v2049
          %v2153 = vrcp.pop %v2050
          %v2154 = vmul.f32 %v2144, %v2152
          %v2155 = vmul.f32 %v2149, %v2153
          %2158 = vrot.lane.b32.xlu0 %v2154, 24
          %v2159 = vpop.permute.xlu0 %2158
          %2160 = vrot.lane.b32.xlu0 %v2155, 24
          %v2161 = vpop.permute.xlu0 %2160
          %vm2164 = vcmask 261312
          %2165 = vst.msk [vmem:[#allocation2] sm:$0xff] %vm2164, %v2159
          %2166 = vst.msk [vmem:[#allocation2 + $0x8] sm:$0xff] %vm2164, %v2161
        $region72: #{perceiver_block.1} parent=39 // pred_fallthru
          _
        %v2167 = vld [vmem:[#allocation2] sm:$0xff]
        %v2168 = vld [vmem:[#allocation2 + $0x8] sm:$0xff]
        %v2169 = vld [vmem:[%s291] sm:$0xff]
        %v2170 = vld [vmem:[%s291 + $0x8] sm:$0xff]
        %v2171 = vld [vmem:[%s291 + $0x10] sm:$0xff]
        %v2172 = vld [vmem:[%s291 + $0x18] sm:$0xff]
        %v2173 = vld [vmem:[%s300 + $0x9] sm:$0x1]
        %v2174 = vlaneseq
        %v2175 = vshrl.u32 %v2174, 7
        %v2176 = vsub.s32 0, %v2175
        %v2177 = vrot.slane %v2173, %v2176
        %v2179 = vsel %vm349, %v2167, 0
        %v2182 = vsel %vm349, %v2168, 0
        %2184 = vmatprep.subr.mxu0 0.0
        %2185 = vmatpush1.msra.mxu0 0.0
        %2186 = vmatprep.subr.mxu0 0.0
        %2187 = vmatpush1.msra.mxu0 0.0
        %2188 = vmatprep.subr.mxu0 0.0
        %2189 = vmatpush1.msra.mxu0 0.0
        %2190 = vmatprep.subr.mxu0 0.0
        %2191 = vmatpush1.msra.mxu0 0.0
        %2192 = vmatprep.subr.mxu0 0.0
        %2193 = vmatpush1.msra.mxu0 0.0
        %2194 = vmatprep.subr.mxu0 0.0
        %2195 = vmatpush1.msra.mxu0 0.0
        %2196 = vmatprep.subr.mxu0 0.0
        %2197 = vmatpush1.msra.mxu0 0.0
        %2198 = vmatprep.subr.mxu0 0.0
        %2199 = vmatpush1.msra.mxu0 0.0
        %2200 = vmatprep.subr.mxu0 0.0
        %2201 = vmatpush1.msra.mxu0 0.0
        %2202 = vmatprep.subr.mxu0 0.0
        %2203 = vmatpush1.msra.mxu0 0.0
        %2204 = vmatprep.subr.mxu0 0.0
        %2205 = vmatpush1.msra.mxu0 0.0
        %2206 = vmatprep.subr.mxu0 0.0
        %2207 = vmatpush1.msra.mxu0 0.0
        %2208 = vmatprep.subr.mxu0 0.0
        %2209 = vmatpush1.msra.mxu0 %v2172
        %2210 = vmatprep.subr.mxu0 0.0
        %2211 = vmatpush1.msra.mxu0 %v2171
        %2212 = vmatprep.subr.mxu0 0.0
        %2213 = vmatpush1.msra.mxu0 %v2170
        %2214 = vmatprep.subr.mxu0 0.0
        %2215 = vmatpush1.msra.mxu0 %v2169
        %2216 = vmatprep.subr.mxu0 0.0
        %2217 = vmatpush2.msra.mxu0 0.0
        %2218 = vmatprep.subr.mxu0 0.0
        %2219 = vmatpush2.msra.mxu0 0.0
        %2220 = vmatprep.subr.mxu0 0.0
        %2221 = vmatpush2.msra.mxu0 0.0
        %2222 = vmatprep.subr.mxu0 0.0
        %2223 = vmatpush2.msra.mxu0 0.0
        %2224 = vmatprep.subr.mxu0 0.0
        %2225 = vmatpush2.msra.mxu0 0.0
        %2226 = vmatprep.subr.mxu0 0.0
        %2227 = vmatpush2.msra.mxu0 0.0
        %2228 = vmatprep.subr.mxu0 0.0
        %2229 = vmatpush2.msra.mxu0 0.0
        %2230 = vmatprep.subr.mxu0 0.0
        %2231 = vmatpush2.msra.mxu0 0.0
        %2232 = vmatprep.subr.mxu0 0.0
        %2233 = vmatpush2.msra.mxu0 0.0
        %2234 = vmatprep.subr.mxu0 0.0
        %2235 = vmatpush2.msra.mxu0 0.0
        %2236 = vmatprep.subr.mxu0 0.0
        %2237 = vmatpush2.msra.mxu0 0.0
        %2238 = vmatprep.subr.mxu0 0.0
        %2239 = vmatpush2.msra.mxu0 0.0
        %2240 = vmatprep.subr.mxu0 0.0
        %2241 = vmatpush2.msra.mxu0 0.0
        %2242 = vmatprep.subr.mxu0 0.0
        %2243 = vmatpush2.msra.mxu0 0.0
        %2244 = vmatprep.subr.mxu0 0.0
        %2245 = vmatpush2.msra.mxu0 0.0
        %2246 = vmatprep.subr.mxu0 0.0
        %2247 = vmatpush2.msra.mxu0 0.0
        %2248 = vmatprep.mubr.f32.mxu0 0.0
        %2249 = vmatmul.mubr.f32.gmra.mxu0 %v2179
        %v2250 = vpop.f32.mrf.mxu0
        %v2251 = vadd.f32 %v2177, %v2250
        %v2252 = vpop.f32.mrf.mxu0
        %2253 = vmatprep.mubr.f32.mxu0 0.0
        %2254 = vmatmul.mubr.f32.gmra.mxu0 %v2182
        %v2255 = vpop.f32.mrf.mxu0
        %v2256 = vadd.f32 %v2177, %v2255
        %v2257 = vpop.f32.mrf.mxu0
        %2258 = vdwg.mxu0
        %s2259 = scalar_lea.vmem %s291, 32 [#allocation10]
        %v2260 = vld [vmem:[%s2259] sm:$0xff]
        %v2261 = vld [vmem:[%s2259 + $0x8] sm:$0xff]
        %v2262 = vld [vmem:[%s2259 + $0x10] sm:$0xff]
        %v2263 = vld [vmem:[%s2259 + $0x18] sm:$0xff]
        %v2264 = vld [vmem:[%s300 + $0xa] sm:$0x1]
        %v2265 = vlaneseq
        %v2266 = vshrl.u32 %v2265, 7
        %v2267 = vsub.s32 0, %v2266
        %v2268 = vrot.slane %v2264, %v2267
        %v2270 = vsel %vm349, %v2251, 0
        %v2273 = vsel %vm349, %v2256, 0
        %2275 = vmatprep.subr.mxu0 0.0
        %2276 = vmatpush1.msra.mxu0 0.0
        %2277 = vmatprep.subr.mxu0 0.0
        %2278 = vmatpush1.msra.mxu0 0.0
        %2279 = vmatprep.subr.mxu0 0.0
        %2280 = vmatpush1.msra.mxu0 0.0
        %2281 = vmatprep.subr.mxu0 0.0
        %2282 = vmatpush1.msra.mxu0 0.0
        %2283 = vmatprep.subr.mxu0 0.0
        %2284 = vmatpush1.msra.mxu0 0.0
        %2285 = vmatprep.subr.mxu0 0.0
        %2286 = vmatpush1.msra.mxu0 0.0
        %2287 = vmatprep.subr.mxu0 0.0
        %2288 = vmatpush1.msra.mxu0 0.0
        %2289 = vmatprep.subr.mxu0 0.0
        %2290 = vmatpush1.msra.mxu0 0.0
        %2291 = vmatprep.subr.mxu0 0.0
        %2292 = vmatpush1.msra.mxu0 0.0
        %2293 = vmatprep.subr.mxu0 0.0
        %2294 = vmatpush1.msra.mxu0 0.0
        %2295 = vmatprep.subr.mxu0 0.0
        %2296 = vmatpush1.msra.mxu0 0.0
        %2297 = vmatprep.subr.mxu0 0.0
        %2298 = vmatpush1.msra.mxu0 0.0
        %2299 = vmatprep.subr.mxu0 0.0
        %2300 = vmatpush1.msra.mxu0 %v2263
        %2301 = vmatprep.subr.mxu0 0.0
        %2302 = vmatpush1.msra.mxu0 %v2262
        %2303 = vmatprep.subr.mxu0 0.0
        %2304 = vmatpush1.msra.mxu0 %v2261
        %2305 = vmatprep.subr.mxu0 0.0
        %2306 = vmatpush1.msra.mxu0 %v2260
        %2307 = vmatprep.subr.mxu0 0.0
        %2308 = vmatpush2.msra.mxu0 0.0
        %2309 = vmatprep.subr.mxu0 0.0
        %2310 = vmatpush2.msra.mxu0 0.0
        %2311 = vmatprep.subr.mxu0 0.0
        %2312 = vmatpush2.msra.mxu0 0.0
        %2313 = vmatprep.subr.mxu0 0.0
        %2314 = vmatpush2.msra.mxu0 0.0
        %2315 = vmatprep.subr.mxu0 0.0
        %2316 = vmatpush2.msra.mxu0 0.0
        %2317 = vmatprep.subr.mxu0 0.0
        %2318 = vmatpush2.msra.mxu0 0.0
        %2319 = vmatprep.subr.mxu0 0.0
        %2320 = vmatpush2.msra.mxu0 0.0
        %2321 = vmatprep.subr.mxu0 0.0
        %2322 = vmatpush2.msra.mxu0 0.0
        %2323 = vmatprep.subr.mxu0 0.0
        %2324 = vmatpush2.msra.mxu0 0.0
        %2325 = vmatprep.subr.mxu0 0.0
        %2326 = vmatpush2.msra.mxu0 0.0
        %2327 = vmatprep.subr.mxu0 0.0
        %2328 = vmatpush2.msra.mxu0 0.0
        %2329 = vmatprep.subr.mxu0 0.0
        %2330 = vmatpush2.msra.mxu0 0.0
        %2331 = vmatprep.subr.mxu0 0.0
        %2332 = vmatpush2.msra.mxu0 0.0
        %2333 = vmatprep.subr.mxu0 0.0
        %2334 = vmatpush2.msra.mxu0 0.0
        %2335 = vmatprep.subr.mxu0 0.0
        %2336 = vmatpush2.msra.mxu0 0.0
        %2337 = vmatprep.subr.mxu0 0.0
        %2338 = vmatpush2.msra.mxu0 0.0
        %2339 = vmatprep.mubr.f32.mxu0 0.0
        %2340 = vmatmul.mubr.f32.gmra.mxu0 %v2270
        %v2341 = vpop.f32.mrf.mxu0
        %v2342 = vadd.f32 %v2268, %v2341
        %v2343 = vpop.f32.mrf.mxu0
        %2344 = vmatprep.mubr.f32.mxu0 0.0
        %2345 = vmatmul.mubr.f32.gmra.mxu0 %v2273
        %v2346 = vpop.f32.mrf.mxu0
        %v2347 = vadd.f32 %v2268, %v2346
        %v2348 = vpop.f32.mrf.mxu0
        %2349 = vdwg.mxu0
        %v2350 = vld [vmem:[%s300 + $0xb] sm:$0x1]
        %v2351 = vld [vmem:[%s300 + $0xc] sm:$0x1]
        %v2352 = vsel %vm349, %v2342, 0.0
        %2353 = vadd.xlane.f32.xlu0 %v2352
        %v2354 = vpop.xlane.xlu0 %2353
        %v2355 = vsel %vm349, %v2347, 0.0
        %2356 = vadd.xlane.f32.xlu0 %v2355
        %v2357 = vpop.xlane.xlu0 %2356
        %v2358 = vmul.f32 %v2354, %v356
        %v2359 = vmul.f32 %v2357, %v356
        %v2360 = vsub.f32 %v2342, %v2358
        %v2361 = vsub.f32 %v2347, %v2359
        %v2362 = vmul.f32 %v2360, %v2360
        %v2363 = vmul.f32 %v2361, %v2361
        %v2364 = vsel %vm349, %v2362, 0.0
        %2365 = vadd.xlane.f32.xlu0 %v2364
        %v2366 = vpop.xlane.xlu0 %2365
        %v2367 = vsel %vm349, %v2363, 0.0
        %2368 = vadd.xlane.f32.xlu0 %v2367
        %v2369 = vpop.xlane.xlu0 %2368
        %v2370 = vmul.f32 %v2366, %v356
        %v2371 = vmul.f32 %v2369, %v356
        %v2372 = vadd.f32 %v2370, 1e-05
        %v2373 = vadd.f32 %v2371, 1e-05
        %v2374 = vrsqrt.pop %v2372
        %v2375 = vrsqrt.pop %v2373
        %v2376 = vmul.f32 %v2360, %v2374
        %v2377 = vmul.f32 %v2361, %v2375
        %v2378 = vlaneseq
        %v2379 = vshrl.u32 %v2378, 7
        %v2380 = vsub.s32 0, %v2379
        %v2381 = vrot.slane %v2350, %v2380
        %v2382 = vmul.f32 %v2376, %v2381
        %v2383 = vmul.f32 %v2377, %v2381
        %v2384 = vlaneseq
        %v2385 = vshrl.u32 %v2384, 7
        %v2386 = vsub.s32 0, %v2385
        %v2387 = vrot.slane %v2351, %v2386
        %v2388 = vadd.f32 %v2382, %v2387
        %v2389 = vadd.f32 %v2383, %v2387
        %s2390 = scalar_lea.vmem %s291, 64 [#allocation10]
        %v2391 = vld [vmem:[%s2390] sm:$0xff]
        %v2392 = vld [vmem:[%s2390 + $0x8] sm:$0xff]
        %v2393 = vld [vmem:[%s2390 + $0x10] sm:$0xff]
        %v2394 = vld [vmem:[%s2390 + $0x18] sm:$0xff]
        %v2395 = vld [vmem:[%s300 + $0xd] sm:$0x1]
        %v2396 = vlaneseq
        %v2397 = vshrl.u32 %v2396, 7
        %v2398 = vsub.s32 0, %v2397
        %v2399 = vrot.slane %v2395, %v2398
        %v2401 = vsel %vm349, %v2388, 0
        %v2404 = vsel %vm349, %v2389, 0
        %2406 = vmatprep.subr.mxu0 0.0
        %2407 = vmatpush1.msra.mxu0 0.0
        %2408 = vmatprep.subr.mxu0 0.0
        %2409 = vmatpush1.msra.mxu0 0.0
        %2410 = vmatprep.subr.mxu0 0.0
        %2411 = vmatpush1.msra.mxu0 0.0
        %2412 = vmatprep.subr.mxu0 0.0
        %2413 = vmatpush1.msra.mxu0 0.0
        %2414 = vmatprep.subr.mxu0 0.0
        %2415 = vmatpush1.msra.mxu0 0.0
        %2416 = vmatprep.subr.mxu0 0.0
        %2417 = vmatpush1.msra.mxu0 0.0
        %2418 = vmatprep.subr.mxu0 0.0
        %2419 = vmatpush1.msra.mxu0 0.0
        %2420 = vmatprep.subr.mxu0 0.0
        %2421 = vmatpush1.msra.mxu0 0.0
        %2422 = vmatprep.subr.mxu0 0.0
        %2423 = vmatpush1.msra.mxu0 0.0
        %2424 = vmatprep.subr.mxu0 0.0
        %2425 = vmatpush1.msra.mxu0 0.0
        %2426 = vmatprep.subr.mxu0 0.0
        %2427 = vmatpush1.msra.mxu0 0.0
        %2428 = vmatprep.subr.mxu0 0.0
        %2429 = vmatpush1.msra.mxu0 0.0
        %2430 = vmatprep.subr.mxu0 0.0
        %2431 = vmatpush1.msra.mxu0 %v2394
        %2432 = vmatprep.subr.mxu0 0.0
        %2433 = vmatpush1.msra.mxu0 %v2393
        %2434 = vmatprep.subr.mxu0 0.0
        %2435 = vmatpush1.msra.mxu0 %v2392
        %2436 = vmatprep.subr.mxu0 0.0
        %2437 = vmatpush1.msra.mxu0 %v2391
        %2438 = vmatprep.subr.mxu0 0.0
        %2439 = vmatpush2.msra.mxu0 0.0
        %2440 = vmatprep.subr.mxu0 0.0
        %2441 = vmatpush2.msra.mxu0 0.0
        %2442 = vmatprep.subr.mxu0 0.0
        %2443 = vmatpush2.msra.mxu0 0.0
        %2444 = vmatprep.subr.mxu0 0.0
        %2445 = vmatpush2.msra.mxu0 0.0
        %2446 = vmatprep.subr.mxu0 0.0
        %2447 = vmatpush2.msra.mxu0 0.0
        %2448 = vmatprep.subr.mxu0 0.0
        %2449 = vmatpush2.msra.mxu0 0.0
        %2450 = vmatprep.subr.mxu0 0.0
        %2451 = vmatpush2.msra.mxu0 0.0
        %2452 = vmatprep.subr.mxu0 0.0
        %2453 = vmatpush2.msra.mxu0 0.0
        %2454 = vmatprep.subr.mxu0 0.0
        %2455 = vmatpush2.msra.mxu0 0.0
        %2456 = vmatprep.subr.mxu0 0.0
        %2457 = vmatpush2.msra.mxu0 0.0
        %2458 = vmatprep.subr.mxu0 0.0
        %2459 = vmatpush2.msra.mxu0 0.0
        %2460 = vmatprep.subr.mxu0 0.0
        %2461 = vmatpush2.msra.mxu0 0.0
        %2462 = vmatprep.subr.mxu0 0.0
        %2463 = vmatpush2.msra.mxu0 0.0
        %2464 = vmatprep.subr.mxu0 0.0
        %2465 = vmatpush2.msra.mxu0 0.0
        %2466 = vmatprep.subr.mxu0 0.0
        %2467 = vmatpush2.msra.mxu0 0.0
        %2468 = vmatprep.subr.mxu0 0.0
        %2469 = vmatpush2.msra.mxu0 0.0
        %2470 = vmatprep.mubr.f32.mxu0 0.0
        %2471 = vmatmul.mubr.f32.gmra.mxu0 %v2401
        %v2472 = vpop.f32.mrf.mxu0
        %v2473 = vadd.f32 %v2399, %v2472
        %v2474 = vpop.f32.mrf.mxu0
        %2475 = vmatprep.mubr.f32.mxu0 0.0
        %2476 = vmatmul.mubr.f32.gmra.mxu0 %v2404
        %v2477 = vpop.f32.mrf.mxu0
        %v2478 = vadd.f32 %v2399, %v2477
        %v2479 = vpop.f32.mrf.mxu0
        %2480 = vdwg.mxu0
        %v2481 = vmul.f32 %v2473, 0.5
        %v2482 = vmul.f32 %v2478, 0.5
        %v2483 = vmul.f32 %v2473, 0.70710677
        %v2484 = vmul.f32 %v2478, 0.70710677
        %v2485 = verf.f32.pop %v2483
        %v2486 = verf.f32.pop %v2484
        %v2487 = vadd.f32 %v2485, 1.0
        %v2488 = vadd.f32 %v2486, 1.0
        %v2489 = vmul.f32 %v2481, %v2487
        %v2490 = vmul.f32 %v2482, %v2488
        %s2491 = scalar_lea.vmem %s291, 96 [#allocation10]
        %v2492 = vld [vmem:[%s2491] sm:$0xff]
        %v2493 = vld [vmem:[%s2491 + $0x8] sm:$0xff]
        %v2494 = vld [vmem:[%s2491 + $0x10] sm:$0xff]
        %v2495 = vld [vmem:[%s2491 + $0x18] sm:$0xff]
        %v2496 = vld [vmem:[%s300 + $0xe] sm:$0x1]
        %v2497 = vlaneseq
        %v2498 = vshrl.u32 %v2497, 7
        %v2499 = vsub.s32 0, %v2498
        %v2500 = vrot.slane %v2496, %v2499
        %v2502 = vsel %vm349, %v2489, 0
        %v2505 = vsel %vm349, %v2490, 0
        %2507 = vmatprep.subr.mxu0 0.0
        %2508 = vmatpush1.msra.mxu0 0.0
        %2509 = vmatprep.subr.mxu0 0.0
        %2510 = vmatpush1.msra.mxu0 0.0
        %2511 = vmatprep.subr.mxu0 0.0
        %2512 = vmatpush1.msra.mxu0 0.0
        %2513 = vmatprep.subr.mxu0 0.0
        %2514 = vmatpush1.msra.mxu0 0.0
        %2515 = vmatprep.subr.mxu0 0.0
        %2516 = vmatpush1.msra.mxu0 0.0
        %2517 = vmatprep.subr.mxu0 0.0
        %2518 = vmatpush1.msra.mxu0 0.0
        %2519 = vmatprep.subr.mxu0 0.0
        %2520 = vmatpush1.msra.mxu0 0.0
        %2521 = vmatprep.subr.mxu0 0.0
        %2522 = vmatpush1.msra.mxu0 0.0
        %2523 = vmatprep.subr.mxu0 0.0
        %2524 = vmatpush1.msra.mxu0 0.0
        %2525 = vmatprep.subr.mxu0 0.0
        %2526 = vmatpush1.msra.mxu0 0.0
        %2527 = vmatprep.subr.mxu0 0.0
        %2528 = vmatpush1.msra.mxu0 0.0
        %2529 = vmatprep.subr.mxu0 0.0
        %2530 = vmatpush1.msra.mxu0 0.0
        %2531 = vmatprep.subr.mxu0 0.0
        %2532 = vmatpush1.msra.mxu0 %v2495
        %2533 = vmatprep.subr.mxu0 0.0
        %2534 = vmatpush1.msra.mxu0 %v2494
        %2535 = vmatprep.subr.mxu0 0.0
        %2536 = vmatpush1.msra.mxu0 %v2493
        %2537 = vmatprep.subr.mxu0 0.0
        %2538 = vmatpush1.msra.mxu0 %v2492
        %2539 = vmatprep.subr.mxu0 0.0
        %2540 = vmatpush2.msra.mxu0 0.0
        %2541 = vmatprep.subr.mxu0 0.0
        %2542 = vmatpush2.msra.mxu0 0.0
        %2543 = vmatprep.subr.mxu0 0.0
        %2544 = vmatpush2.msra.mxu0 0.0
        %2545 = vmatprep.subr.mxu0 0.0
        %2546 = vmatpush2.msra.mxu0 0.0
        %2547 = vmatprep.subr.mxu0 0.0
        %2548 = vmatpush2.msra.mxu0 0.0
        %2549 = vmatprep.subr.mxu0 0.0
        %2550 = vmatpush2.msra.mxu0 0.0
        %2551 = vmatprep.subr.mxu0 0.0
        %2552 = vmatpush2.msra.mxu0 0.0
        %2553 = vmatprep.subr.mxu0 0.0
        %2554 = vmatpush2.msra.mxu0 0.0
        %2555 = vmatprep.subr.mxu0 0.0
        %2556 = vmatpush2.msra.mxu0 0.0
        %2557 = vmatprep.subr.mxu0 0.0
        %2558 = vmatpush2.msra.mxu0 0.0
        %2559 = vmatprep.subr.mxu0 0.0
        %2560 = vmatpush2.msra.mxu0 0.0
        %2561 = vmatprep.subr.mxu0 0.0
        %2562 = vmatpush2.msra.mxu0 0.0
        %2563 = vmatprep.subr.mxu0 0.0
        %2564 = vmatpush2.msra.mxu0 0.0
        %2565 = vmatprep.subr.mxu0 0.0
        %2566 = vmatpush2.msra.mxu0 0.0
        %2567 = vmatprep.subr.mxu0 0.0
        %2568 = vmatpush2.msra.mxu0 0.0
        %2569 = vmatprep.subr.mxu0 0.0
        %2570 = vmatpush2.msra.mxu0 0.0
        %2571 = vmatprep.mubr.f32.mxu0 0.0
        %2572 = vmatmul.mubr.f32.gmra.mxu0 %v2502
        %v2573 = vpop.f32.mrf.mxu0
        %v2574 = vadd.f32 %v2500, %v2573
        %v2575 = vpop.f32.mrf.mxu0
        %2576 = vmatprep.mubr.f32.mxu0 0.0
        %2577 = vmatmul.mubr.f32.gmra.mxu0 %v2505
        %v2578 = vpop.f32.mrf.mxu0
        %v2579 = vadd.f32 %v2500, %v2578
        %v2580 = vpop.f32.mrf.mxu0
        %2581 = vdwg.mxu0
        %v2582 = vadd.f32 %v2574, %v345
        %v2583 = vadd.f32 %v2579, %v346
        %2584 = vst.msk [vmem:[#allocation3] sm:$0xff] %vm349, %v2582
        %2585 = vst.msk [vmem:[#allocation3 + $0x8] sm:$0xff] %vm349, %v2583
        %p2586 = scmp.eq.s32.totalorder %s19, 2
        // Predicated region
        $region73: #{perceiver_block.1} parent=39 // pred_check
          %p2587 = pneg %p2586
        $region74: #{perceiver_block.1} parent=39 // pred_check_branch
          %2589 = sbr.rel (%p2587) target = $region76
        $region75: #{perceiver_block.1} parent=39 // pred_region
          %2590 = vst.msk [vmem:[#allocation12] sm:$0xff] %vm349, %v2582
          %2591 = vst.msk [vmem:[#allocation12 + $0x8] sm:$0xff] %vm349, %v2583
        $region76: #{perceiver_block.1} parent=39 // pred_fallthru
          _
        // Predicated region
        $region77: #{perceiver_block.1} parent=39 // pred_check
          %p2592 = pneg %p152
        $region78: #{perceiver_block.1} parent=39 // pred_check_branch
          %2594 = sbr.rel (%p2592) target = $region80
        $region79: #{perceiver_block.1} parent=39 // pred_region
          %s2596 = ssub.s32 256, 256
          %2597 = vsyncadd [#allocation6], %s2596
          %s2598 = sshll.u32 [#allocation12], 4
          %s2599 = int_to_ptr.vmem [resolvable:$true] %s2598
          %2604 = dma.vmem_to_hbm [thread:$0]  %s2599, 256, %s5, [#allocation6], 128, 128, 8
        $region80: #{perceiver_block.1} parent=39 // pred_fallthru
          _
        // Predicated region
        $region81: #{perceiver_block.1} parent=39 // pred_check
          %p2605 = pneg %p152
        $region82: #{perceiver_block.1} parent=39 // pred_check_branch
          %2607 = sbr.rel (%p2605) target = $region84
        $region83: #{perceiver_block.1} parent=39 // pred_region
          %2608 = dma.done [#allocation6], 256
        $region84: #{perceiver_block.1} parent=39 // pred_fallthru
          _
      $region40: #{perceiver_block.1} parent=5 // pred_fallthru
        _
      %p2609 = scmp.le.s32.totalorder 2, %s14
      // Predicated region
      $region85: #{perceiver_block.1} parent=5 // pred_check
        %p2610 = pneg %p2609
      $region86: #{perceiver_block.1} parent=5 // pred_check_branch
        %2612 = sbr.rel (%p2610) target = $region88
      $region87: #{perceiver_block.1} parent=5 // pred_region
        %s2613 = ssub.s32 %s14, 2
      $region88: #{perceiver_block.1} parent=5 // pred_fallthru
        _
    $region6: #{perceiver_block.1} parent=1 // loop_footer
      %s18 = sadd.s32 1, %s14
    $region7: #{perceiver_block.1} parent=1 // loop_footer_branch
      %13 = sbr.rel target = $region3
    $region8: #{perceiver_block.1} parent=1 // loop_exit
      _
    %2614 = vsyncpa [#allocation5], 1
    %s2615 = scalar_lea.sflag [#allocation5], 1
    %2616 = vsyncpa %s2615, 1
    %2617 = vsyncpa [#allocation8], 1
    %2618 = vsyncpa [#allocation6], 1
    %s2619 = scalar_lea.sflag [#allocation6], 1
    %2620 = vsyncpa %s2619, 1

</llo_original>
